<compile_context>
chip_gen: v7x
topology: tpu7x:2x2x1
jax: 0.10.0
libtpu: 0.0.40
codegen_flags: <defaults>
</compile_context>

<pallas_src>
import functools
import math

import jax
import jax.numpy as jnp
from jax.experimental import pallas as pl
from jax.experimental.pallas import tpu as pltpu


def _round_up(x, m):
    return (x + m - 1) // m * m


def _choose_tile(n):
    """Return (tile, padded_n). One tile for small clouds, 512-wide flash tiles otherwise."""
    if n <= 512:
        t = _round_up(n, 8)
        return t, t
    t = 512
    return t, _round_up(n, t)


def _vmem_limit_bytes():
    phys = 128 * 1024 * 1024
    try:
        info = pltpu.get_tpu_info()
        phys = int(getattr(info, "vmem_capacity_bytes", phys) or phys)
    except Exception:
        pass
    # ~75% of physical, capped: ~96 MiB on v5e/v6e (128 MiB), ~48 MiB on v7x (64 MiB).
    return int(min(100 * 1024 * 1024, (phys * 3) // 4))


def _layer_norm(x, gamma, beta, eps=1e-5):
    mu = jnp.mean(x, axis=-1, keepdims=True)
    xc = x - mu
    var = jnp.mean(xc * xc, axis=-1, keepdims=True)
    return xc * jax.lax.rsqrt(var + eps) * gamma + beta


# ---------------------------------------------------------------------------
# Prologue: point-encoder MLP + positional embedding (tiny one-shot kernel).
# ---------------------------------------------------------------------------
def _encoder_kernel(pc_ref, pos_ref, w1_ref, b1_ref, w2_ref, b2_ref, x0_ref):
    h = jnp.maximum(
        jnp.dot(pc_ref[...], w1_ref[...], preferred_element_type=jnp.float32)
        + b1_ref[...], 0.0)
    x0_ref[...] = (jnp.dot(h, w2_ref[...], preferred_element_type=jnp.float32)
                   + b2_ref[...] + pos_ref[...])


# ---------------------------------------------------------------------------
# Main fused kernel: L transformer layers (flash attention) + pooled heads.
# Grid axis = layer index; activations carried in VMEM scratch.
# ---------------------------------------------------------------------------
def _bwformer_layers_kernel(x0_hbm_ref,
                            wqkv_ref, bqkv_ref, wo_ref, bo_ref,
                            ln1_g_ref, ln1_b_ref, w1_ref, b1_ref,
                            w2_ref, b2_ref, ln2_g_ref, ln2_b_ref,
                            head_w_ref, head_b_ref,
                            out_ref,
                            x_scr, qkv_scr, attn_scr,
                            *, nhead, d_model, n_valid, tile):
    l = pl.program_id(0)
    dh = d_model // nhead
    scale = 1.0 / math.sqrt(dh)
    n_pad = x_scr.shape[0]
    t = tile
    n_q_tiles = n_pad // t
    n_kv_tiles = n_pad // t

    # --- load the encoder output into the resident activation scratch once ---
    @pl.when(l == 0)
    def _():
        pltpu.sync_copy(x0_hbm_ref, x_scr)

    x = x_scr[...]                                  # (N_pad, d) f32 carried activations
    xb = x.astype(jnp.bfloat16)

    # --- fused QKV projection; fold 1/sqrt(dh) into Q (once, on (N, d)) ---
    qkv = jnp.dot(xb, wqkv_ref[0], preferred_element_type=jnp.float32) + bqkv_ref[l]
    qkv_scr[:, 0:d_model] = (qkv[:, 0:d_model] * scale).astype(jnp.bfloat16)
    qkv_scr[:, d_model:] = qkv[:, d_model:].astype(jnp.bfloat16)

    # --- flash-style multi-head self-attention (online softmax over KV tiles) ---
    for hd in range(nhead):                         # static head loop (d_head lane slices)
        q_lo = hd * dh
        k_lo = d_model + hd * dh
        v_lo = 2 * d_model + hd * dh

        @pl.loop(0, n_q_tiles)
        def _q_tile(qi):
            q_start = pl.multiple_of(qi * t, t)
            q_t = qkv_scr[pl.ds(q_start, t), q_lo:q_lo + dh]        # (t, dh) bf16, pre-scaled

            def kv_body(ki, carry):
                m, lsum, acc = carry
                k_start = pl.multiple_of(ki * t, t)
                k_t = qkv_scr[pl.ds(k_start, t), k_lo:k_lo + dh]    # (t, dh) bf16
                v_t = qkv_scr[pl.ds(k_start, t), v_lo:v_lo + dh]    # (t, dh) bf16
                s = jax.lax.dot_general(q_t, k_t, (((1,), (1,)), ((), ())),
                                        preferred_element_type=jnp.float32)  # (t, t)
                if n_valid < n_pad:                 # static: mask padded keys
                    kidx = k_start + jax.lax.broadcasted_iota(jnp.int32, (t, t), 1)
                    s = jnp.where(kidx < n_valid, s, -1e30)
                m_new = jnp.maximum(m, jnp.max(s, axis=-1, keepdims=True))
                alpha = jnp.exp(m - m_new)
                p = jnp.exp(s - m_new)              # f32; never a full (N, N) matrix
                lsum = alpha * lsum + jnp.sum(p, axis=-1, keepdims=True)
                acc = alpha * acc + jnp.dot(p.astype(jnp.bfloat16), v_t,
                                            preferred_element_type=jnp.float32)
                return m_new, lsum, acc

            m0 = jnp.full((t, 1), -1e30, jnp.float32)
            l0 = jnp.zeros((t, 1), jnp.float32)
            a0 = jnp.zeros((t, dh), jnp.float32)
            _, lsum, acc = jax.lax.fori_loop(0, n_kv_tiles, kv_body, (m0, l0, a0),
                                             unroll=n_kv_tiles <= 4)
            # exact normalization on the small (t, dh) tile; write into the
            # head's lane slice of the bf16 attention-output scratch.
            attn_scr[pl.ds(q_start, t), q_lo:q_lo + dh] = (acc / lsum).astype(jnp.bfloat16)

    # --- single output projection (Wo un-folded from the head loop) ---
    attn = jnp.dot(attn_scr[...], wo_ref[0],
                   preferred_element_type=jnp.float32) + bo_ref[l]
    y = _layer_norm(x + attn, ln1_g_ref[l], ln1_b_ref[l])

    # --- feed-forward (Linear -> ReLU -> Linear), post-norm ---
    h1 = jnp.maximum(
        jnp.dot(y.astype(jnp.bfloat16), w1_ref[0],
                preferred_element_type=jnp.float32) + b1_ref[l], 0.0)
    z = jnp.dot(h1.astype(jnp.bfloat16), w2_ref[0],
                preferred_element_type=jnp.float32) + b2_ref[l]
    x_new = _layer_norm(y + z, ln2_g_ref[l], ln2_b_ref[l])
    x_scr[...] = x_new

    # --- masked mean pool + fused (edge|conf|quad) heads on the last step ---
    @pl.when(l == pl.num_programs(0) - 1)
    def _():
        if n_valid == n_pad:
            gf = jnp.mean(x_new, axis=0, keepdims=True)
        else:
            ridx = jax.lax.broadcasted_iota(jnp.int32, x_new.shape, 0)
            gf = jnp.sum(jnp.where(ridx < n_valid, x_new, 0.0),
                         axis=0, keepdims=True) * (1.0 / n_valid)
        out_ref[...] = jnp.dot(gf.astype(jnp.bfloat16), head_w_ref[...],
                               preferred_element_type=jnp.float32) + head_b_ref[...]


# ---------------------------------------------------------------------------
# Wrapper: padding, prologue call, main pallas_call, final slicing (.view).
# ---------------------------------------------------------------------------
def bwformer_forward(params, pc, *, nhead):
    n = pc.shape[0]
    d = params["wqkv"].shape[1]
    num_layers = params["wqkv"].shape[0]
    e_pred = params["head_w"].shape[1] // 11        # 6E + E + 4E lanes

    tile, n_pad = _choose_tile(n)
    if n_pad != n:
        pc = jnp.pad(pc, ((0, n_pad - n), (0, 0)))
    pos = params["pos_embed"][0, :n_pad, :]         # (N_pad, d)

    # Prologue: encoder + pos (keeps pc / pos_embed / enc weights out of the layer loop).
    x0 = pl.pallas_call(
        _encoder_kernel,
        out_shape=jax.ShapeDtypeStruct((n_pad, d), jnp.float32),
    )(pc, pos, params["enc_w1"], params["enc_b1"],
      params["enc_w2"], params["enc_b2"])

    def const_spec(shape):
        nd = len(shape)
        return pl.BlockSpec(shape, lambda l, _nd=nd: (0,) * _nd)

    def per_layer(a):
        # Pipelined per-layer weight blocks (default double-buffering; raise to
        # pl.Buffered(3) only if profiling shows exposed DMA at layer boundaries).
        return pl.BlockSpec((1,) + a.shape[1:], lambda l: (l, 0, 0))

    out = pl.pallas_call(
        functools.partial(_bwformer_layers_kernel, nhead=nhead, d_model=d,
                          n_valid=n, tile=tile),
        out_shape=jax.ShapeDtypeStruct((1, 11 * e_pred), jnp.float32),
        grid=(num_layers,),
        in_specs=[
            pl.BlockSpec(memory_space=pl.ANY),       # x0 stays in HBM; DMA'd once at l==0
            per_layer(params["wqkv"]),               # big per-layer weights: pipelined
            const_spec(params["bqkv"].shape),        # small per-layer params: resident,
            per_layer(params["wo"]),                 #   indexed with [l] in-kernel
            const_spec(params["bo"].shape),
            const_spec(params["ln1_g"].shape),
            const_spec(params["ln1_b"].shape),
            per_layer(params["w1"]),
            const_spec(params["b1"].shape),
            per_layer(params["w2"]),
            const_spec(params["b2"].shape),
            const_spec(params["ln2_g"].shape),
            const_spec(params["ln2_b"].shape),
            const_spec(params["head_w"].shape),
            const_spec(params["head_b"].shape),
        ],
        out_specs=pl.BlockSpec((1, 11 * e_pred), lambda l: (0, 0)),
        scratch_shapes=[pltpu.VMEM((n_pad, d), jnp.float32),       # resident activations
                        pltpu.VMEM((n_pad, 3 * d), jnp.bfloat16),  # scaled Q | K | V
                        pltpu.VMEM((n_pad, d), jnp.bfloat16)],     # per-head attn output
        compiler_params=pltpu.CompilerParams(
            dimension_semantics=("arbitrary",),      # layer carry is serial
            vmem_limit_bytes=_vmem_limit_bytes()),
    )(x0, params["wqkv"], params["bqkv"], params["wo"], params["bo"],
      params["ln1_g"], params["ln1_b"], params["w1"], params["b1"],
      params["w2"], params["b2"], params["ln2_g"], params["ln2_b"],
      params["head_w"], params["head_b"])

    e = 6 * e_pred
    edges = out[0, :e].reshape(e_pred, 2, 3)         # .view(E_pred, 2, 3)
    conf = out[:, e:e + e_pred]                      # stays (1, E_pred)
    quad = out[0, e + e_pred:].reshape(e_pred, 4)    # .view(E_pred, 4)
    return edges, conf, quad


def init_params(key, *, d_model, nhead, num_layers, dff, E_pred, pos_len=1024):
    keys = jax.random.split(key, 10)

    def w(k, shape, scale, dtype=jnp.float32):
        return (jax.random.normal(k, shape, jnp.float32) * scale).astype(dtype)

    inv = 1.0 / math.sqrt(d_model)
    bf = jnp.bfloat16
    # fused head weights: [edge | conf | quad] along the lane (output) axis
    ke, kc, kq = jax.random.split(keys[7], 3)
    head_w = jnp.concatenate(
        [w(ke, (d_model, E_pred * 2 * 3), inv),
         w(kc, (d_model, E_pred), inv),
         w(kq, (d_model, E_pred * 4), inv)], axis=1).astype(bf)
    head_b = jnp.zeros((1, 11 * E_pred), jnp.float32)

    return {
        "enc_w1": w(keys[0], (3, d_model), 1.0 / math.sqrt(3)),
        "enc_b1": jnp.zeros((1, d_model), jnp.float32),
        "enc_w2": w(keys[1], (d_model, d_model), inv),
        "enc_b2": jnp.zeros((1, d_model), jnp.float32),
        "pos_embed": w(keys[2], (1, pos_len, d_model), 0.1),
        # stacked per-layer transformer weights (leading dim = layer), bf16 matrices
        "wqkv": w(keys[3], (num_layers, d_model, 3 * d_model), inv, bf),
        "bqkv": jnp.zeros((num_layers, 1, 3 * d_model), jnp.float32),
        "wo": w(keys[4], (num_layers, d_model, d_model), inv, bf),
        "bo": jnp.zeros((num_layers, 1, d_model), jnp.float32),
        "ln1_g": jnp.ones((num_layers, 1, d_model), jnp.float32),
        "ln1_b": jnp.zeros((num_layers, 1, d_model), jnp.float32),
        "w1": w(keys[5], (num_layers, d_model, dff), inv, bf),
        "b1": jnp.zeros((num_layers, 1, dff), jnp.float32),
        "w2": w(keys[6], (num_layers, dff, d_model), 1.0 / math.sqrt(dff), bf),
        "b2": jnp.zeros((num_layers, 1, d_model), jnp.float32),
        "ln2_g": jnp.ones((num_layers, 1, d_model), jnp.float32),
        "ln2_b": jnp.zeros((num_layers, 1, d_model), jnp.float32),
        "head_w": head_w,
        "head_b": head_b,
    }


if __name__ == "__main__":
    # Small config consistent with the module (d_model divisible by nhead).
    # N=20 is deliberately not a multiple of 8 so the padding/masking path is exercised.
    N, d_model, nhead, num_layers, dff, E_pred = 20, 128, 4, 2, 256, 8

    key = jax.random.PRNGKey(0)
    kparam, kpc = jax.random.split(key)
    params = init_params(kparam, d_model=d_model, nhead=nhead,
                         num_layers=num_layers, dff=dff, E_pred=E_pred,
                         pos_len=1024)
    pc = jax.random.normal(kpc, (N, 3), jnp.float32)

    fwd = jax.jit(functools.partial(bwformer_forward, nhead=nhead))
    edges, conf, quad = fwd(params, pc)
    jax.block_until_ready((edges, conf, quad))

    assert edges.shape == (E_pred, 2, 3) and edges.dtype == jnp.float32
    assert conf.shape == (1, E_pred) and conf.dtype == jnp.float32
    assert quad.shape == (E_pred, 4) and quad.dtype == jnp.float32
    assert bool(jnp.all(jnp.isfinite(edges)))
    assert bool(jnp.all(jnp.isfinite(conf)))
    assert bool(jnp.all(jnp.isfinite(quad)))
    print("KERNEL_OK")
</pallas_src>

<mosaic_0001>
module attributes {stable_mosaic.version = 11 : i64} {
  func.func @_encoder_kernel(%arg0: memref<24x3xf32, #tpu.memory_space<vmem>>, %arg1: memref<24x128xf32, #tpu.memory_space<vmem>>, %arg2: memref<3x128xf32, #tpu.memory_space<vmem>>, %arg3: memref<1x128xf32, #tpu.memory_space<vmem>>, %arg4: memref<128x128xf32, #tpu.memory_space<vmem>>, %arg5: memref<1x128xf32, #tpu.memory_space<vmem>>, %arg6: memref<24x128xf32, #tpu.memory_space<vmem>>) attributes {dimension_semantics = [], scalar_prefetch = 0 : i64, scratch_operands = 0 : i64, tpu.core_type = #tpu.core_type<tc>} {
    %c0 = arith.constant 0 : index
    %c0_0 = arith.constant 0 : index
    %0 = vector.load %arg0[%c0, %c0_0] : memref<24x3xf32, #tpu.memory_space<vmem>>, vector<24x3xf32>
    %c0_1 = arith.constant 0 : index
    %c0_2 = arith.constant 0 : index
    %1 = vector.load %arg2[%c0_1, %c0_2] : memref<3x128xf32, #tpu.memory_space<vmem>>, vector<3x128xf32>
    %cst = arith.constant dense<0.000000e+00> : vector<24x128xf32>
    %2 = tpu.matmul %0, %1, %cst {dimension_numbers = #tpu.dot_dimension_numbers<[1], [0], [0], [1], [0, 0, 1, 1], [], []>} : vector<24x3xf32>, vector<3x128xf32>, vector<24x128xf32> -> vector<24x128xf32>
    %c0_3 = arith.constant 0 : index
    %c0_4 = arith.constant 0 : index
    %3 = vector.load %arg3[%c0_3, %c0_4] : memref<1x128xf32, #tpu.memory_space<vmem>>, vector<1x128xf32>
    %4 = vector.broadcast %3 : vector<1x128xf32> to vector<24x128xf32>
    %5 = arith.addf %2, %4 : vector<24x128xf32>
    %cst_5 = arith.constant 0.000000e+00 : f32
    %6 = vector.broadcast %cst_5 : f32 to vector<24x128xf32>
    %7 = arith.maximumf %5, %6 : vector<24x128xf32>
    %c0_6 = arith.constant 0 : index
    %c0_7 = arith.constant 0 : index
    %8 = vector.load %arg4[%c0_6, %c0_7] : memref<128x128xf32, #tpu.memory_space<vmem>>, vector<128x128xf32>
    %cst_8 = arith.constant dense<0.000000e+00> : vector<24x128xf32>
    %9 = tpu.matmul %7, %8, %cst_8 {dimension_numbers = #tpu.dot_dimension_numbers<[1], [0], [0], [1], [0, 0, 1, 1], [], []>} : vector<24x128xf32>, vector<128x128xf32>, vector<24x128xf32> -> vector<24x128xf32>
    %c0_9 = arith.constant 0 : index
    %c0_10 = arith.constant 0 : index
    %10 = vector.load %arg5[%c0_9, %c0_10] : memref<1x128xf32, #tpu.memory_space<vmem>>, vector<1x128xf32>
    %11 = vector.broadcast %10 : vector<1x128xf32> to vector<24x128xf32>
    %12 = arith.addf %9, %11 : vector<24x128xf32>
    %c0_11 = arith.constant 0 : index
    %c0_12 = arith.constant 0 : index
    %13 = vector.load %arg1[%c0_11, %c0_12] : memref<24x128xf32, #tpu.memory_space<vmem>>, vector<24x128xf32>
    %14 = arith.addf %12, %13 : vector<24x128xf32>
    %c0_13 = arith.constant 0 : index
    %c0_14 = arith.constant 0 : index
    %15 = vector.load %arg6[%c0_13, %c0_14] : memref<24x128xf32, #tpu.memory_space<vmem>>, vector<24x128xf32>
    tpu.vector_store %arg6[%c0_13, %c0_14], %14 {strides = array<i32>} : memref<24x128xf32, #tpu.memory_space<vmem>>, vector<24x128xf32>,
    return
  }
}

module attributes {stable_mosaic.version = 11 : i64} {
  func.func @_bwformer_layers_kernel(%arg0: i32, %arg1: memref<24x128xf32, #tpu.memory_space<any>>, %arg2: memref<1x128x384xbf16, #tpu.memory_space<vmem>>, %arg3: memref<2x1x384xf32, #tpu.memory_space<vmem>>, %arg4: memref<1x128x128xbf16, #tpu.memory_space<vmem>>, %arg5: memref<2x1x128xf32, #tpu.memory_space<vmem>>, %arg6: memref<2x1x128xf32, #tpu.memory_space<vmem>>, %arg7: memref<2x1x128xf32, #tpu.memory_space<vmem>>, %arg8: memref<1x128x256xbf16, #tpu.memory_space<vmem>>, %arg9: memref<2x1x256xf32, #tpu.memory_space<vmem>>, %arg10: memref<1x256x128xbf16, #tpu.memory_space<vmem>>, %arg11: memref<2x1x128xf32, #tpu.memory_space<vmem>>, %arg12: memref<2x1x128xf32, #tpu.memory_space<vmem>>, %arg13: memref<2x1x128xf32, #tpu.memory_space<vmem>>, %arg14: memref<128x88xbf16, #tpu.memory_space<vmem>>, %arg15: memref<1x88xf32, #tpu.memory_space<vmem>>, %arg16: memref<1x88xf32, #tpu.memory_space<vmem>>, %arg17: memref<24x128xf32, #tpu.memory_space<vmem>>, %arg18: memref<24x384xbf16, #tpu.memory_space<vmem>>, %arg19: memref<24x128xbf16, #tpu.memory_space<vmem>>) attributes {dimension_semantics = [#tpu.dimension_semantics<arbitrary>], iteration_bounds = array<i64: 2>, scalar_prefetch = 0 : i64, scratch_operands = 3 : i64, tpu.core_type = #tpu.core_type<tc>, window_params = [{}, {transform_indices = @transform_1, window_bounds = array<i64: 1, 128, 384>}, {pipeline_mode = #tpu.pipeline_mode<synchronous>, transform_indices = @transform_2, window_bounds = array<i64: 2, 1, 384>}, {transform_indices = @transform_3, window_bounds = array<i64: 1, 128, 128>}, {pipeline_mode = #tpu.pipeline_mode<synchronous>, transform_indices = @transform_4, window_bounds = array<i64: 2, 1, 128>}, {pipeline_mode = #tpu.pipeline_mode<synchronous>, transform_indices = @transform_5, window_bounds = array<i64: 2, 1, 128>}, {pipeline_mode = #tpu.pipeline_mode<synchronous>, transform_indices = @transform_6, window_bounds = array<i64: 2, 1, 128>}, {transform_indices = @transform_7, window_bounds = array<i64: 1, 128, 256>}, {pipeline_mode = #tpu.pipeline_mode<synchronous>, transform_indices = @transform_8, window_bounds = array<i64: 2, 1, 256>}, {transform_indices = @transform_9, window_bounds = array<i64: 1, 256, 128>}, {pipeline_mode = #tpu.pipeline_mode<synchronous>, transform_indices = @transform_10, window_bounds = array<i64: 2, 1, 128>}, {pipeline_mode = #tpu.pipeline_mode<synchronous>, transform_indices = @transform_11, window_bounds = array<i64: 2, 1, 128>}, {pipeline_mode = #tpu.pipeline_mode<synchronous>, transform_indices = @transform_12, window_bounds = array<i64: 2, 1, 128>}, {pipeline_mode = #tpu.pipeline_mode<synchronous>, transform_indices = @transform_13, window_bounds = array<i64: 128, 88>}, {pipeline_mode = #tpu.pipeline_mode<synchronous>, transform_indices = @transform_14, window_bounds = array<i64: 1, 88>}, {pipeline_mode = #tpu.pipeline_mode<synchronous>, transform_indices = @transform_15, window_bounds = array<i64: 1, 88>}]} {
    %c0_i32 = arith.constant 0 : i32
    %0 = arith.cmpi eq, %arg0, %c0_i32 : i32
    %1 = arith.extui %0 : i1 to i32
    %c0_i32_0 = arith.constant 0 : i32
    %2 = arith.cmpi ne, %1, %c0_i32_0 : i32
    scf.if %2 {
      "tpu.region"() ({
        %288 = tpu.sem_alloc : memref<!tpu.dma_semaphore, #tpu.memory_space<semaphore_mem>>
        tpu.enqueue_dma source(%arg1 : memref<24x128xf32, #tpu.memory_space<any>>) target(%arg17 : memref<24x128xf32, #tpu.memory_space<vmem>>) target_semaphore(%288 : memref<!tpu.dma_semaphore, #tpu.memory_space<semaphore_mem>>)
        tpu.wait_dma2 semaphore(%288 : memref<!tpu.dma_semaphore, #tpu.memory_space<semaphore_mem>>) src(%arg1 : memref<24x128xf32, #tpu.memory_space<any>>) dst(%arg17 : memref<24x128xf32, #tpu.memory_space<vmem>>)
        tpu.yield
      }) : () -> ()
    } else {
    }
    %c0 = arith.constant 0 : index
    %c0_1 = arith.constant 0 : index
    %3 = vector.load %arg17[%c0, %c0_1] : memref<24x128xf32, #tpu.memory_space<vmem>>, vector<24x128xf32>
    %4 = arith.truncf %3 : vector<24x128xf32> to vector<24x128xbf16>
    %c0_2 = arith.constant 0 : index
    %c0_3 = arith.constant 0 : index
    %c0_4 = arith.constant 0 : index
    %5 = vector.load %arg2[%c0_2, %c0_3, %c0_4] : memref<1x128x384xbf16, #tpu.memory_space<vmem>>, vector<1x128x384xbf16>
    %6 = vector.shape_cast %5 : vector<1x128x384xbf16> to vector<128x384xbf16>
    %cst = arith.constant dense<0.000000e+00> : vector<24x384xf32>
    %7 = tpu.matmul %4, %6, %cst {dimension_numbers = #tpu.dot_dimension_numbers<[1], [0], [0], [1], [0, 0, 1, 1], [], []>} : vector<24x128xbf16>, vector<128x384xbf16>, vector<24x384xf32> -> vector<24x384xf32>
    %8 = arith.index_cast %arg0 : i32 to index
    %c0_5 = arith.constant 0 : index
    %c0_6 = arith.constant 0 : index
    %9 = vector.load %arg3[%8, %c0_5, %c0_6] : memref<2x1x384xf32, #tpu.memory_space<vmem>>, vector<1x1x384xf32>
    %10 = vector.shape_cast %9 : vector<1x1x384xf32> to vector<1x384xf32>
    %11 = vector.broadcast %10 : vector<1x384xf32> to vector<24x384xf32>
    %12 = arith.addf %7, %11 : vector<24x384xf32>
    %13 = vector.extract_strided_slice %12 {offsets = [0, 0], sizes = [24, 128], strides = [1, 1]} : vector<24x384xf32> to vector<24x128xf32>
    %cst_7 = arith.constant 0.176776692 : f32
    %14 = vector.broadcast %cst_7 : f32 to vector<24x128xf32>
    %15 = arith.mulf %13, %14 : vector<24x128xf32>
    %16 = arith.truncf %15 : vector<24x128xf32> to vector<24x128xbf16>
    %c0_8 = arith.constant 0 : index
    %c0_9 = arith.constant 0 : index
    %17 = vector.load %arg18[%c0_8, %c0_9] : memref<24x384xbf16, #tpu.memory_space<vmem>>, vector<24x128xbf16>
    tpu.vector_store %arg18[%c0_8, %c0_9], %16 {strides = array<i32>} : memref<24x384xbf16, #tpu.memory_space<vmem>>, vector<24x128xbf16>,
    %18 = vector.extract_strided_slice %12 {offsets = [0, 128], sizes = [24, 256], strides = [1, 1]} : vector<24x384xf32> to vector<24x256xf32>
    %19 = arith.truncf %18 : vector<24x256xf32> to vector<24x256xbf16>
    %c0_10 = arith.constant 0 : index
    %c128 = arith.constant 128 : index
    %20 = vector.load %arg18[%c0_10, %c128] : memref<24x384xbf16, #tpu.memory_space<vmem>>, vector<24x256xbf16>
    tpu.vector_store %arg18[%c0_10, %c128], %19 {strides = array<i32>} : memref<24x384xbf16, #tpu.memory_space<vmem>>, vector<24x256xbf16>,
    %c0_i32_11 = arith.constant 0 : i32
    %c1_i32 = arith.constant 1 : i32
    %21 = arith.muli %c0_i32_11, %c1_i32 : i32
    %c0_i32_12 = arith.constant 0 : i32
    %22 = arith.addi %c0_i32_12, %21 : i32
    %c24_i32 = arith.constant 24 : i32
    %23 = arith.muli %22, %c24_i32 : i32
    %24 = tpu.assume_multiple %23, 24 : i32
    %25 = arith.index_cast %24 : i32 to index
    %c0_13 = arith.constant 0 : index
    %26 = vector.load %arg18[%25, %c0_13] : memref<24x384xbf16, #tpu.memory_space<vmem>>, vector<24x32xbf16>
    %cst_14 = arith.constant -1.000000e+30 : f32
    %27 = vector.broadcast %cst_14 : f32 to vector<24x1xf32>
    %cst_15 = arith.constant 0.000000e+00 : f32
    %28 = vector.broadcast %cst_15 : f32 to vector<24x1xf32>
    %cst_16 = arith.constant 0.000000e+00 : f32
    %29 = vector.broadcast %cst_16 : f32 to vector<24x32xf32>
    %c0_i32_17 = arith.constant 0 : i32
    %c24_i32_18 = arith.constant 24 : i32
    %30 = arith.muli %c0_i32_17, %c24_i32_18 : i32
    %31 = tpu.assume_multiple %30, 24 : i32
    %32 = arith.index_cast %31 : i32 to index
    %c128_19 = arith.constant 128 : index
    %33 = vector.load %arg18[%32, %c128_19] : memref<24x384xbf16, #tpu.memory_space<vmem>>, vector<24x32xbf16>
    %34 = arith.index_cast %31 : i32 to index
    %c256 = arith.constant 256 : index
    %35 = vector.load %arg18[%34, %c256] : memref<24x384xbf16, #tpu.memory_space<vmem>>, vector<24x32xbf16>
    %cst_20 = arith.constant dense<0.000000e+00> : vector<24x24xf32>
    %36 = tpu.matmul %26, %33, %cst_20 {dimension_numbers = #tpu.dot_dimension_numbers<[1], [1], [0], [0], [0, 0, 1, 0], [], []>} : vector<24x32xbf16>, vector<24x32xbf16>, vector<24x24xf32> -> vector<24x24xf32>
    %37 = tpu.iota {dimensions = array<i32: 1>} : vector<24x24xi32>
    %38 = vector.broadcast %31 : i32 to vector<24x24xi32>
    %39 = arith.addi %38, %37 : vector<24x24xi32>
    %c20_i32 = arith.constant 20 : i32
    %40 = vector.broadcast %c20_i32 : i32 to vector<24x24xi32>
    %41 = arith.cmpi slt, %39, %40 : vector<24x24xi32>
    %cst_21 = arith.constant -1.000000e+30 : f32
    %42 = vector.broadcast %cst_21 : f32 to vector<24x24xf32>
    %43 = arith.select %41, %36, %42 : vector<24x24xi1>, vector<24x24xf32>
    %cst_22 = arith.constant dense<0xFF800000> : vector<24xf32>
    %44 = vector.multi_reduction <maximumf>, %43, %cst_22 [1] : vector<24x24xf32> to vector<24xf32>
    %45 = vector.shape_cast %44 : vector<24xf32> to vector<24x1xf32>
    %46 = arith.maximumf %27, %45 : vector<24x1xf32>
    %47 = arith.subf %27, %46 : vector<24x1xf32>
    %48 = math.exp %47 : vector<24x1xf32>
    %49 = vector.broadcast %46 : vector<24x1xf32> to vector<24x24xf32>
    %50 = arith.subf %43, %49 : vector<24x24xf32>
    %51 = math.exp %50 : vector<24x24xf32>
    %52 = arith.mulf %48, %28 : vector<24x1xf32>
    %cst_23 = arith.constant dense<0.000000e+00> : vector<24xf32>
    %53 = vector.multi_reduction <add>, %51, %cst_23 [1] : vector<24x24xf32> to vector<24xf32>
    %54 = vector.shape_cast %53 : vector<24xf32> to vector<24x1xf32>
    %55 = arith.addf %52, %54 : vector<24x1xf32>
    %56 = vector.broadcast %48 : vector<24x1xf32> to vector<24x32xf32>
    %57 = arith.mulf %56, %29 : vector<24x32xf32>
    %58 = arith.truncf %51 : vector<24x24xf32> to vector<24x24xbf16>
    %cst_24 = arith.constant dense<0.000000e+00> : vector<24x32xf32>
    %59 = tpu.matmul %58, %35, %cst_24 {dimension_numbers = #tpu.dot_dimension_numbers<[1], [0], [0], [1], [0, 0, 1, 1], [], []>} : vector<24x24xbf16>, vector<24x32xbf16>, vector<24x32xf32> -> vector<24x32xf32>
    %60 = arith.addf %57, %59 : vector<24x32xf32>
    %c1_i32_25 = arith.constant 1 : i32
    %61 = vector.broadcast %55 : vector<24x1xf32> to vector<24x32xf32>
    %62 = arith.divf %60, %61 : vector<24x32xf32>
    %63 = arith.truncf %62 : vector<24x32xf32> to vector<24x32xbf16>
    %64 = arith.index_cast %24 : i32 to index
    %c0_26 = arith.constant 0 : index
    %65 = vector.load %arg19[%64, %c0_26] : memref<24x128xbf16, #tpu.memory_space<vmem>>, vector<24x32xbf16>
    tpu.vector_store %arg19[%64, %c0_26], %63 {strides = array<i32>} : memref<24x128xbf16, #tpu.memory_space<vmem>>, vector<24x32xbf16>,
    %c1_i32_27 = arith.constant 1 : i32
    %c0_i32_28 = arith.constant 0 : i32
    %c1_i32_29 = arith.constant 1 : i32
    %66 = arith.muli %c0_i32_28, %c1_i32_29 : i32
    %c0_i32_30 = arith.constant 0 : i32
    %67 = arith.addi %c0_i32_30, %66 : i32
    %c24_i32_31 = arith.constant 24 : i32
    %68 = arith.muli %67, %c24_i32_31 : i32
    %69 = tpu.assume_multiple %68, 24 : i32
    %70 = arith.index_cast %69 : i32 to index
    %c32 = arith.constant 32 : index
    %71 = vector.load %arg18[%70, %c32] : memref<24x384xbf16, #tpu.memory_space<vmem>>, vector<24x32xbf16>
    %cst_32 = arith.constant -1.000000e+30 : f32
    %72 = vector.broadcast %cst_32 : f32 to vector<24x1xf32>
    %cst_33 = arith.constant 0.000000e+00 : f32
    %73 = vector.broadcast %cst_33 : f32 to vector<24x1xf32>
    %cst_34 = arith.constant 0.000000e+00 : f32
    %74 = vector.broadcast %cst_34 : f32 to vector<24x32xf32>
    %c0_i32_35 = arith.constant 0 : i32
    %c24_i32_36 = arith.constant 24 : i32
    %75 = arith.muli %c0_i32_35, %c24_i32_36 : i32
    %76 = tpu.assume_multiple %75, 24 : i32
    %77 = arith.index_cast %76 : i32 to index
    %c160 = arith.constant 160 : index
    %78 = vector.load %arg18[%77, %c160] : memref<24x384xbf16, #tpu.memory_space<vmem>>, vector<24x32xbf16>
    %79 = arith.index_cast %76 : i32 to index
    %c288 = arith.constant 288 : index
    %80 = vector.load %arg18[%79, %c288] : memref<24x384xbf16, #tpu.memory_space<vmem>>, vector<24x32xbf16>
    %cst_37 = arith.constant dense<0.000000e+00> : vector<24x24xf32>
    %81 = tpu.matmul %71, %78, %cst_37 {dimension_numbers = #tpu.dot_dimension_numbers<[1], [1], [0], [0], [0, 0, 1, 0], [], []>} : vector<24x32xbf16>, vector<24x32xbf16>, vector<24x24xf32> -> vector<24x24xf32>
    %82 = tpu.iota {dimensions = array<i32: 1>} : vector<24x24xi32>
    %83 = vector.broadcast %76 : i32 to vector<24x24xi32>
    %84 = arith.addi %83, %82 : vector<24x24xi32>
    %c20_i32_38 = arith.constant 20 : i32
    %85 = vector.broadcast %c20_i32_38 : i32 to vector<24x24xi32>
    %86 = arith.cmpi slt, %84, %85 : vector<24x24xi32>
    %cst_39 = arith.constant -1.000000e+30 : f32
    %87 = vector.broadcast %cst_39 : f32 to vector<24x24xf32>
    %88 = arith.select %86, %81, %87 : vector<24x24xi1>, vector<24x24xf32>
    %cst_40 = arith.constant dense<0xFF800000> : vector<24xf32>
    %89 = vector.multi_reduction <maximumf>, %88, %cst_40 [1] : vector<24x24xf32> to vector<24xf32>
    %90 = vector.shape_cast %89 : vector<24xf32> to vector<24x1xf32>
    %91 = arith.maximumf %72, %90 : vector<24x1xf32>
    %92 = arith.subf %72, %91 : vector<24x1xf32>
    %93 = math.exp %92 : vector<24x1xf32>
    %94 = vector.broadcast %91 : vector<24x1xf32> to vector<24x24xf32>
    %95 = arith.subf %88, %94 : vector<24x24xf32>
    %96 = math.exp %95 : vector<24x24xf32>
    %97 = arith.mulf %93, %73 : vector<24x1xf32>
    %cst_41 = arith.constant dense<0.000000e+00> : vector<24xf32>
    %98 = vector.multi_reduction <add>, %96, %cst_41 [1] : vector<24x24xf32> to vector<24xf32>
    %99 = vector.shape_cast %98 : vector<24xf32> to vector<24x1xf32>
    %100 = arith.addf %97, %99 : vector<24x1xf32>
    %101 = vector.broadcast %93 : vector<24x1xf32> to vector<24x32xf32>
    %102 = arith.mulf %101, %74 : vector<24x32xf32>
    %103 = arith.truncf %96 : vector<24x24xf32> to vector<24x24xbf16>
    %cst_42 = arith.constant dense<0.000000e+00> : vector<24x32xf32>
    %104 = tpu.matmul %103, %80, %cst_42 {dimension_numbers = #tpu.dot_dimension_numbers<[1], [0], [0], [1], [0, 0, 1, 1], [], []>} : vector<24x24xbf16>, vector<24x32xbf16>, vector<24x32xf32> -> vector<24x32xf32>
    %105 = arith.addf %102, %104 : vector<24x32xf32>
    %c1_i32_43 = arith.constant 1 : i32
    %106 = vector.broadcast %100 : vector<24x1xf32> to vector<24x32xf32>
    %107 = arith.divf %105, %106 : vector<24x32xf32>
    %108 = arith.truncf %107 : vector<24x32xf32> to vector<24x32xbf16>
    %109 = arith.index_cast %69 : i32 to index
    %c32_44 = arith.constant 32 : index
    %110 = vector.load %arg19[%109, %c32_44] : memref<24x128xbf16, #tpu.memory_space<vmem>>, vector<24x32xbf16>
    tpu.vector_store %arg19[%109, %c32_44], %108 {strides = array<i32>} : memref<24x128xbf16, #tpu.memory_space<vmem>>, vector<24x32xbf16>,
    %c1_i32_45 = arith.constant 1 : i32
    %c0_i32_46 = arith.constant 0 : i32
    %c1_i32_47 = arith.constant 1 : i32
    %111 = arith.muli %c0_i32_46, %c1_i32_47 : i32
    %c0_i32_48 = arith.constant 0 : i32
    %112 = arith.addi %c0_i32_48, %111 : i32
    %c24_i32_49 = arith.constant 24 : i32
    %113 = arith.muli %112, %c24_i32_49 : i32
    %114 = tpu.assume_multiple %113, 24 : i32
    %115 = arith.index_cast %114 : i32 to index
    %c64 = arith.constant 64 : index
    %116 = vector.load %arg18[%115, %c64] : memref<24x384xbf16, #tpu.memory_space<vmem>>, vector<24x32xbf16>
    %cst_50 = arith.constant -1.000000e+30 : f32
    %117 = vector.broadcast %cst_50 : f32 to vector<24x1xf32>
    %cst_51 = arith.constant 0.000000e+00 : f32
    %118 = vector.broadcast %cst_51 : f32 to vector<24x1xf32>
    %cst_52 = arith.constant 0.000000e+00 : f32
    %119 = vector.broadcast %cst_52 : f32 to vector<24x32xf32>
    %c0_i32_53 = arith.constant 0 : i32
    %c24_i32_54 = arith.constant 24 : i32
    %120 = arith.muli %c0_i32_53, %c24_i32_54 : i32
    %121 = tpu.assume_multiple %120, 24 : i32
    %122 = arith.index_cast %121 : i32 to index
    %c192 = arith.constant 192 : index
    %123 = vector.load %arg18[%122, %c192] : memref<24x384xbf16, #tpu.memory_space<vmem>>, vector<24x32xbf16>
    %124 = arith.index_cast %121 : i32 to index
    %c320 = arith.constant 320 : index
    %125 = vector.load %arg18[%124, %c320] : memref<24x384xbf16, #tpu.memory_space<vmem>>, vector<24x32xbf16>
    %cst_55 = arith.constant dense<0.000000e+00> : vector<24x24xf32>
    %126 = tpu.matmul %116, %123, %cst_55 {dimension_numbers = #tpu.dot_dimension_numbers<[1], [1], [0], [0], [0, 0, 1, 0], [], []>} : vector<24x32xbf16>, vector<24x32xbf16>, vector<24x24xf32> -> vector<24x24xf32>
    %127 = tpu.iota {dimensions = array<i32: 1>} : vector<24x24xi32>
    %128 = vector.broadcast %121 : i32 to vector<24x24xi32>
    %129 = arith.addi %128, %127 : vector<24x24xi32>
    %c20_i32_56 = arith.constant 20 : i32
    %130 = vector.broadcast %c20_i32_56 : i32 to vector<24x24xi32>
    %131 = arith.cmpi slt, %129, %130 : vector<24x24xi32>
    %cst_57 = arith.constant -1.000000e+30 : f32
    %132 = vector.broadcast %cst_57 : f32 to vector<24x24xf32>
    %133 = arith.select %131, %126, %132 : vector<24x24xi1>, vector<24x24xf32>
    %cst_58 = arith.constant dense<0xFF800000> : vector<24xf32>
    %134 = vector.multi_reduction <maximumf>, %133, %cst_58 [1] : vector<24x24xf32> to vector<24xf32>
    %135 = vector.shape_cast %134 : vector<24xf32> to vector<24x1xf32>
    %136 = arith.maximumf %117, %135 : vector<24x1xf32>
    %137 = arith.subf %117, %136 : vector<24x1xf32>
    %138 = math.exp %137 : vector<24x1xf32>
    %139 = vector.broadcast %136 : vector<24x1xf32> to vector<24x24xf32>
    %140 = arith.subf %133, %139 : vector<24x24xf32>
    %141 = math.exp %140 : vector<24x24xf32>
    %142 = arith.mulf %138, %118 : vector<24x1xf32>
    %cst_59 = arith.constant dense<0.000000e+00> : vector<24xf32>
    %143 = vector.multi_reduction <add>, %141, %cst_59 [1] : vector<24x24xf32> to vector<24xf32>
    %144 = vector.shape_cast %143 : vector<24xf32> to vector<24x1xf32>
    %145 = arith.addf %142, %144 : vector<24x1xf32>
    %146 = vector.broadcast %138 : vector<24x1xf32> to vector<24x32xf32>
    %147 = arith.mulf %146, %119 : vector<24x32xf32>
    %148 = arith.truncf %141 : vector<24x24xf32> to vector<24x24xbf16>
    %cst_60 = arith.constant dense<0.000000e+00> : vector<24x32xf32>
    %149 = tpu.matmul %148, %125, %cst_60 {dimension_numbers = #tpu.dot_dimension_numbers<[1], [0], [0], [1], [0, 0, 1, 1], [], []>} : vector<24x24xbf16>, vector<24x32xbf16>, vector<24x32xf32> -> vector<24x32xf32>
    %150 = arith.addf %147, %149 : vector<24x32xf32>
    %c1_i32_61 = arith.constant 1 : i32
    %151 = vector.broadcast %145 : vector<24x1xf32> to vector<24x32xf32>
    %152 = arith.divf %150, %151 : vector<24x32xf32>
    %153 = arith.truncf %152 : vector<24x32xf32> to vector<24x32xbf16>
    %154 = arith.index_cast %114 : i32 to index
    %c64_62 = arith.constant 64 : index
    %155 = vector.load %arg19[%154, %c64_62] : memref<24x128xbf16, #tpu.memory_space<vmem>>, vector<24x32xbf16>
    tpu.vector_store %arg19[%154, %c64_62], %153 {strides = array<i32>} : memref<24x128xbf16, #tpu.memory_space<vmem>>, vector<24x32xbf16>,
    %c1_i32_63 = arith.constant 1 : i32
    %c0_i32_64 = arith.constant 0 : i32
    %c1_i32_65 = arith.constant 1 : i32
    %156 = arith.muli %c0_i32_64, %c1_i32_65 : i32
    %c0_i32_66 = arith.constant 0 : i32
    %157 = arith.addi %c0_i32_66, %156 : i32
    %c24_i32_67 = arith.constant 24 : i32
    %158 = arith.muli %157, %c24_i32_67 : i32
    %159 = tpu.assume_multiple %158, 24 : i32
    %160 = arith.index_cast %159 : i32 to index
    %c96 = arith.constant 96 : index
    %161 = vector.load %arg18[%160, %c96] : memref<24x384xbf16, #tpu.memory_space<vmem>>, vector<24x32xbf16>
    %cst_68 = arith.constant -1.000000e+30 : f32
    %162 = vector.broadcast %cst_68 : f32 to vector<24x1xf32>
    %cst_69 = arith.constant 0.000000e+00 : f32
    %163 = vector.broadcast %cst_69 : f32 to vector<24x1xf32>
    %cst_70 = arith.constant 0.000000e+00 : f32
    %164 = vector.broadcast %cst_70 : f32 to vector<24x32xf32>
    %c0_i32_71 = arith.constant 0 : i32
    %c24_i32_72 = arith.constant 24 : i32
    %165 = arith.muli %c0_i32_71, %c24_i32_72 : i32
    %166 = tpu.assume_multiple %165, 24 : i32
    %167 = arith.index_cast %166 : i32 to index
    %c224 = arith.constant 224 : index
    %168 = vector.load %arg18[%167, %c224] : memref<24x384xbf16, #tpu.memory_space<vmem>>, vector<24x32xbf16>
    %169 = arith.index_cast %166 : i32 to index
    %c352 = arith.constant 352 : index
    %170 = vector.load %arg18[%169, %c352] : memref<24x384xbf16, #tpu.memory_space<vmem>>, vector<24x32xbf16>
    %cst_73 = arith.constant dense<0.000000e+00> : vector<24x24xf32>
    %171 = tpu.matmul %161, %168, %cst_73 {dimension_numbers = #tpu.dot_dimension_numbers<[1], [1], [0], [0], [0, 0, 1, 0], [], []>} : vector<24x32xbf16>, vector<24x32xbf16>, vector<24x24xf32> -> vector<24x24xf32>
    %172 = tpu.iota {dimensions = array<i32: 1>} : vector<24x24xi32>
    %173 = vector.broadcast %166 : i32 to vector<24x24xi32>
    %174 = arith.addi %173, %172 : vector<24x24xi32>
    %c20_i32_74 = arith.constant 20 : i32
    %175 = vector.broadcast %c20_i32_74 : i32 to vector<24x24xi32>
    %176 = arith.cmpi slt, %174, %175 : vector<24x24xi32>
    %cst_75 = arith.constant -1.000000e+30 : f32
    %177 = vector.broadcast %cst_75 : f32 to vector<24x24xf32>
    %178 = arith.select %176, %171, %177 : vector<24x24xi1>, vector<24x24xf32>
    %cst_76 = arith.constant dense<0xFF800000> : vector<24xf32>
    %179 = vector.multi_reduction <maximumf>, %178, %cst_76 [1] : vector<24x24xf32> to vector<24xf32>
    %180 = vector.shape_cast %179 : vector<24xf32> to vector<24x1xf32>
    %181 = arith.maximumf %162, %180 : vector<24x1xf32>
    %182 = arith.subf %162, %181 : vector<24x1xf32>
    %183 = math.exp %182 : vector<24x1xf32>
    %184 = vector.broadcast %181 : vector<24x1xf32> to vector<24x24xf32>
    %185 = arith.subf %178, %184 : vector<24x24xf32>
    %186 = math.exp %185 : vector<24x24xf32>
    %187 = arith.mulf %183, %163 : vector<24x1xf32>
    %cst_77 = arith.constant dense<0.000000e+00> : vector<24xf32>
    %188 = vector.multi_reduction <add>, %186, %cst_77 [1] : vector<24x24xf32> to vector<24xf32>
    %189 = vector.shape_cast %188 : vector<24xf32> to vector<24x1xf32>
    %190 = arith.addf %187, %189 : vector<24x1xf32>
    %191 = vector.broadcast %183 : vector<24x1xf32> to vector<24x32xf32>
    %192 = arith.mulf %191, %164 : vector<24x32xf32>
    %193 = arith.truncf %186 : vector<24x24xf32> to vector<24x24xbf16>
    %cst_78 = arith.constant dense<0.000000e+00> : vector<24x32xf32>
    %194 = tpu.matmul %193, %170, %cst_78 {dimension_numbers = #tpu.dot_dimension_numbers<[1], [0], [0], [1], [0, 0, 1, 1], [], []>} : vector<24x24xbf16>, vector<24x32xbf16>, vector<24x32xf32> -> vector<24x32xf32>
    %195 = arith.addf %192, %194 : vector<24x32xf32>
    %c1_i32_79 = arith.constant 1 : i32
    %196 = vector.broadcast %190 : vector<24x1xf32> to vector<24x32xf32>
    %197 = arith.divf %195, %196 : vector<24x32xf32>
    %198 = arith.truncf %197 : vector<24x32xf32> to vector<24x32xbf16>
    %199 = arith.index_cast %159 : i32 to index
    %c96_80 = arith.constant 96 : index
    %200 = vector.load %arg19[%199, %c96_80] : memref<24x128xbf16, #tpu.memory_space<vmem>>, vector<24x32xbf16>
    tpu.vector_store %arg19[%199, %c96_80], %198 {strides = array<i32>} : memref<24x128xbf16, #tpu.memory_space<vmem>>, vector<24x32xbf16>,
    %c1_i32_81 = arith.constant 1 : i32
    %c0_82 = arith.constant 0 : index
    %c0_83 = arith.constant 0 : index
    %201 = vector.load %arg19[%c0_82, %c0_83] : memref<24x128xbf16, #tpu.memory_space<vmem>>, vector<24x128xbf16>
    %c0_84 = arith.constant 0 : index
    %c0_85 = arith.constant 0 : index
    %c0_86 = arith.constant 0 : index
    %202 = vector.load %arg4[%c0_84, %c0_85, %c0_86] : memref<1x128x128xbf16, #tpu.memory_space<vmem>>, vector<1x128x128xbf16>
    %203 = vector.shape_cast %202 : vector<1x128x128xbf16> to vector<128x128xbf16>
    %cst_87 = arith.constant dense<0.000000e+00> : vector<24x128xf32>
    %204 = tpu.matmul %201, %203, %cst_87 {dimension_numbers = #tpu.dot_dimension_numbers<[1], [0], [0], [1], [0, 0, 1, 1], [], []>} : vector<24x128xbf16>, vector<128x128xbf16>, vector<24x128xf32> -> vector<24x128xf32>
    %205 = arith.index_cast %arg0 : i32 to index
    %c0_88 = arith.constant 0 : index
    %c0_89 = arith.constant 0 : index
    %206 = vector.load %arg5[%205, %c0_88, %c0_89] : memref<2x1x128xf32, #tpu.memory_space<vmem>>, vector<1x1x128xf32>
    %207 = vector.shape_cast %206 : vector<1x1x128xf32> to vector<1x128xf32>
    %208 = vector.broadcast %207 : vector<1x128xf32> to vector<24x128xf32>
    %209 = arith.addf %204, %208 : vector<24x128xf32>
    %210 = arith.addf %3, %209 : vector<24x128xf32>
    %211 = arith.index_cast %arg0 : i32 to index
    %c0_90 = arith.constant 0 : index
    %c0_91 = arith.constant 0 : index
    %212 = vector.load %arg6[%211, %c0_90, %c0_91] : memref<2x1x128xf32, #tpu.memory_space<vmem>>, vector<1x1x128xf32>
    %213 = vector.shape_cast %212 : vector<1x1x128xf32> to vector<1x128xf32>
    %214 = arith.index_cast %arg0 : i32 to index
    %c0_92 = arith.constant 0 : index
    %c0_93 = arith.constant 0 : index
    %215 = vector.load %arg7[%214, %c0_92, %c0_93] : memref<2x1x128xf32, #tpu.memory_space<vmem>>, vector<1x1x128xf32>
    %216 = vector.shape_cast %215 : vector<1x1x128xf32> to vector<1x128xf32>
    %cst_94 = arith.constant dense<0.000000e+00> : vector<24xf32>
    %217 = vector.multi_reduction <add>, %210, %cst_94 [1] : vector<24x128xf32> to vector<24xf32>
    %218 = vector.shape_cast %217 : vector<24xf32> to vector<24x1xf32>
    %cst_95 = arith.constant 1.280000e+02 : f32
    %219 = vector.broadcast %cst_95 : f32 to vector<24x1xf32>
    %220 = arith.divf %218, %219 : vector<24x1xf32>
    %221 = vector.broadcast %220 : vector<24x1xf32> to vector<24x128xf32>
    %222 = arith.subf %210, %221 : vector<24x128xf32>
    %223 = arith.mulf %222, %222 : vector<24x128xf32>
    %cst_96 = arith.constant dense<0.000000e+00> : vector<24xf32>
    %224 = vector.multi_reduction <add>, %223, %cst_96 [1] : vector<24x128xf32> to vector<24xf32>
    %225 = vector.shape_cast %224 : vector<24xf32> to vector<24x1xf32>
    %cst_97 = arith.constant 1.280000e+02 : f32
    %226 = vector.broadcast %cst_97 : f32 to vector<24x1xf32>
    %227 = arith.divf %225, %226 : vector<24x1xf32>
    %cst_98 = arith.constant 9.99999974E-6 : f32
    %228 = vector.broadcast %cst_98 : f32 to vector<24x1xf32>
    %229 = arith.addf %227, %228 : vector<24x1xf32>
    %230 = math.rsqrt %229 : vector<24x1xf32>
    %231 = vector.broadcast %230 : vector<24x1xf32> to vector<24x128xf32>
    %232 = arith.mulf %222, %231 : vector<24x128xf32>
    %233 = vector.broadcast %213 : vector<1x128xf32> to vector<24x128xf32>
    %234 = arith.mulf %232, %233 : vector<24x128xf32>
    %235 = vector.broadcast %216 : vector<1x128xf32> to vector<24x128xf32>
    %236 = arith.addf %234, %235 : vector<24x128xf32>
    %237 = arith.truncf %236 : vector<24x128xf32> to vector<24x128xbf16>
    %c0_99 = arith.constant 0 : index
    %c0_100 = arith.constant 0 : index
    %c0_101 = arith.constant 0 : index
    %238 = vector.load %arg8[%c0_99, %c0_100, %c0_101] : memref<1x128x256xbf16, #tpu.memory_space<vmem>>, vector<1x128x256xbf16>
    %239 = vector.shape_cast %238 : vector<1x128x256xbf16> to vector<128x256xbf16>
    %cst_102 = arith.constant dense<0.000000e+00> : vector<24x256xf32>
    %240 = tpu.matmul %237, %239, %cst_102 {dimension_numbers = #tpu.dot_dimension_numbers<[1], [0], [0], [1], [0, 0, 1, 1], [], []>} : vector<24x128xbf16>, vector<128x256xbf16>, vector<24x256xf32> -> vector<24x256xf32>
    %241 = arith.index_cast %arg0 : i32 to index
    %c0_103 = arith.constant 0 : index
    %c0_104 = arith.constant 0 : index
    %242 = vector.load %arg9[%241, %c0_103, %c0_104] : memref<2x1x256xf32, #tpu.memory_space<vmem>>, vector<1x1x256xf32>
    %243 = vector.shape_cast %242 : vector<1x1x256xf32> to vector<1x256xf32>
    %244 = vector.broadcast %243 : vector<1x256xf32> to vector<24x256xf32>
    %245 = arith.addf %240, %244 : vector<24x256xf32>
    %cst_105 = arith.constant 0.000000e+00 : f32
    %246 = vector.broadcast %cst_105 : f32 to vector<24x256xf32>
    %247 = arith.maximumf %245, %246 : vector<24x256xf32>
    %248 = arith.truncf %247 : vector<24x256xf32> to vector<24x256xbf16>
    %c0_106 = arith.constant 0 : index
    %c0_107 = arith.constant 0 : index
    %c0_108 = arith.constant 0 : index
    %249 = vector.load %arg10[%c0_106, %c0_107, %c0_108] : memref<1x256x128xbf16, #tpu.memory_space<vmem>>, vector<1x256x128xbf16>
    %250 = vector.shape_cast %249 : vector<1x256x128xbf16> to vector<256x128xbf16>
    %cst_109 = arith.constant dense<0.000000e+00> : vector<24x128xf32>
    %251 = tpu.matmul %248, %250, %cst_109 {dimension_numbers = #tpu.dot_dimension_numbers<[1], [0], [0], [1], [0, 0, 1, 1], [], []>} : vector<24x256xbf16>, vector<256x128xbf16>, vector<24x128xf32> -> vector<24x128xf32>
    %252 = arith.index_cast %arg0 : i32 to index
    %c0_110 = arith.constant 0 : index
    %c0_111 = arith.constant 0 : index
    %253 = vector.load %arg11[%252, %c0_110, %c0_111] : memref<2x1x128xf32, #tpu.memory_space<vmem>>, vector<1x1x128xf32>
    %254 = vector.shape_cast %253 : vector<1x1x128xf32> to vector<1x128xf32>
    %255 = vector.broadcast %254 : vector<1x128xf32> to vector<24x128xf32>
    %256 = arith.addf %251, %255 : vector<24x128xf32>
    %257 = arith.addf %236, %256 : vector<24x128xf32>
    %258 = arith.index_cast %arg0 : i32 to index
    %c0_112 = arith.constant 0 : index
    %c0_113 = arith.constant 0 : index
    %259 = vector.load %arg12[%258, %c0_112, %c0_113] : memref<2x1x128xf32, #tpu.memory_space<vmem>>, vector<1x1x128xf32>
    %260 = vector.shape_cast %259 : vector<1x1x128xf32> to vector<1x128xf32>
    %261 = arith.index_cast %arg0 : i32 to index
    %c0_114 = arith.constant 0 : index
    %c0_115 = arith.constant 0 : index
    %262 = vector.load %arg13[%261, %c0_114, %c0_115] : memref<2x1x128xf32, #tpu.memory_space<vmem>>, vector<1x1x128xf32>
    %263 = vector.shape_cast %262 : vector<1x1x128xf32> to vector<1x128xf32>
    %cst_116 = arith.constant dense<0.000000e+00> : vector<24xf32>
    %264 = vector.multi_reduction <add>, %257, %cst_116 [1] : vector<24x128xf32> to vector<24xf32>
    %265 = vector.shape_cast %264 : vector<24xf32> to vector<24x1xf32>
    %cst_117 = arith.constant 1.280000e+02 : f32
    %266 = vector.broadcast %cst_117 : f32 to vector<24x1xf32>
    %267 = arith.divf %265, %266 : vector<24x1xf32>
    %268 = vector.broadcast %267 : vector<24x1xf32> to vector<24x128xf32>
    %269 = arith.subf %257, %268 : vector<24x128xf32>
    %270 = arith.mulf %269, %269 : vector<24x128xf32>
    %cst_118 = arith.constant dense<0.000000e+00> : vector<24xf32>
    %271 = vector.multi_reduction <add>, %270, %cst_118 [1] : vector<24x128xf32> to vector<24xf32>
    %272 = vector.shape_cast %271 : vector<24xf32> to vector<24x1xf32>
    %cst_119 = arith.constant 1.280000e+02 : f32
    %273 = vector.broadcast %cst_119 : f32 to vector<24x1xf32>
    %274 = arith.divf %272, %273 : vector<24x1xf32>
    %cst_120 = arith.constant 9.99999974E-6 : f32
    %275 = vector.broadcast %cst_120 : f32 to vector<24x1xf32>
    %276 = arith.addf %274, %275 : vector<24x1xf32>
    %277 = math.rsqrt %276 : vector<24x1xf32>
    %278 = vector.broadcast %277 : vector<24x1xf32> to vector<24x128xf32>
    %279 = arith.mulf %269, %278 : vector<24x128xf32>
    %280 = vector.broadcast %260 : vector<1x128xf32> to vector<24x128xf32>
    %281 = arith.mulf %279, %280 : vector<24x128xf32>
    %282 = vector.broadcast %263 : vector<1x128xf32> to vector<24x128xf32>
    %283 = arith.addf %281, %282 : vector<24x128xf32>
    %c0_121 = arith.constant 0 : index
    %c0_122 = arith.constant 0 : index
    %284 = vector.load %arg17[%c0_121, %c0_122] : memref<24x128xf32, #tpu.memory_space<vmem>>, vector<24x128xf32>
    tpu.vector_store %arg17[%c0_121, %c0_122], %283 {strides = array<i32>} : memref<24x128xf32, #tpu.memory_space<vmem>>, vector<24x128xf32>,
    %c1_i32_123 = arith.constant 1 : i32
    %285 = arith.cmpi eq, %arg0, %c1_i32_123 : i32
    %286 = arith.extui %285 : i1 to i32
    %c0_i32_124 = arith.constant 0 : i32
    %287 = arith.cmpi ne, %286, %c0_i32_124 : i32
    scf.if %287 {
      %288 = tpu.iota {dimensions = array<i32: 0>} : vector<24x128xi32>
      %c20_i32_125 = arith.constant 20 : i32
      %289 = vector.broadcast %c20_i32_125 : i32 to vector<24x128xi32>
      %290 = arith.cmpi slt, %288, %289 : vector<24x128xi32>
      %cst_126 = arith.constant 0.000000e+00 : f32
      %291 = vector.broadcast %cst_126 : f32 to vector<24x128xf32>
      %292 = arith.select %290, %283, %291 : vector<24x128xi1>, vector<24x128xf32>
      %cst_127 = arith.constant dense<0.000000e+00> : vector<128xf32>
      %293 = vector.multi_reduction <add>, %292, %cst_127 [0] : vector<24x128xf32> to vector<128xf32>
      %294 = vector.shape_cast %293 : vector<128xf32> to vector<1x128xf32>
      %cst_128 = arith.constant 5.000000e-02 : f32
      %295 = vector.broadcast %cst_128 : f32 to vector<1x128xf32>
      %296 = arith.mulf %294, %295 : vector<1x128xf32>
      %297 = arith.truncf %296 : vector<1x128xf32> to vector<1x128xbf16>
      %c0_129 = arith.constant 0 : index
      %c0_130 = arith.constant 0 : index
      %298 = vector.load %arg14[%c0_129, %c0_130] : memref<128x88xbf16, #tpu.memory_space<vmem>>, vector<128x88xbf16>
      %cst_131 = arith.constant dense<0.000000e+00> : vector<1x88xf32>
      %299 = tpu.matmul %297, %298, %cst_131 {dimension_numbers = #tpu.dot_dimension_numbers<[1], [0], [0], [1], [0, 0, 1, 1], [], []>} : vector<1x128xbf16>, vector<128x88xbf16>, vector<1x88xf32> -> vector<1x88xf32>
      %c0_132 = arith.constant 0 : index
      %c0_133 = arith.constant 0 : index
      %300 = vector.load %arg15[%c0_132, %c0_133] : memref<1x88xf32, #tpu.memory_space<vmem>>, vector<1x88xf32>
      %301 = arith.addf %299, %300 : vector<1x88xf32>
      %c0_134 = arith.constant 0 : index
      %c0_135 = arith.constant 0 : index
      %302 = vector.load %arg16[%c0_134, %c0_135] : memref<1x88xf32, #tpu.memory_space<vmem>>, vector<1x88xf32>
      tpu.vector_store %arg16[%c0_134, %c0_135], %301 {strides = array<i32>} : memref<1x88xf32, #tpu.memory_space<vmem>>, vector<1x88xf32>,
    } else {
    }
    return
  }
  func.func @transform_1(%arg0: i32) -> (i32, i32, i32) {
    %c0_i32 = arith.constant 0 : i32
    %c0_i32_0 = arith.constant 0 : i32
    %c0_i32_1 = arith.constant 0 : i32
    return %arg0, %c0_i32, %c0_i32_0 : i32, i32, i32
  }
  func.func @transform_2(%arg0: i32) -> (i32, i32, i32) {
    %c0_i32 = arith.constant 0 : i32
    %c0_i32_0 = arith.constant 0 : i32
    %c0_i32_1 = arith.constant 0 : i32
    %c0_i32_2 = arith.constant 0 : i32
    return %c0_i32, %c0_i32_0, %c0_i32_1 : i32, i32, i32
  }
  func.func @transform_3(%arg0: i32) -> (i32, i32, i32) {
    %c0_i32 = arith.constant 0 : i32
    %c0_i32_0 = arith.constant 0 : i32
    %c0_i32_1 = arith.constant 0 : i32
    return %arg0, %c0_i32, %c0_i32_0 : i32, i32, i32
  }
  func.func @transform_4(%arg0: i32) -> (i32, i32, i32) {
    %c0_i32 = arith.constant 0 : i32
    %c0_i32_0 = arith.constant 0 : i32
    %c0_i32_1 = arith.constant 0 : i32
    %c0_i32_2 = arith.constant 0 : i32
    return %c0_i32, %c0_i32_0, %c0_i32_1 : i32, i32, i32
  }
  func.func @transform_5(%arg0: i32) -> (i32, i32, i32) {
    %c0_i32 = arith.constant 0 : i32
    %c0_i32_0 = arith.constant 0 : i32
    %c0_i32_1 = arith.constant 0 : i32
    %c0_i32_2 = arith.constant 0 : i32
    return %c0_i32, %c0_i32_0, %c0_i32_1 : i32, i32, i32
  }
  func.func @transform_6(%arg0: i32) -> (i32, i32, i32) {
    %c0_i32 = arith.constant 0 : i32
    %c0_i32_0 = arith.constant 0 : i32
    %c0_i32_1 = arith.constant 0 : i32
    %c0_i32_2 = arith.constant 0 : i32
    return %c0_i32, %c0_i32_0, %c0_i32_1 : i32, i32, i32
  }
  func.func @transform_7(%arg0: i32) -> (i32, i32, i32) {
    %c0_i32 = arith.constant 0 : i32
    %c0_i32_0 = arith.constant 0 : i32
    %c0_i32_1 = arith.constant 0 : i32
    return %arg0, %c0_i32, %c0_i32_0 : i32, i32, i32
  }
  func.func @transform_8(%arg0: i32) -> (i32, i32, i32) {
    %c0_i32 = arith.constant 0 : i32
    %c0_i32_0 = arith.constant 0 : i32
    %c0_i32_1 = arith.constant 0 : i32
    %c0_i32_2 = arith.constant 0 : i32
    return %c0_i32, %c0_i32_0, %c0_i32_1 : i32, i32, i32
  }
  func.func @transform_9(%arg0: i32) -> (i32, i32, i32) {
    %c0_i32 = arith.constant 0 : i32
    %c0_i32_0 = arith.constant 0 : i32
    %c0_i32_1 = arith.constant 0 : i32
    return %arg0, %c0_i32, %c0_i32_0 : i32, i32, i32
  }
  func.func @transform_10(%arg0: i32) -> (i32, i32, i32) {
    %c0_i32 = arith.constant 0 : i32
    %c0_i32_0 = arith.constant 0 : i32
    %c0_i32_1 = arith.constant 0 : i32
    %c0_i32_2 = arith.constant 0 : i32
    return %c0_i32, %c0_i32_0, %c0_i32_1 : i32, i32, i32
  }
  func.func @transform_11(%arg0: i32) -> (i32, i32, i32) {
    %c0_i32 = arith.constant 0 : i32
    %c0_i32_0 = arith.constant 0 : i32
    %c0_i32_1 = arith.constant 0 : i32
    %c0_i32_2 = arith.constant 0 : i32
    return %c0_i32, %c0_i32_0, %c0_i32_1 : i32, i32, i32
  }
  func.func @transform_12(%arg0: i32) -> (i32, i32, i32) {
    %c0_i32 = arith.constant 0 : i32
    %c0_i32_0 = arith.constant 0 : i32
    %c0_i32_1 = arith.constant 0 : i32
    %c0_i32_2 = arith.constant 0 : i32
    return %c0_i32, %c0_i32_0, %c0_i32_1 : i32, i32, i32
  }
  func.func @transform_13(%arg0: i32) -> (i32, i32) {
    %c0_i32 = arith.constant 0 : i32
    %c0_i32_0 = arith.constant 0 : i32
    %c0_i32_1 = arith.constant 0 : i32
    return %c0_i32, %c0_i32_0 : i32, i32
  }
  func.func @transform_14(%arg0: i32) -> (i32, i32) {
    %c0_i32 = arith.constant 0 : i32
    %c0_i32_0 = arith.constant 0 : i32
    %c0_i32_1 = arith.constant 0 : i32
    return %c0_i32, %c0_i32_0 : i32, i32
  }
  func.func @transform_15(%arg0: i32) -> (i32, i32) {
    %c0_i32 = arith.constant 0 : i32
    %c0_i32_0 = arith.constant 0 : i32
    %c0_i32_1 = arith.constant 0 : i32
    return %c0_i32, %c0_i32_0 : i32, i32
  }
}

</mosaic_0001>

<llo_original>
// kernel: squeeze.5
$region0: #{squeeze.5}
  %s0 = inlined_call_operand.vmem [shape: f32[32], index: 0, kind: input, shape index: {}]
  %s1 = inlined_call_operand.vmem [shape: f32[8,4], index: 1, kind: output, shape index: {}]
  $region1: #{squeeze.5} parent=0
    #allocation0 [shape = 'u8[4096]{0}', space=vmem, size = 0x1000, scoped, tag = 'scoped mem for input reshape']
    %s3 = sshllo.u32 0, 1
    %v4 = vld [vmem:[%s0] sm:%s3]
    %5 = vst [vmem:[#allocation0] sm:%s3] %v4
    %v6 = vld [vmem:[#allocation0] sm:$0x1]
    %vm7 = vcmask 31744
    %8 = vst.msk [vmem:[%s1] sm:$0x1] %vm7, %v6
    %v9 = vld [vmem:[#allocation0] sm:$0x1]
    %10 = vrot.lane.b32.xlu0 %v9, 124
    %v11 = vpop.permute.xlu0 %10
    %vm12 = vcmask 31744
    %s13 = scalar_lea.vmem %s1, 1
    %14 = vst.msk [vmem:[%s13] sm:$0x1] %vm12, %v11
    %v15 = vld [vmem:[#allocation0] sm:$0x1]
    %16 = vrot.lane.b32.xlu0 %v15, 120
    %v17 = vpop.permute.xlu0 %16
    %vm18 = vcmask 31744
    %s19 = scalar_lea.vmem %s1, 2
    %20 = vst.msk [vmem:[%s19] sm:$0x1] %vm18, %v17
    %v21 = vld [vmem:[#allocation0] sm:$0x1]
    %22 = vrot.lane.b32.xlu0 %v21, 116
    %v23 = vpop.permute.xlu0 %22
    %vm24 = vcmask 31744
    %s25 = scalar_lea.vmem %s1, 3
    %26 = vst.msk [vmem:[%s25] sm:$0x1] %vm24, %v23
    %v27 = vld [vmem:[#allocation0] sm:$0x1]
    %28 = vrot.lane.b32.xlu0 %v27, 112
    %v29 = vpop.permute.xlu0 %28
    %vm30 = vcmask 31744
    %s31 = scalar_lea.vmem %s1, 4
    %32 = vst.msk [vmem:[%s31] sm:$0x1] %vm30, %v29
    %v33 = vld [vmem:[#allocation0] sm:$0x1]
    %34 = vrot.lane.b32.xlu0 %v33, 108
    %v35 = vpop.permute.xlu0 %34
    %vm36 = vcmask 31744
    %s37 = scalar_lea.vmem %s1, 5
    %38 = vst.msk [vmem:[%s37] sm:$0x1] %vm36, %v35
    %v39 = vld [vmem:[#allocation0] sm:$0x1]
    %40 = vrot.lane.b32.xlu0 %v39, 104
    %v41 = vpop.permute.xlu0 %40
    %vm42 = vcmask 31744
    %s43 = scalar_lea.vmem %s1, 6
    %44 = vst.msk [vmem:[%s43] sm:$0x1] %vm42, %v41
    %v45 = vld [vmem:[#allocation0] sm:$0x1]
    %46 = vrot.lane.b32.xlu0 %v45, 100
    %v47 = vpop.permute.xlu0 %46
    %vm48 = vcmask 31744
    %s49 = scalar_lea.vmem %s1, 7
    %50 = vst.msk [vmem:[%s49] sm:$0x1] %vm48, %v47

// kernel: squeeze.4
$region0: #{squeeze.4}
  %s0 = inlined_call_operand.vmem [shape: f32[48], index: 0, kind: input, shape index: {}]
  %s1 = inlined_call_operand.vmem [shape: f32[8,2,3], index: 1, kind: output, shape index: {}]
  $region1: #{squeeze.4} parent=0
    #allocation0 [shape = 'u8[32768]{0}', space=vmem, size = 0x8000, scoped, tag = 'scoped mem for output reshape']
    #allocation1 [shape = 'u8[4096]{0}', space=vmem, size = 0x1000, scoped, tag = 'scoped mem for input reshape']
    %s3 = sshllo.u32 0, 1
    %v4 = vld [vmem:[%s0] sm:%s3]
    %5 = vst [vmem:[#allocation1] sm:%s3] %v4
    %v6 = vld [vmem:[#allocation1] sm:$0x1]
    %vm7 = vcmask 23552
    %8 = vst.msk [vmem:[#allocation0] sm:$0x1] %vm7, %v6
    %v9 = vld [vmem:[#allocation1] sm:$0x1]
    %10 = vrot.lane.b32.xlu0 %v9, 125
    %v11 = vpop.permute.xlu0 %10
    %vm12 = vcmask 23552
    %s13 = scalar_lea.vmem [#allocation0], 1
    %14 = vst.msk [vmem:[%s13] sm:$0x1] %vm12, %v11
    %v15 = vld [vmem:[#allocation1] sm:$0x1]
    %16 = vrot.lane.b32.xlu0 %v15, 122
    %v17 = vpop.permute.xlu0 %16
    %vm18 = vcmask 23552
    %s19 = scalar_lea.vmem [#allocation0], 8
    %20 = vst.msk [vmem:[%s19] sm:$0x1] %vm18, %v17
    %v21 = vld [vmem:[#allocation1] sm:$0x1]
    %22 = vrot.lane.b32.xlu0 %v21, 119
    %v23 = vpop.permute.xlu0 %22
    %vm24 = vcmask 23552
    %s25 = scalar_lea.vmem [#allocation0], 9
    %26 = vst.msk [vmem:[%s25] sm:$0x1] %vm24, %v23
    %v27 = vld [vmem:[#allocation1] sm:$0x1]
    %28 = vrot.lane.b32.xlu0 %v27, 116
    %v29 = vpop.permute.xlu0 %28
    %vm30 = vcmask 23552
    %s31 = scalar_lea.vmem [#allocation0], 16
    %32 = vst.msk [vmem:[%s31] sm:$0x1] %vm30, %v29
    %v33 = vld [vmem:[#allocation1] sm:$0x1]
    %34 = vrot.lane.b32.xlu0 %v33, 113
    %v35 = vpop.permute.xlu0 %34
    %vm36 = vcmask 23552
    %s37 = scalar_lea.vmem [#allocation0], 17
    %38 = vst.msk [vmem:[%s37] sm:$0x1] %vm36, %v35
    %v39 = vld [vmem:[#allocation1] sm:$0x1]
    %40 = vrot.lane.b32.xlu0 %v39, 110
    %v41 = vpop.permute.xlu0 %40
    %vm42 = vcmask 23552
    %s43 = scalar_lea.vmem [#allocation0], 24
    %44 = vst.msk [vmem:[%s43] sm:$0x1] %vm42, %v41
    %v45 = vld [vmem:[#allocation1] sm:$0x1]
    %46 = vrot.lane.b32.xlu0 %v45, 107
    %v47 = vpop.permute.xlu0 %46
    %vm48 = vcmask 23552
    %s49 = scalar_lea.vmem [#allocation0], 25
    %50 = vst.msk [vmem:[%s49] sm:$0x1] %vm48, %v47
    %v51 = vld [vmem:[#allocation1] sm:$0x1]
    %52 = vrot.lane.b32.xlu0 %v51, 104
    %v53 = vpop.permute.xlu0 %52
    %vm54 = vcmask 23552
    %s55 = scalar_lea.vmem [#allocation0], 32
    %56 = vst.msk [vmem:[%s55] sm:$0x1] %vm54, %v53
    %v57 = vld [vmem:[#allocation1] sm:$0x1]
    %58 = vrot.lane.b32.xlu0 %v57, 101
    %v59 = vpop.permute.xlu0 %58
    %vm60 = vcmask 23552
    %s61 = scalar_lea.vmem [#allocation0], 33
    %62 = vst.msk [vmem:[%s61] sm:$0x1] %vm60, %v59
    %v63 = vld [vmem:[#allocation1] sm:$0x1]
    %64 = vrot.lane.b32.xlu0 %v63, 98
    %v65 = vpop.permute.xlu0 %64
    %vm66 = vcmask 23552
    %s67 = scalar_lea.vmem [#allocation0], 40
    %68 = vst.msk [vmem:[%s67] sm:$0x1] %vm66, %v65
    %v69 = vld [vmem:[#allocation1] sm:$0x1]
    %70 = vrot.lane.b32.xlu0 %v69, 95
    %v71 = vpop.permute.xlu0 %70
    %vm72 = vcmask 23552
    %s73 = scalar_lea.vmem [#allocation0], 41
    %74 = vst.msk [vmem:[%s73] sm:$0x1] %vm72, %v71
    %v75 = vld [vmem:[#allocation1] sm:$0x1]
    %76 = vrot.lane.b32.xlu0 %v75, 92
    %v77 = vpop.permute.xlu0 %76
    %vm78 = vcmask 23552
    %s79 = scalar_lea.vmem [#allocation0], 48
    %80 = vst.msk [vmem:[%s79] sm:$0x1] %vm78, %v77
    %v81 = vld [vmem:[#allocation1] sm:$0x1]
    %82 = vrot.lane.b32.xlu0 %v81, 89
    %v83 = vpop.permute.xlu0 %82
    %vm84 = vcmask 23552
    %s85 = scalar_lea.vmem [#allocation0], 49
    %86 = vst.msk [vmem:[%s85] sm:$0x1] %vm84, %v83
    %v87 = vld [vmem:[#allocation1] sm:$0x1]
    %88 = vrot.lane.b32.xlu0 %v87, 86
    %v89 = vpop.permute.xlu0 %88
    %vm90 = vcmask 23552
    %s91 = scalar_lea.vmem [#allocation0], 56
    %92 = vst.msk [vmem:[%s91] sm:$0x1] %vm90, %v89
    %v93 = vld [vmem:[#allocation1] sm:$0x1]
    %94 = vrot.lane.b32.xlu0 %v93, 83
    %v95 = vpop.permute.xlu0 %94
    %vm96 = vcmask 23552
    %s97 = scalar_lea.vmem [#allocation0], 57
    %98 = vst.msk [vmem:[%s97] sm:$0x1] %vm96, %v95
    %s100 = sshllo.u32 0, 2
    %v102 = vld [vmem:[#allocation0] sm:%s100]
    %s103 = sshllo.u32 0, 2
    %104 = vst [vmem:[%s1] sm:%s103] %v102
    %s105 = scalar_lea.vmem [#allocation0], 8
    %v106 = vld [vmem:[%s105] sm:%s100]
    %s107 = sshllo.u32 0, 2
    %s108 = scalar_lea.vmem %s1, 2
    %109 = vst [vmem:[%s108] sm:%s107] %v106
    %s110 = scalar_lea.vmem [#allocation0], 16
    %v111 = vld [vmem:[%s110] sm:%s100]
    %s112 = sshllo.u32 0, 2
    %s113 = smul.addr 2, 2
    %s114 = scalar_lea.vmem %s1, %s113
    %115 = vst [vmem:[%s114] sm:%s112] %v111
    %s116 = scalar_lea.vmem [#allocation0], 24
    %v117 = vld [vmem:[%s116] sm:%s100]
    %s118 = sshllo.u32 0, 2
    %s119 = smul.addr 2, 3
    %s120 = scalar_lea.vmem %s1, %s119
    %121 = vst [vmem:[%s120] sm:%s118] %v117
    %s122 = scalar_lea.vmem [#allocation0], 32
    %v123 = vld [vmem:[%s122] sm:%s100]
    %s124 = sshllo.u32 0, 2
    %s125 = smul.addr 2, 4
    %s126 = scalar_lea.vmem %s1, %s125
    %127 = vst [vmem:[%s126] sm:%s124] %v123
    %s128 = scalar_lea.vmem [#allocation0], 40
    %v129 = vld [vmem:[%s128] sm:%s100]
    %s130 = sshllo.u32 0, 2
    %s131 = smul.addr 2, 5
    %s132 = scalar_lea.vmem %s1, %s131
    %133 = vst [vmem:[%s132] sm:%s130] %v129
    %s134 = scalar_lea.vmem [#allocation0], 48
    %v135 = vld [vmem:[%s134] sm:%s100]
    %s136 = sshllo.u32 0, 2
    %s137 = smul.addr 2, 6
    %s138 = scalar_lea.vmem %s1, %s137
    %139 = vst [vmem:[%s138] sm:%s136] %v135
    %s140 = scalar_lea.vmem [#allocation0], 56
    %v141 = vld [vmem:[%s140] sm:%s100]
    %s142 = sshllo.u32 0, 2
    %s143 = smul.addr 2, 7
    %s144 = scalar_lea.vmem %s1, %s143
    %145 = vst [vmem:[%s144] sm:%s142] %v141

// kernel: bwformer_forward.2
$region0: #{bwformer_forward.2}
  #allocation0 [shape = 'u32[]', space=smem, size = 0x4, offset = 0x4, fixed_abs, tag = 'smem constant byte address 0x4 - core index']
  #allocation1 [shape = 'u32[144,128]{1,0:T(1,128)}', space=vmem, size = 0x12000, scoped, tag = 'internal scratch']
  %s0 = inlined_call_operand.vmem [shape: f32[24,3], index: 0, kind: input, shape index: {}]
  %s1 = inlined_call_operand.vmem [shape: f32[24,128], index: 1, kind: input, shape index: {}]
  %s2 = inlined_call_operand.vmem [shape: f32[3,128], index: 2, kind: input, shape index: {}]
  %s3 = inlined_call_operand.vmem [shape: f32[1,128], index: 3, kind: input, shape index: {}]
  %s4 = inlined_call_operand.vmem [shape: f32[128,128], index: 4, kind: input, shape index: {}]
  %s5 = inlined_call_operand.vmem [shape: f32[1,128], index: 5, kind: input, shape index: {}]
  %s6 = inlined_call_operand.hbm [shape: f32[24,128], index: 6, kind: output, shape index: {}]
  %s7 = sld [smem:[#allocation0]]
  $region34: #{bwformer_forward.2} parent=0
    _
  %s9 = ssub.s32 1, %s7
  %s10 = scalar_select 0, %s9, %s7
  $region1: #{bwformer_forward.2} parent=0
    #allocation2 [shape = 'u8[12288]{0}', space=vmem, size = 0x3000, scoped, tag = 'output window, operand 0, single buffered']
    #allocation3 [shape = 's32[1]{0}', space=sflag, size = 0x4, scoped, tag = 'scoped memory for bwformer_forward.2']
    %11 = vsyncpa [#allocation3], 0
    // Predicated region
    $region2: #{bwformer_forward.2} parent=1 // pred_check
      _
    $region3: #{bwformer_forward.2} parent=1 // pred_check_branch
      %13 = sbr.rel (0) target = $region5
    $region4: #{bwformer_forward.2} parent=1 // pred_region
      _
    $region5: #{bwformer_forward.2} parent=1 // pred_fallthru
      _
    // Predicated region
    $region6: #{bwformer_forward.2} parent=1 // pred_check
      _
    $region7: #{bwformer_forward.2} parent=1 // pred_check_branch
      %15 = sbr.rel (0) target = $region9
    $region8: #{bwformer_forward.2} parent=1 // pred_region
      _
    $region9: #{bwformer_forward.2} parent=1 // pred_fallthru
      _
    // Predicated region
    $region10: #{bwformer_forward.2} parent=1 // pred_check
      _
    $region11: #{bwformer_forward.2} parent=1 // pred_check_branch
      %17 = sbr.rel (0) target = $region13
    $region12: #{bwformer_forward.2} parent=1 // pred_region
      _
    $region13: #{bwformer_forward.2} parent=1 // pred_fallthru
      _
    // Predicated region
    $region14: #{bwformer_forward.2} parent=1 // pred_check
      _
    $region15: #{bwformer_forward.2} parent=1 // pred_check_branch
      %19 = sbr.rel (0) target = $region17
    $region16: #{bwformer_forward.2} parent=1 // pred_region
      _
    $region17: #{bwformer_forward.2} parent=1 // pred_fallthru
      _
    // Predicated region
    $region18: #{bwformer_forward.2} parent=1 // pred_check
      _
    $region19: #{bwformer_forward.2} parent=1 // pred_check_branch
      %21 = sbr.rel (0) target = $region21
    $region20: #{bwformer_forward.2} parent=1 // pred_region
      _
    $region21: #{bwformer_forward.2} parent=1 // pred_fallthru
      _
    // Predicated region
    $region22: #{bwformer_forward.2} parent=1 // pred_check
      _
    $region23: #{bwformer_forward.2} parent=1 // pred_check_branch
      %23 = sbr.rel (0) target = $region25
    $region24: #{bwformer_forward.2} parent=1 // pred_region
      _
    $region25: #{bwformer_forward.2} parent=1 // pred_fallthru
      _
    %v24 = vld [vmem:[%s0] sm:$0xff]
    %v25 = vld [vmem:[%s0 + $0x8] sm:$0xff]
    %v26 = vld [vmem:[%s0 + $0x10] sm:$0xff]
    %v27 = vld [vmem:[%s2] sm:$0x7]
    %v28 = vld [vmem:[%s3] sm:$0x1]
    %v30 = vlaneseq
    %v31 = vshrl.u32 %v30, 7
    %v32 = vsub.s32 0, %v31
    %v33 = vrot.slane %v28, %v32
    %vm35 = vcmask 23552
    %v37 = vsel %vm35, %v24, 0
    %v40 = vsel %vm35, %v25, 0
    %v43 = vsel %vm35, %v26, 0
    %vm45 = vcmask 1042432
    %v47 = vsel %vm45, %v27, 0
    %49 = vmatprep.subr.mxu0 0.0
    %50 = vmatpush1.msra.mxu0 %v47
    %51 = vmatprep.subr.mxu0 0.0
    %52 = vmatpush1.msra.mxu0 0.0
    %53 = vmatprep.subr.mxu0 0.0
    %54 = vmatpush1.msra.mxu0 0.0
    %55 = vmatprep.subr.mxu0 0.0
    %56 = vmatpush1.msra.mxu0 0.0
    %57 = vmatprep.subr.mxu0 0.0
    %58 = vmatpush1.msra.mxu0 0.0
    %59 = vmatprep.subr.mxu0 0.0
    %60 = vmatpush1.msra.mxu0 0.0
    %61 = vmatprep.subr.mxu0 0.0
    %62 = vmatpush1.msra.mxu0 0.0
    %63 = vmatprep.subr.mxu0 0.0
    %64 = vmatpush1.msra.mxu0 0.0
    %65 = vmatprep.subr.mxu0 0.0
    %66 = vmatpush1.msra.mxu0 0.0
    %67 = vmatprep.subr.mxu0 0.0
    %68 = vmatpush1.msra.mxu0 0.0
    %69 = vmatprep.subr.mxu0 0.0
    %70 = vmatpush1.msra.mxu0 0.0
    %71 = vmatprep.subr.mxu0 0.0
    %72 = vmatpush1.msra.mxu0 0.0
    %73 = vmatprep.subr.mxu0 0.0
    %74 = vmatpush1.msra.mxu0 0.0
    %75 = vmatprep.subr.mxu0 0.0
    %76 = vmatpush1.msra.mxu0 0.0
    %77 = vmatprep.subr.mxu0 0.0
    %78 = vmatpush1.msra.mxu0 0.0
    %79 = vmatprep.subr.mxu0 0.0
    %80 = vmatpush1.msra.mxu0 0.0
    %81 = vmatprep.subr.mxu0 0.0
    %82 = vmatpush1.msra.mxu0 0.0
    %83 = vmatprep.subr.mxu0 0.0
    %84 = vmatpush1.msra.mxu0 0.0
    %85 = vmatprep.subr.mxu0 0.0
    %86 = vmatpush1.msra.mxu0 0.0
    %87 = vmatprep.subr.mxu0 0.0
    %88 = vmatpush1.msra.mxu0 0.0
    %89 = vmatprep.subr.mxu0 0.0
    %90 = vmatpush1.msra.mxu0 0.0
    %91 = vmatprep.subr.mxu0 0.0
    %92 = vmatpush1.msra.mxu0 0.0
    %93 = vmatprep.subr.mxu0 0.0
    %94 = vmatpush1.msra.mxu0 0.0
    %95 = vmatprep.subr.mxu0 0.0
    %96 = vmatpush1.msra.mxu0 0.0
    %97 = vmatprep.subr.mxu0 0.0
    %98 = vmatpush1.msra.mxu0 0.0
    %99 = vmatprep.subr.mxu0 0.0
    %100 = vmatpush1.msra.mxu0 0.0
    %101 = vmatprep.subr.mxu0 0.0
    %102 = vmatpush1.msra.mxu0 0.0
    %103 = vmatprep.subr.mxu0 0.0
    %104 = vmatpush1.msra.mxu0 0.0
    %105 = vmatprep.subr.mxu0 0.0
    %106 = vmatpush1.msra.mxu0 0.0
    %107 = vmatprep.subr.mxu0 0.0
    %108 = vmatpush1.msra.mxu0 0.0
    %109 = vmatprep.subr.mxu0 0.0
    %110 = vmatpush1.msra.mxu0 0.0
    %111 = vmatprep.subr.mxu0 0.0
    %112 = vmatpush1.msra.mxu0 0.0
    %113 = vmatprep.mubr.f32.mxu0 0.0
    %114 = vmatmul.mubr.f32.gmra.mrb[0].mxu0 %v37
    %v115 = vpop.f32.mrb[0].mxu0
    %v116 = vadd.f32 %v33, %v115
    %v117 = vpop.f32.mrb[0].mxu0
    %118 = vmatprep.mubr.f32.mxu0 0.0
    %119 = vmatmul.mubr.f32.gmra.mrb[0].mxu0 %v40
    %v120 = vpop.f32.mrb[0].mxu0
    %v121 = vadd.f32 %v33, %v120
    %v122 = vpop.f32.mrb[0].mxu0
    %123 = vmatprep.mubr.f32.mxu0 0.0
    %124 = vmatmul.mubr.f32.gmra.mrb[0].mxu0 %v43
    %v125 = vpop.f32.mrb[0].mxu0
    %v126 = vadd.f32 %v33, %v125
    %v127 = vpop.f32.mrb[0].mxu0
    %128 = vdwg.mxu0
    %v129 = vmax.f32 %v116, 0.0
    %v130 = vmax.f32 %v121, 0.0
    %v131 = vmax.f32 %v126, 0.0
    %v132 = vld [vmem:[%s4] sm:$0xff]
    %v133 = vld [vmem:[%s4 + $0x8] sm:$0xff]
    %v134 = vld [vmem:[%s4 + $0x10] sm:$0xff]
    %v135 = vld [vmem:[%s4 + $0x18] sm:$0xff]
    %v136 = vld [vmem:[%s4 + $0x20] sm:$0xff]
    %v137 = vld [vmem:[%s4 + $0x28] sm:$0xff]
    %v138 = vld [vmem:[%s4 + $0x30] sm:$0xff]
    %v139 = vld [vmem:[%s4 + $0x38] sm:$0xff]
    %v140 = vld [vmem:[%s4 + $0x40] sm:$0xff]
    %v141 = vld [vmem:[%s4 + $0x48] sm:$0xff]
    %v142 = vld [vmem:[%s4 + $0x50] sm:$0xff]
    %v143 = vld [vmem:[%s4 + $0x58] sm:$0xff]
    %v144 = vld [vmem:[%s4 + $0x60] sm:$0xff]
    %v145 = vld [vmem:[%s4 + $0x68] sm:$0xff]
    %v146 = vld [vmem:[%s4 + $0x70] sm:$0xff]
    %v147 = vld [vmem:[%s4 + $0x78] sm:$0xff]
    %v148 = vld [vmem:[%s5] sm:$0x1]
    %v150 = vlaneseq
    %v151 = vshrl.u32 %v150, 7
    %v152 = vsub.s32 0, %v151
    %v153 = vrot.slane %v148, %v152
    %155 = vmatprep.subr.mxu0 0.0
    %156 = vmatpush1.msra.mxu0 %v132
    %157 = vmatprep.subr.mxu0 0.0
    %158 = vmatpush1.msra.mxu0 %v133
    %159 = vmatprep.subr.mxu0 0.0
    %160 = vmatpush1.msra.mxu0 %v134
    %161 = vmatprep.subr.mxu0 0.0
    %162 = vmatpush1.msra.mxu0 %v135
    %163 = vmatprep.subr.mxu0 0.0
    %164 = vmatpush1.msra.mxu0 %v136
    %165 = vmatprep.subr.mxu0 0.0
    %166 = vmatpush1.msra.mxu0 %v137
    %167 = vmatprep.subr.mxu0 0.0
    %168 = vmatpush1.msra.mxu0 %v138
    %169 = vmatprep.subr.mxu0 0.0
    %170 = vmatpush1.msra.mxu0 %v139
    %171 = vmatprep.subr.mxu0 0.0
    %172 = vmatpush1.msra.mxu0 %v140
    %173 = vmatprep.subr.mxu0 0.0
    %174 = vmatpush1.msra.mxu0 %v141
    %175 = vmatprep.subr.mxu0 0.0
    %176 = vmatpush1.msra.mxu0 %v142
    %177 = vmatprep.subr.mxu0 0.0
    %178 = vmatpush1.msra.mxu0 %v143
    %179 = vmatprep.subr.mxu0 0.0
    %180 = vmatpush1.msra.mxu0 %v144
    %181 = vmatprep.subr.mxu0 0.0
    %182 = vmatpush1.msra.mxu0 %v145
    %183 = vmatprep.subr.mxu0 0.0
    %184 = vmatpush1.msra.mxu0 %v146
    %185 = vmatprep.subr.mxu0 0.0
    %186 = vmatpush1.msra.mxu0 %v147
    %187 = vmatprep.subr.mxu0 0.0
    %188 = vmatpush1.msra.mxu0 0.0
    %189 = vmatprep.subr.mxu0 0.0
    %190 = vmatpush1.msra.mxu0 0.0
    %191 = vmatprep.subr.mxu0 0.0
    %192 = vmatpush1.msra.mxu0 0.0
    %193 = vmatprep.subr.mxu0 0.0
    %194 = vmatpush1.msra.mxu0 0.0
    %195 = vmatprep.subr.mxu0 0.0
    %196 = vmatpush1.msra.mxu0 0.0
    %197 = vmatprep.subr.mxu0 0.0
    %198 = vmatpush1.msra.mxu0 0.0
    %199 = vmatprep.subr.mxu0 0.0
    %200 = vmatpush1.msra.mxu0 0.0
    %201 = vmatprep.subr.mxu0 0.0
    %202 = vmatpush1.msra.mxu0 0.0
    %203 = vmatprep.subr.mxu0 0.0
    %204 = vmatpush1.msra.mxu0 0.0
    %205 = vmatprep.subr.mxu0 0.0
    %206 = vmatpush1.msra.mxu0 0.0
    %207 = vmatprep.subr.mxu0 0.0
    %208 = vmatpush1.msra.mxu0 0.0
    %209 = vmatprep.subr.mxu0 0.0
    %210 = vmatpush1.msra.mxu0 0.0
    %211 = vmatprep.subr.mxu0 0.0
    %212 = vmatpush1.msra.mxu0 0.0
    %213 = vmatprep.subr.mxu0 0.0
    %214 = vmatpush1.msra.mxu0 0.0
    %215 = vmatprep.subr.mxu0 0.0
    %216 = vmatpush1.msra.mxu0 0.0
    %217 = vmatprep.subr.mxu0 0.0
    %218 = vmatpush1.msra.mxu0 0.0
    %219 = vmatprep.mubr.f32.mxu0 0.0
    %220 = vmatmul.mubr.f32.gmra.mrb[0].mxu0 %v129
    %v221 = vpop.f32.mrb[0].mxu0
    %v222 = vadd.f32 %v153, %v221
    %v223 = vpop.f32.mrb[0].mxu0
    %224 = vmatprep.mubr.f32.mxu0 0.0
    %225 = vmatmul.mubr.f32.gmra.mrb[0].mxu0 %v130
    %v226 = vpop.f32.mrb[0].mxu0
    %v227 = vadd.f32 %v153, %v226
    %v228 = vpop.f32.mrb[0].mxu0
    %229 = vmatprep.mubr.f32.mxu0 0.0
    %230 = vmatmul.mubr.f32.gmra.mrb[0].mxu0 %v131
    %v231 = vpop.f32.mrb[0].mxu0
    %v232 = vadd.f32 %v153, %v231
    %v233 = vpop.f32.mrb[0].mxu0
    %234 = vdwg.mxu0
    %v235 = vld [vmem:[%s1] sm:$0xff]
    %v236 = vld [vmem:[%s1 + $0x8] sm:$0xff]
    %v237 = vld [vmem:[%s1 + $0x10] sm:$0xff]
    %v238 = vadd.f32 %v222, %v235
    %v239 = vadd.f32 %v227, %v236
    %v240 = vadd.f32 %v232, %v237
    %241 = vst [vmem:[#allocation2] sm:$0xff] %v238
    %242 = vst [vmem:[#allocation2 + $0x8] sm:$0xff] %v239
    %243 = vst [vmem:[#allocation2 + $0x10] sm:$0xff] %v240
    // Predicated region
    $region26: #{bwformer_forward.2} parent=1 // pred_check
      _
    $region27: #{bwformer_forward.2} parent=1 // pred_check_branch
      %245 = sbr.rel (0) target = $region29
    $region28: #{bwformer_forward.2} parent=1 // pred_region
      %s247 = ssub.s32 384, 384
      %248 = vsyncadd [#allocation3], %s247
      %s249 = sshll.u32 [#allocation2], 4
      %s250 = int_to_ptr.vmem [resolvable:$true] %s249
      %255 = dma.vmem_to_hbm [thread:$0]  %s250, 384, %s6, [#allocation3], 128, 128, 8
    $region29: #{bwformer_forward.2} parent=1 // pred_fallthru
      _
    // Predicated region
    $region30: #{bwformer_forward.2} parent=1 // pred_check
      _
    $region31: #{bwformer_forward.2} parent=1 // pred_check_branch
      %257 = sbr.rel (0) target = $region33
    $region32: #{bwformer_forward.2} parent=1 // pred_region
      %258 = dma.done [#allocation3], 384
    $region33: #{bwformer_forward.2} parent=1 // pred_fallthru
      _
    %259 = vsyncpa [#allocation3], 1

// kernel: bwformer_forward.3
$region0: #{bwformer_forward.3}
  #allocation0 [shape = 'u32[]', space=smem, size = 0x4, offset = 0x4, fixed_abs, tag = 'smem constant byte address 0x4 - core index']
  #allocation1 [shape = 'u32[144,128]{1,0:T(1,128)}', space=vmem, size = 0x12000, scoped, tag = 'internal scratch']
  #allocation2 [shape = 'f32[24,128]{1,0:T(8,128)}', space=vmem, size = 0x3000, scoped, tag = 'scratch operand']
  #allocation3 [shape = 'bf16[24,384]{1,0:T(8,128)(2,1)}', space=vmem, size = 0x4800, scoped, tag = 'scratch operand']
  #allocation4 [shape = 'bf16[24,128]{1,0:T(8,128)(2,1)}', space=vmem, size = 0x1800, scoped, tag = 'scratch operand']
  #allocation29 [shape = 's32[]', space=sflag, size = 0x4, offset = 0, fixed_abs, tag = 'sflag constant byte address 0x0 - dummy sync flag']
  #allocation30 [shape = 's32[]', space=sflag, size = 0x4, offset = 0, fixed_abs, tag = 'sflag constant byte address 0x0 - dummy sync flag']
  #allocation31 [shape = 'u32[]', space=smem, size = 0x4, offset = 0x44, fixed_abs, tag = 'smem constant byte address 0x44 - assertion arg 0']
  #allocation32 [shape = 'u32[]', space=smem, size = 0x4, offset = 0x48, fixed_abs, tag = 'smem constant byte address 0x48 - assertion arg 1']
  %s0 = inlined_call_operand.hbm [shape: f32[24,128], index: 0, kind: input, shape index: {}]
  %s1 = inlined_call_operand.hbm [shape: bf16[2,128,384], index: 1, kind: input, shape index: {}]
  %s2 = inlined_call_operand.hbm [shape: f32[2,1,384], index: 2, kind: input, shape index: {}]
  %s3 = inlined_call_operand.hbm [shape: bf16[2,128,128], index: 3, kind: input, shape index: {}]
  %s4 = inlined_call_operand.hbm [shape: f32[2,1,128], index: 4, kind: input, shape index: {}]
  %s5 = inlined_call_operand.hbm [shape: f32[2,1,128], index: 5, kind: input, shape index: {}]
  %s6 = inlined_call_operand.hbm [shape: f32[2,1,128], index: 6, kind: input, shape index: {}]
  %s7 = inlined_call_operand.hbm [shape: bf16[2,128,256], index: 7, kind: input, shape index: {}]
  %s8 = inlined_call_operand.hbm [shape: f32[2,1,256], index: 8, kind: input, shape index: {}]
  %s9 = inlined_call_operand.hbm [shape: bf16[2,256,128], index: 9, kind: input, shape index: {}]
  %s10 = inlined_call_operand.hbm [shape: f32[2,1,128], index: 10, kind: input, shape index: {}]
  %s11 = inlined_call_operand.hbm [shape: f32[2,1,128], index: 11, kind: input, shape index: {}]
  %s12 = inlined_call_operand.hbm [shape: f32[2,1,128], index: 12, kind: input, shape index: {}]
  %s13 = inlined_call_operand.hbm [shape: bf16[128,88], index: 13, kind: input, shape index: {}]
  %s14 = inlined_call_operand.hbm [shape: f32[1,88], index: 14, kind: input, shape index: {}]
  %s15 = inlined_call_operand.hbm [shape: f32[1,88], index: 15, kind: output, shape index: {}]
  %s16 = sld [smem:[#allocation0]]
  $region158: #{bwformer_forward.3} parent=0
    _
  %s18 = ssub.s32 1, %s16
  %s19 = scalar_select 0, %s18, %s16
  $region1: #{bwformer_forward.3} parent=0
    #allocation5 [shape = 'u8[196608]{0}', space=vmem, size = 0x30000, scoped, tag = 'input window, operand 1']
    #allocation6 [shape = 's32[2]{0}', space=sflag, size = 0x8, scoped, tag = 'scoped memory for bwformer_forward.3']
    #allocation7 [shape = 's32[2]{0}', space=sflag, size = 0x8, scoped, tag = 'scoped memory for bwformer_forward.3']
    #allocation8 [shape = 'u8[3072]{0}', space=vmem, size = 0xc00, scoped, tag = 'input window, operand 2, single buffered']
    #allocation9 [shape = 's32[1]{0}', space=sflag, size = 0x4, scoped, tag = 'scoped memory for bwformer_forward.3']
    #allocation10 [shape = 'u8[65536]{0}', space=vmem, size = 0x10000, scoped, tag = 'input window, operand 3']
    #allocation11 [shape = 'u8[1024]{0}', space=vmem, size = 0x400, scoped, tag = 'input window, operand 4, single buffered']
    #allocation12 [shape = 'u8[1024]{0}', space=vmem, size = 0x400, scoped, tag = 'input window, operand 5, single buffered']
    #allocation13 [shape = 's32[1]{0}', space=sflag, size = 0x4, scoped, tag = 'scoped memory for bwformer_forward.3']
    #allocation14 [shape = 'u8[1024]{0}', space=vmem, size = 0x400, scoped, tag = 'input window, operand 6, single buffered']
    #allocation15 [shape = 'u8[131072]{0}', space=vmem, size = 0x20000, scoped, tag = 'input window, operand 7']
    #allocation16 [shape = 's32[2]{0}', space=sflag, size = 0x8, scoped, tag = 'scoped memory for bwformer_forward.3']
    #allocation17 [shape = 'u8[2048]{0}', space=vmem, size = 0x800, scoped, tag = 'input window, operand 8, single buffered']
    #allocation18 [shape = 'u8[131072]{0}', space=vmem, size = 0x20000, scoped, tag = 'input window, operand 9']
    #allocation19 [shape = 's32[2]{0}', space=sflag, size = 0x8, scoped, tag = 'scoped memory for bwformer_forward.3']
    #allocation20 [shape = 'u8[1024]{0}', space=vmem, size = 0x400, scoped, tag = 'input window, operand 10, single buffered']
    #allocation21 [shape = 'u8[1024]{0}', space=vmem, size = 0x400, scoped, tag = 'input window, operand 11, single buffered']
    #allocation22 [shape = 's32[1]{0}', space=sflag, size = 0x4, scoped, tag = 'scoped memory for bwformer_forward.3']
    #allocation23 [shape = 'u8[1024]{0}', space=vmem, size = 0x400, scoped, tag = 'input window, operand 12, single buffered']
    #allocation24 [shape = 'u8[32768]{0}', space=vmem, size = 0x8000, scoped, tag = 'input window, operand 13, single buffered']
    #allocation25 [shape = 's32[1]{0}', space=sflag, size = 0x4, scoped, tag = 'scoped memory for bwformer_forward.3']
    #allocation26 [shape = 'u8[512]{0}', space=vmem, size = 0x400, scoped, tag = 'input window, operand 14, single buffered']
    #allocation27 [shape = 'u8[512]{0}', space=vmem, size = 0x400, scoped, tag = 'output window, operand 0, single buffered']
    %20 = vsyncpa [#allocation6], 0
    %s21 = scalar_lea.sflag [#allocation6], 1
    %22 = vsyncpa %s21, 0
    %23 = vsyncpa [#allocation9], 0
    %24 = vsyncpa [#allocation13], 0
    %25 = vsyncpa [#allocation16], 0
    %s26 = scalar_lea.sflag [#allocation16], 1
    %27 = vsyncpa %s26, 0
    %28 = vsyncpa [#allocation19], 0
    %s29 = scalar_lea.sflag [#allocation19], 1
    %30 = vsyncpa %s29, 0
    %31 = vsyncpa [#allocation22], 0
    %32 = vsyncpa [#allocation25], 0
    %33 = vsyncpa [#allocation7], 0
    loop: start=0, step=1, limit=4
    $region2: #{bwformer_forward.3} parent=1 // loop_pre_header
      _
    $region3: #{bwformer_forward.3} parent=1 // loop_header
      %s35 = sphi 0, %s39
      %p36 = scmp.ge.s32.totalorder %s35, 4
      %s45 = sphi 0, %s47
      %s48 = sphi 0, %s45
      %s49 = sphi 0, %s48
      %s65 = sphi 0, %s49
      %s69 = sphi 0, %s69
      %s71 = sphi 0, %s69
      %s72 = sphi 0, %s71
      %s86 = sphi 0, %s72
      %s92 = sphi 0, %s94
      %s95 = sphi 0, %s92
      %s96 = sphi 0, %s95
      %s112 = sphi 0, %s96
      %s116 = sphi 0, %s116
      %s118 = sphi 0, %s116
      %s119 = sphi 0, %s118
      %s133 = sphi 0, %s119
      %s137 = sphi 0, %s137
      %s139 = sphi 0, %s137
      %s140 = sphi 0, %s139
      %s154 = sphi 0, %s140
      %s158 = sphi 0, %s158
      %s160 = sphi 0, %s158
      %s161 = sphi 0, %s160
      %s175 = sphi 0, %s161
      %s181 = sphi 0, %s183
      %s184 = sphi 0, %s181
      %s185 = sphi 0, %s184
      %s201 = sphi 0, %s185
      %s205 = sphi 0, %s205
      %s207 = sphi 0, %s205
      %s208 = sphi 0, %s207
      %s222 = sphi 0, %s208
      %s228 = sphi 0, %s230
      %s231 = sphi 0, %s228
      %s232 = sphi 0, %s231
      %s248 = sphi 0, %s232
      %s252 = sphi 0, %s252
      %s254 = sphi 0, %s252
      %s255 = sphi 0, %s254
      %s269 = sphi 0, %s255
      %s273 = sphi 0, %s273
      %s275 = sphi 0, %s273
      %s276 = sphi 0, %s275
      %s290 = sphi 0, %s276
      %s294 = sphi 0, %s294
      %s296 = sphi 0, %s294
      %s297 = sphi 0, %s296
      %s311 = sphi 0, %s297
      %s315 = sphi 0, %s315
      %s317 = sphi 0, %s315
      %s318 = sphi 0, %s317
      %s332 = sphi 0, %s318
      %s336 = sphi 0, %s336
      %s338 = sphi 0, %s336
      %s339 = sphi 0, %s338
      %s353 = sphi 0, %s339
      %s357 = sphi 0, %s357
      %s359 = sphi 0, %s357
      %s360 = sphi 0, %s359
      %s374 = sphi 0, %s360
    $region4: #{bwformer_forward.3} parent=1 // loop_header_branch
      %38 = sbr.rel (%p36) target = $region8
    $region5: #{bwformer_forward.3} parent=1 // loop_body
      %s40 = ssub.s32 %s35, 1
      %s41 = ssub.s32 %s35, 2
      %s42 = sadd.s32 %s35, 1
      %s43 = ssub.s32 %s35, %s42
      %p44 = scmp.eq.s32.totalorder %s43, 0
      %s46 = sadd.s32 %s45, 1
      %s47 = scalar_select %p44, %s45, %s46
      %p50 = pneg %p44
      %p51 = scmp.eq.s32.totalorder %s35, 1
      %p52 = por %p50, %p51
      %p53 = scmp.ne.s32.totalorder %s45, %s48
      %p54 = scmp.eq.s32.totalorder %s35, 0
      %p55 = por %p53, %p54
      %p56 = scmp.ne.s32.totalorder %s45, %s48
      %p57 = scmp.eq.s32.totalorder %s40, 1
      %p58 = por %p56, %p57
      %p59 = scmp.ne.s32.totalorder %s48, %s49
      %p60 = scmp.eq.s32.totalorder %s40, 0
      %p61 = por %p59, %p60
      %p62 = scmp.ne.s32.totalorder %s48, %s49
      %p63 = scmp.eq.s32.totalorder %s41, 1
      %p64 = por %p62, %p63
      %p66 = scmp.ne.s32.totalorder %s49, %s65
      %p67 = scmp.eq.s32.totalorder %s41, 0
      %p68 = por %p66, %p67
      %s70 = sadd.s32 %s69, 1
      %p73 = scmp.eq.s32.totalorder %s35, 1
      %p74 = scmp.ne.s32.totalorder %s69, %s71
      %p75 = scmp.eq.s32.totalorder %s35, 0
      %p76 = por %p74, %p75
      %p77 = scmp.ne.s32.totalorder %s69, %s71
      %p78 = scmp.eq.s32.totalorder %s40, 1
      %p79 = por %p77, %p78
      %p80 = scmp.ne.s32.totalorder %s71, %s72
      %p81 = scmp.eq.s32.totalorder %s40, 0
      %p82 = por %p80, %p81
      %p83 = scmp.ne.s32.totalorder %s71, %s72
      %p84 = scmp.eq.s32.totalorder %s41, 1
      %p85 = por %p83, %p84
      %p87 = scmp.ne.s32.totalorder %s72, %s86
      %p88 = scmp.eq.s32.totalorder %s41, 0
      %p89 = por %p87, %p88
      %s90 = ssub.s32 %s35, %s42
      %p91 = scmp.eq.s32.totalorder %s90, 0
      %s93 = sadd.s32 %s92, 1
      %s94 = scalar_select %p91, %s92, %s93
      %p97 = pneg %p91
      %p98 = scmp.eq.s32.totalorder %s35, 1
      %p99 = por %p97, %p98
      %p100 = scmp.ne.s32.totalorder %s92, %s95
      %p101 = scmp.eq.s32.totalorder %s35, 0
      %p102 = por %p100, %p101
      %p103 = scmp.ne.s32.totalorder %s92, %s95
      %p104 = scmp.eq.s32.totalorder %s40, 1
      %p105 = por %p103, %p104
      %p106 = scmp.ne.s32.totalorder %s95, %s96
      %p107 = scmp.eq.s32.totalorder %s40, 0
      %p108 = por %p106, %p107
      %p109 = scmp.ne.s32.totalorder %s95, %s96
      %p110 = scmp.eq.s32.totalorder %s41, 1
      %p111 = por %p109, %p110
      %p113 = scmp.ne.s32.totalorder %s96, %s112
      %p114 = scmp.eq.s32.totalorder %s41, 0
      %p115 = por %p113, %p114
      %s117 = sadd.s32 %s116, 1
      %p120 = scmp.eq.s32.totalorder %s35, 1
      %p121 = scmp.ne.s32.totalorder %s116, %s118
      %p122 = scmp.eq.s32.totalorder %s35, 0
      %p123 = por %p121, %p122
      %p124 = scmp.ne.s32.totalorder %s116, %s118
      %p125 = scmp.eq.s32.totalorder %s40, 1
      %p126 = por %p124, %p125
      %p127 = scmp.ne.s32.totalorder %s118, %s119
      %p128 = scmp.eq.s32.totalorder %s40, 0
      %p129 = por %p127, %p128
      %p130 = scmp.ne.s32.totalorder %s118, %s119
      %p131 = scmp.eq.s32.totalorder %s41, 1
      %p132 = por %p130, %p131
      %p134 = scmp.ne.s32.totalorder %s119, %s133
      %p135 = scmp.eq.s32.totalorder %s41, 0
      %p136 = por %p134, %p135
      %s138 = sadd.s32 %s137, 1
      %p141 = scmp.eq.s32.totalorder %s35, 1
      %p142 = scmp.ne.s32.totalorder %s137, %s139
      %p143 = scmp.eq.s32.totalorder %s35, 0
      %p144 = por %p142, %p143
      %p145 = scmp.ne.s32.totalorder %s137, %s139
      %p146 = scmp.eq.s32.totalorder %s40, 1
      %p147 = por %p145, %p146
      %p148 = scmp.ne.s32.totalorder %s139, %s140
      %p149 = scmp.eq.s32.totalorder %s40, 0
      %p150 = por %p148, %p149
      %p151 = scmp.ne.s32.totalorder %s139, %s140
      %p152 = scmp.eq.s32.totalorder %s41, 1
      %p153 = por %p151, %p152
      %p155 = scmp.ne.s32.totalorder %s140, %s154
      %p156 = scmp.eq.s32.totalorder %s41, 0
      %p157 = por %p155, %p156
      %s159 = sadd.s32 %s158, 1
      %p162 = scmp.eq.s32.totalorder %s35, 1
      %p163 = scmp.ne.s32.totalorder %s158, %s160
      %p164 = scmp.eq.s32.totalorder %s35, 0
      %p165 = por %p163, %p164
      %p166 = scmp.ne.s32.totalorder %s158, %s160
      %p167 = scmp.eq.s32.totalorder %s40, 1
      %p168 = por %p166, %p167
      %p169 = scmp.ne.s32.totalorder %s160, %s161
      %p170 = scmp.eq.s32.totalorder %s40, 0
      %p171 = por %p169, %p170
      %p172 = scmp.ne.s32.totalorder %s160, %s161
      %p173 = scmp.eq.s32.totalorder %s41, 1
      %p174 = por %p172, %p173
      %p176 = scmp.ne.s32.totalorder %s161, %s175
      %p177 = scmp.eq.s32.totalorder %s41, 0
      %p178 = por %p176, %p177
      %s179 = ssub.s32 %s35, %s42
      %p180 = scmp.eq.s32.totalorder %s179, 0
      %s182 = sadd.s32 %s181, 1
      %s183 = scalar_select %p180, %s181, %s182
      %p186 = pneg %p180
      %p187 = scmp.eq.s32.totalorder %s35, 1
      %p188 = por %p186, %p187
      %p189 = scmp.ne.s32.totalorder %s181, %s184
      %p190 = scmp.eq.s32.totalorder %s35, 0
      %p191 = por %p189, %p190
      %p192 = scmp.ne.s32.totalorder %s181, %s184
      %p193 = scmp.eq.s32.totalorder %s40, 1
      %p194 = por %p192, %p193
      %p195 = scmp.ne.s32.totalorder %s184, %s185
      %p196 = scmp.eq.s32.totalorder %s40, 0
      %p197 = por %p195, %p196
      %p198 = scmp.ne.s32.totalorder %s184, %s185
      %p199 = scmp.eq.s32.totalorder %s41, 1
      %p200 = por %p198, %p199
      %p202 = scmp.ne.s32.totalorder %s185, %s201
      %p203 = scmp.eq.s32.totalorder %s41, 0
      %p204 = por %p202, %p203
      %s206 = sadd.s32 %s205, 1
      %p209 = scmp.eq.s32.totalorder %s35, 1
      %p210 = scmp.ne.s32.totalorder %s205, %s207
      %p211 = scmp.eq.s32.totalorder %s35, 0
      %p212 = por %p210, %p211
      %p213 = scmp.ne.s32.totalorder %s205, %s207
      %p214 = scmp.eq.s32.totalorder %s40, 1
      %p215 = por %p213, %p214
      %p216 = scmp.ne.s32.totalorder %s207, %s208
      %p217 = scmp.eq.s32.totalorder %s40, 0
      %p218 = por %p216, %p217
      %p219 = scmp.ne.s32.totalorder %s207, %s208
      %p220 = scmp.eq.s32.totalorder %s41, 1
      %p221 = por %p219, %p220
      %p223 = scmp.ne.s32.totalorder %s208, %s222
      %p224 = scmp.eq.s32.totalorder %s41, 0
      %p225 = por %p223, %p224
      %s226 = ssub.s32 %s35, %s42
      %p227 = scmp.eq.s32.totalorder %s226, 0
      %s229 = sadd.s32 %s228, 1
      %s230 = scalar_select %p227, %s228, %s229
      %p233 = pneg %p227
      %p234 = scmp.eq.s32.totalorder %s35, 1
      %p235 = por %p233, %p234
      %p236 = scmp.ne.s32.totalorder %s228, %s231
      %p237 = scmp.eq.s32.totalorder %s35, 0
      %p238 = por %p236, %p237
      %p239 = scmp.ne.s32.totalorder %s228, %s231
      %p240 = scmp.eq.s32.totalorder %s40, 1
      %p241 = por %p239, %p240
      %p242 = scmp.ne.s32.totalorder %s231, %s232
      %p243 = scmp.eq.s32.totalorder %s40, 0
      %p244 = por %p242, %p243
      %p245 = scmp.ne.s32.totalorder %s231, %s232
      %p246 = scmp.eq.s32.totalorder %s41, 1
      %p247 = por %p245, %p246
      %p249 = scmp.ne.s32.totalorder %s232, %s248
      %p250 = scmp.eq.s32.totalorder %s41, 0
      %p251 = por %p249, %p250
      %s253 = sadd.s32 %s252, 1
      %p256 = scmp.eq.s32.totalorder %s35, 1
      %p257 = scmp.ne.s32.totalorder %s252, %s254
      %p258 = scmp.eq.s32.totalorder %s35, 0
      %p259 = por %p257, %p258
      %p260 = scmp.ne.s32.totalorder %s252, %s254
      %p261 = scmp.eq.s32.totalorder %s40, 1
      %p262 = por %p260, %p261
      %p263 = scmp.ne.s32.totalorder %s254, %s255
      %p264 = scmp.eq.s32.totalorder %s40, 0
      %p265 = por %p263, %p264
      %p266 = scmp.ne.s32.totalorder %s254, %s255
      %p267 = scmp.eq.s32.totalorder %s41, 1
      %p268 = por %p266, %p267
      %p270 = scmp.ne.s32.totalorder %s255, %s269
      %p271 = scmp.eq.s32.totalorder %s41, 0
      %p272 = por %p270, %p271
      %s274 = sadd.s32 %s273, 1
      %p277 = scmp.eq.s32.totalorder %s35, 1
      %p278 = scmp.ne.s32.totalorder %s273, %s275
      %p279 = scmp.eq.s32.totalorder %s35, 0
      %p280 = por %p278, %p279
      %p281 = scmp.ne.s32.totalorder %s273, %s275
      %p282 = scmp.eq.s32.totalorder %s40, 1
      %p283 = por %p281, %p282
      %p284 = scmp.ne.s32.totalorder %s275, %s276
      %p285 = scmp.eq.s32.totalorder %s40, 0
      %p286 = por %p284, %p285
      %p287 = scmp.ne.s32.totalorder %s275, %s276
      %p288 = scmp.eq.s32.totalorder %s41, 1
      %p289 = por %p287, %p288
      %p291 = scmp.ne.s32.totalorder %s276, %s290
      %p292 = scmp.eq.s32.totalorder %s41, 0
      %p293 = por %p291, %p292
      %s295 = sadd.s32 %s294, 1
      %p298 = scmp.eq.s32.totalorder %s35, 1
      %p299 = scmp.ne.s32.totalorder %s294, %s296
      %p300 = scmp.eq.s32.totalorder %s35, 0
      %p301 = por %p299, %p300
      %p302 = scmp.ne.s32.totalorder %s294, %s296
      %p303 = scmp.eq.s32.totalorder %s40, 1
      %p304 = por %p302, %p303
      %p305 = scmp.ne.s32.totalorder %s296, %s297
      %p306 = scmp.eq.s32.totalorder %s40, 0
      %p307 = por %p305, %p306
      %p308 = scmp.ne.s32.totalorder %s296, %s297
      %p309 = scmp.eq.s32.totalorder %s41, 1
      %p310 = por %p308, %p309
      %p312 = scmp.ne.s32.totalorder %s297, %s311
      %p313 = scmp.eq.s32.totalorder %s41, 0
      %p314 = por %p312, %p313
      %s316 = sadd.s32 %s315, 1
      %p319 = scmp.eq.s32.totalorder %s35, 1
      %p320 = scmp.ne.s32.totalorder %s315, %s317
      %p321 = scmp.eq.s32.totalorder %s35, 0
      %p322 = por %p320, %p321
      %p323 = scmp.ne.s32.totalorder %s315, %s317
      %p324 = scmp.eq.s32.totalorder %s40, 1
      %p325 = por %p323, %p324
      %p326 = scmp.ne.s32.totalorder %s317, %s318
      %p327 = scmp.eq.s32.totalorder %s40, 0
      %p328 = por %p326, %p327
      %p329 = scmp.ne.s32.totalorder %s317, %s318
      %p330 = scmp.eq.s32.totalorder %s41, 1
      %p331 = por %p329, %p330
      %p333 = scmp.ne.s32.totalorder %s318, %s332
      %p334 = scmp.eq.s32.totalorder %s41, 0
      %p335 = por %p333, %p334
      %s337 = sadd.s32 %s336, 1
      %p340 = scmp.eq.s32.totalorder %s35, 1
      %p341 = scmp.ne.s32.totalorder %s336, %s338
      %p342 = scmp.eq.s32.totalorder %s35, 0
      %p343 = por %p341, %p342
      %p344 = scmp.ne.s32.totalorder %s336, %s338
      %p345 = scmp.eq.s32.totalorder %s40, 1
      %p346 = por %p344, %p345
      %p347 = scmp.ne.s32.totalorder %s338, %s339
      %p348 = scmp.eq.s32.totalorder %s40, 0
      %p349 = por %p347, %p348
      %p350 = scmp.ne.s32.totalorder %s338, %s339
      %p351 = scmp.eq.s32.totalorder %s41, 1
      %p352 = por %p350, %p351
      %p354 = scmp.ne.s32.totalorder %s339, %s353
      %p355 = scmp.eq.s32.totalorder %s41, 0
      %p356 = por %p354, %p355
      %s358 = sadd.s32 %s357, 1
      %p361 = scmp.eq.s32.totalorder %s35, 1
      %p362 = scmp.ne.s32.totalorder %s357, %s359
      %p363 = scmp.eq.s32.totalorder %s35, 0
      %p364 = por %p362, %p363
      %p365 = scmp.ne.s32.totalorder %s357, %s359
      %p366 = scmp.eq.s32.totalorder %s40, 1
      %p367 = por %p365, %p366
      %p368 = scmp.ne.s32.totalorder %s359, %s360
      %p369 = scmp.eq.s32.totalorder %s40, 0
      %p370 = por %p368, %p369
      %p371 = scmp.ne.s32.totalorder %s359, %s360
      %p372 = scmp.eq.s32.totalorder %s41, 1
      %p373 = por %p371, %p372
      %p375 = scmp.ne.s32.totalorder %s360, %s374
      %p376 = scmp.eq.s32.totalorder %s41, 0
      %p377 = por %p375, %p376
      %p378 = scmp.le.s32.totalorder 1, %s35
      %p379 = scmp.lt.s32.totalorder %s35, 3
      %p380 = pnand %p378, %p379
      %p381 = pneg %p380
      // Predicated region
      $region9: #{bwformer_forward.3} parent=5 // pred_check
        _
      $region10: #{bwformer_forward.3} parent=5 // pred_check_branch
        %383 = sbr.rel (%p380) target = $region12
      $region11: #{bwformer_forward.3} parent=5 // pred_region
        %s384 = ssub.s32 %s35, 1
        // Predicated region
        $region13: #{bwformer_forward.3} parent=11 // pred_check
          %p385 = pneg %p82
        $region14: #{bwformer_forward.3} parent=11 // pred_check_branch
          %387 = sbr.rel (%p385) target = $region16
        $region15: #{bwformer_forward.3} parent=11 // pred_region
          %s389 = ssub.s32 96, 96
          %390 = vsyncadd [#allocation9], %s389
          %s391 = sshll.u32 [#allocation8], 4
          %s392 = int_to_ptr.vmem [resolvable:$true] %s391
          %397 = dma.hbm_to_vmem [thread:$0]  %s2, 96, %s392, [#allocation9], 48, 48, 3
        $region16: #{bwformer_forward.3} parent=11 // pred_fallthru
          _
        // Predicated region
        $region17: #{bwformer_forward.3} parent=11 // pred_check
          %p398 = pneg %p129
        $region18: #{bwformer_forward.3} parent=11 // pred_check_branch
          %400 = sbr.rel (%p398) target = $region20
        $region19: #{bwformer_forward.3} parent=11 // pred_region
          %s402 = ssub.s32 32, 32
          %403 = vsyncadd [#allocation9], %s402
          %s404 = sshll.u32 [#allocation11], 4
          %s405 = int_to_ptr.vmem [resolvable:$true] %s404
          %410 = dma.hbm_to_vmem [thread:$0]  %s4, 32, %s405, [#allocation9], 16, 16, 1
        $region20: #{bwformer_forward.3} parent=11 // pred_fallthru
          _
        // Predicated region
        $region21: #{bwformer_forward.3} parent=11 // pred_check
          %p411 = pneg %p150
        $region22: #{bwformer_forward.3} parent=11 // pred_check_branch
          %413 = sbr.rel (%p411) target = $region24
        $region23: #{bwformer_forward.3} parent=11 // pred_region
          %s415 = ssub.s32 32, 32
          %416 = vsyncadd [#allocation13], %s415
          %s417 = sshll.u32 [#allocation12], 4
          %s418 = int_to_ptr.vmem [resolvable:$true] %s417
          %423 = dma.hbm_to_vmem [thread:$0]  %s5, 32, %s418, [#allocation13], 16, 16, 1
        $region24: #{bwformer_forward.3} parent=11 // pred_fallthru
          _
        // Predicated region
        $region25: #{bwformer_forward.3} parent=11 // pred_check
          %p424 = pneg %p171
        $region26: #{bwformer_forward.3} parent=11 // pred_check_branch
          %426 = sbr.rel (%p424) target = $region28
        $region27: #{bwformer_forward.3} parent=11 // pred_region
          %s428 = ssub.s32 32, 32
          %429 = vsyncadd [#allocation13], %s428
          %s430 = sshll.u32 [#allocation14], 4
          %s431 = int_to_ptr.vmem [resolvable:$true] %s430
          %436 = dma.hbm_to_vmem [thread:$0]  %s6, 32, %s431, [#allocation13], 16, 16, 1
        $region28: #{bwformer_forward.3} parent=11 // pred_fallthru
          _
        // Predicated region
        $region29: #{bwformer_forward.3} parent=11 // pred_check
          %p437 = pneg %p218
        $region30: #{bwformer_forward.3} parent=11 // pred_check_branch
          %439 = sbr.rel (%p437) target = $region32
        $region31: #{bwformer_forward.3} parent=11 // pred_region
          %s441 = ssub.s32 64, 64
          %442 = vsyncadd [#allocation16], %s441
          %s443 = sshll.u32 [#allocation17], 4
          %s444 = int_to_ptr.vmem [resolvable:$true] %s443
          %449 = dma.hbm_to_vmem [thread:$0]  %s8, 64, %s444, [#allocation16], 32, 32, 2
        $region32: #{bwformer_forward.3} parent=11 // pred_fallthru
          _
        // Predicated region
        $region33: #{bwformer_forward.3} parent=11 // pred_check
          %p450 = pneg %p265
        $region34: #{bwformer_forward.3} parent=11 // pred_check_branch
          %452 = sbr.rel (%p450) target = $region36
        $region35: #{bwformer_forward.3} parent=11 // pred_region
          %s454 = ssub.s32 32, 32
          %455 = vsyncadd [#allocation19], %s454
          %s456 = sshll.u32 [#allocation20], 4
          %s457 = int_to_ptr.vmem [resolvable:$true] %s456
          %462 = dma.hbm_to_vmem [thread:$0]  %s10, 32, %s457, [#allocation19], 16, 16, 1
        $region36: #{bwformer_forward.3} parent=11 // pred_fallthru
          _
        // Predicated region
        $region37: #{bwformer_forward.3} parent=11 // pred_check
          %p463 = pneg %p286
        $region38: #{bwformer_forward.3} parent=11 // pred_check_branch
          %465 = sbr.rel (%p463) target = $region40
        $region39: #{bwformer_forward.3} parent=11 // pred_region
          %s467 = ssub.s32 32, 32
          %468 = vsyncadd [#allocation22], %s467
          %s469 = sshll.u32 [#allocation21], 4
          %s470 = int_to_ptr.vmem [resolvable:$true] %s469
          %475 = dma.hbm_to_vmem [thread:$0]  %s11, 32, %s470, [#allocation22], 16, 16, 1
        $region40: #{bwformer_forward.3} parent=11 // pred_fallthru
          _
        // Predicated region
        $region41: #{bwformer_forward.3} parent=11 // pred_check
          %p476 = pneg %p307
        $region42: #{bwformer_forward.3} parent=11 // pred_check_branch
          %478 = sbr.rel (%p476) target = $region44
        $region43: #{bwformer_forward.3} parent=11 // pred_region
          %s480 = ssub.s32 32, 32
          %481 = vsyncadd [#allocation22], %s480
          %s482 = sshll.u32 [#allocation23], 4
          %s483 = int_to_ptr.vmem [resolvable:$true] %s482
          %488 = dma.hbm_to_vmem [thread:$0]  %s12, 32, %s483, [#allocation22], 16, 16, 1
        $region44: #{bwformer_forward.3} parent=11 // pred_fallthru
          _
        // Predicated region
        $region45: #{bwformer_forward.3} parent=11 // pred_check
          %p489 = pneg %p328
        $region46: #{bwformer_forward.3} parent=11 // pred_check_branch
          %491 = sbr.rel (%p489) target = $region48
        $region47: #{bwformer_forward.3} parent=11 // pred_region
          %s493 = ssub.s32 1024, 1024
          %494 = vsyncadd [#allocation25], %s493
          %s495 = sshll.u32 [#allocation24], 4
          %s496 = int_to_ptr.vmem [resolvable:$true] %s495
          %501 = dma.hbm_to_vmem [thread:$0]  %s13, 1024, %s496, [#allocation25], 64, 64, 4
        $region48: #{bwformer_forward.3} parent=11 // pred_fallthru
          _
        // Predicated region
        $region49: #{bwformer_forward.3} parent=11 // pred_check
          %p502 = pneg %p349
        $region50: #{bwformer_forward.3} parent=11 // pred_check_branch
          %504 = sbr.rel (%p502) target = $region52
        $region51: #{bwformer_forward.3} parent=11 // pred_region
          %s506 = ssub.s32 16, 16
          %507 = vsyncadd [#allocation25], %s506
          %s509 = sshll.u32 [#allocation26], 4
          %s510 = int_to_ptr.vmem [resolvable:$true] %s509
          %512 = dma.hbm_to_vmem [thread:$0]  %s14, 16, %s510, [#allocation25]
        $region52: #{bwformer_forward.3} parent=11 // pred_fallthru
          _
      $region12: #{bwformer_forward.3} parent=5 // pred_fallthru
        _
      %p513 = scmp.lt.s32.totalorder %s35, 2
      // Predicated region
      $region53: #{bwformer_forward.3} parent=5 // pred_check
        %p514 = pneg %p513
      $region54: #{bwformer_forward.3} parent=5 // pred_check_branch
        %516 = sbr.rel (%p514) target = $region56
      $region55: #{bwformer_forward.3} parent=5 // pred_region
        // Predicated region
        $region57: #{bwformer_forward.3} parent=55 // pred_check
          %p517 = pneg %p55
        $region58: #{bwformer_forward.3} parent=55 // pred_check_branch
          %519 = sbr.rel (%p517) target = $region60
        $region59: #{bwformer_forward.3} parent=55 // pred_region
          %s520 = sand.u32 %s35, 1
          %s521 = scalar_lea.sflag [#allocation6], %s520
          %s522 = sand.u32 %s45, 1
          %s523 = smul.addr %s522, 192
          %s524 = scalar_lea.vmem [#allocation5], %s523
          %s526 = ssub.s32 3072, 3072
          %527 = vsyncadd %s521, %s526
          %s528 = smul.addr %s35, 48
          %s529 = smul.addr %s528, 64
          %s530 = scalar_lea.hbm %s1, %s529
          %s531 = sshll.u32 %s524, 4
          %s532 = int_to_ptr.vmem [resolvable:$true] %s531
          %537 = dma.hbm_to_vmem [thread:$0]  %s530, 3072, %s532, %s521, 192, 192, 12
        $region60: #{bwformer_forward.3} parent=55 // pred_fallthru
          _
        // Predicated region
        $region61: #{bwformer_forward.3} parent=55 // pred_check
          %p538 = pneg %p102
        $region62: #{bwformer_forward.3} parent=55 // pred_check_branch
          %540 = sbr.rel (%p538) target = $region64
        $region63: #{bwformer_forward.3} parent=55 // pred_region
          %s541 = sand.u32 %s35, 1
          %s542 = scalar_lea.sflag [#allocation6], %s541
          %s543 = sand.u32 %s92, 1
          %s544 = smul.addr %s543, 64
          %s545 = scalar_lea.vmem [#allocation10], %s544
          %s547 = ssub.s32 1024, 1024
          %548 = vsyncadd %s542, %s547
          %s549 = smul.addr %s35, 16
          %s550 = smul.addr %s549, 64
          %s551 = scalar_lea.hbm %s3, %s550
          %s552 = sshll.u32 %s545, 4
          %s553 = int_to_ptr.vmem [resolvable:$true] %s552
          %558 = dma.hbm_to_vmem [thread:$0]  %s551, 1024, %s553, %s542, 64, 64, 4
        $region64: #{bwformer_forward.3} parent=55 // pred_fallthru
          _
        // Predicated region
        $region65: #{bwformer_forward.3} parent=55 // pred_check
          %p559 = pneg %p191
        $region66: #{bwformer_forward.3} parent=55 // pred_check_branch
          %561 = sbr.rel (%p559) target = $region68
        $region67: #{bwformer_forward.3} parent=55 // pred_region
          %s562 = sand.u32 %s35, 1
          %s563 = scalar_lea.sflag [#allocation16], %s562
          %s564 = sand.u32 %s181, 1
          %s565 = smul.addr %s564, 128
          %s566 = scalar_lea.vmem [#allocation15], %s565
          %s568 = ssub.s32 2048, 2048
          %569 = vsyncadd %s563, %s568
          %s570 = smul.addr %s35, 32
          %s571 = smul.addr %s570, 64
          %s572 = scalar_lea.hbm %s7, %s571
          %s573 = sshll.u32 %s566, 4
          %s574 = int_to_ptr.vmem [resolvable:$true] %s573
          %579 = dma.hbm_to_vmem [thread:$0]  %s572, 2048, %s574, %s563, 128, 128, 8
        $region68: #{bwformer_forward.3} parent=55 // pred_fallthru
          _
        // Predicated region
        $region69: #{bwformer_forward.3} parent=55 // pred_check
          %p580 = pneg %p238
        $region70: #{bwformer_forward.3} parent=55 // pred_check_branch
          %582 = sbr.rel (%p580) target = $region72
        $region71: #{bwformer_forward.3} parent=55 // pred_region
          %s583 = sand.u32 %s35, 1
          %s584 = scalar_lea.sflag [#allocation19], %s583
          %s585 = sand.u32 %s228, 1
          %s586 = smul.addr %s585, 128
          %s587 = scalar_lea.vmem [#allocation18], %s586
          %s589 = ssub.s32 2048, 2048
          %590 = vsyncadd %s584, %s589
          %s591 = smul.addr %s35, 32
          %s592 = smul.addr %s591, 64
          %s593 = scalar_lea.hbm %s9, %s592
          %s594 = sshll.u32 %s587, 4
          %s595 = int_to_ptr.vmem [resolvable:$true] %s594
          %600 = dma.hbm_to_vmem [thread:$0]  %s593, 2048, %s595, %s584, 64, 64, 4
        $region72: #{bwformer_forward.3} parent=55 // pred_fallthru
          _
      $region56: #{bwformer_forward.3} parent=5 // pred_fallthru
        _
      %p601 = scmp.le.s32.totalorder 1, %s35
      %p602 = scmp.lt.s32.totalorder %s35, 3
      %p603 = pnand %p601, %p602
      %p604 = pneg %p603
      // Predicated region
      $region73: #{bwformer_forward.3} parent=5 // pred_check
        _
      $region74: #{bwformer_forward.3} parent=5 // pred_check_branch
        %606 = sbr.rel (%p603) target = $region76
      $region75: #{bwformer_forward.3} parent=5 // pred_region
        %s607 = ssub.s32 %s35, 1
        %s608 = sand.u32 %s40, 1
        %s609 = scalar_lea.sflag [#allocation6], %s608
        %s610 = sand.u32 %s48, 1
        %s611 = smul.addr %s610, 192
        %s612 = scalar_lea.vmem [#allocation5], %s611
        // Predicated region
        $region77: #{bwformer_forward.3} parent=75 // pred_check
          %p613 = pneg %p61
        $region78: #{bwformer_forward.3} parent=75 // pred_check_branch
          %615 = sbr.rel (%p613) target = $region80
        $region79: #{bwformer_forward.3} parent=75 // pred_region
          %616 = dma.done %s609, 3072
        $region80: #{bwformer_forward.3} parent=75 // pred_fallthru
          _
        // Predicated region
        $region81: #{bwformer_forward.3} parent=75 // pred_check
          %p617 = pneg %p82
        $region82: #{bwformer_forward.3} parent=75 // pred_check_branch
          %619 = sbr.rel (%p617) target = $region84
        $region83: #{bwformer_forward.3} parent=75 // pred_region
          %620 = dma.done [#allocation9], 96
        $region84: #{bwformer_forward.3} parent=75 // pred_fallthru
          _
        %s621 = sand.u32 %s40, 1
        %s622 = scalar_lea.sflag [#allocation6], %s621
        %s623 = sand.u32 %s95, 1
        %s624 = smul.addr %s623, 64
        %s625 = scalar_lea.vmem [#allocation10], %s624
        // Predicated region
        $region85: #{bwformer_forward.3} parent=75 // pred_check
          %p626 = pneg %p108
        $region86: #{bwformer_forward.3} parent=75 // pred_check_branch
          %628 = sbr.rel (%p626) target = $region88
        $region87: #{bwformer_forward.3} parent=75 // pred_region
          %629 = dma.done %s622, 1024
        $region88: #{bwformer_forward.3} parent=75 // pred_fallthru
          _
        // Predicated region
        $region89: #{bwformer_forward.3} parent=75 // pred_check
          %p630 = pneg %p129
        $region90: #{bwformer_forward.3} parent=75 // pred_check_branch
          %632 = sbr.rel (%p630) target = $region92
        $region91: #{bwformer_forward.3} parent=75 // pred_region
          %633 = dma.done [#allocation9], 32
        $region92: #{bwformer_forward.3} parent=75 // pred_fallthru
          _
        // Predicated region
        $region93: #{bwformer_forward.3} parent=75 // pred_check
          %p634 = pneg %p150
        $region94: #{bwformer_forward.3} parent=75 // pred_check_branch
          %636 = sbr.rel (%p634) target = $region96
        $region95: #{bwformer_forward.3} parent=75 // pred_region
          %637 = dma.done [#allocation13], 32
        $region96: #{bwformer_forward.3} parent=75 // pred_fallthru
          _
        // Predicated region
        $region97: #{bwformer_forward.3} parent=75 // pred_check
          %p638 = pneg %p171
        $region98: #{bwformer_forward.3} parent=75 // pred_check_branch
          %640 = sbr.rel (%p638) target = $region100
        $region99: #{bwformer_forward.3} parent=75 // pred_region
          %641 = dma.done [#allocation13], 32
        $region100: #{bwformer_forward.3} parent=75 // pred_fallthru
          _
        %s642 = sand.u32 %s40, 1
        %s643 = scalar_lea.sflag [#allocation16], %s642
        %s644 = sand.u32 %s184, 1
        %s645 = smul.addr %s644, 128
        %s646 = scalar_lea.vmem [#allocation15], %s645
        // Predicated region
        $region101: #{bwformer_forward.3} parent=75 // pred_check
          %p647 = pneg %p197
        $region102: #{bwformer_forward.3} parent=75 // pred_check_branch
          %649 = sbr.rel (%p647) target = $region104
        $region103: #{bwformer_forward.3} parent=75 // pred_region
          %650 = dma.done %s643, 2048
        $region104: #{bwformer_forward.3} parent=75 // pred_fallthru
          _
        // Predicated region
        $region105: #{bwformer_forward.3} parent=75 // pred_check
          %p651 = pneg %p218
        $region106: #{bwformer_forward.3} parent=75 // pred_check_branch
          %653 = sbr.rel (%p651) target = $region108
        $region107: #{bwformer_forward.3} parent=75 // pred_region
          %654 = dma.done [#allocation16], 64
        $region108: #{bwformer_forward.3} parent=75 // pred_fallthru
          _
        %s655 = sand.u32 %s40, 1
        %s656 = scalar_lea.sflag [#allocation19], %s655
        %s657 = sand.u32 %s231, 1
        %s658 = smul.addr %s657, 128
        %s659 = scalar_lea.vmem [#allocation18], %s658
        // Predicated region
        $region109: #{bwformer_forward.3} parent=75 // pred_check
          %p660 = pneg %p244
        $region110: #{bwformer_forward.3} parent=75 // pred_check_branch
          %662 = sbr.rel (%p660) target = $region112
        $region111: #{bwformer_forward.3} parent=75 // pred_region
          %663 = dma.done %s656, 2048
        $region112: #{bwformer_forward.3} parent=75 // pred_fallthru
          _
        // Predicated region
        $region113: #{bwformer_forward.3} parent=75 // pred_check
          %p664 = pneg %p265
        $region114: #{bwformer_forward.3} parent=75 // pred_check_branch
          %666 = sbr.rel (%p664) target = $region116
        $region115: #{bwformer_forward.3} parent=75 // pred_region
          %667 = dma.done [#allocation19], 32
        $region116: #{bwformer_forward.3} parent=75 // pred_fallthru
          _
        // Predicated region
        $region117: #{bwformer_forward.3} parent=75 // pred_check
          %p668 = pneg %p286
        $region118: #{bwformer_forward.3} parent=75 // pred_check_branch
          %670 = sbr.rel (%p668) target = $region120
        $region119: #{bwformer_forward.3} parent=75 // pred_region
          %671 = dma.done [#allocation22], 32
        $region120: #{bwformer_forward.3} parent=75 // pred_fallthru
          _
        // Predicated region
        $region121: #{bwformer_forward.3} parent=75 // pred_check
          %p672 = pneg %p307
        $region122: #{bwformer_forward.3} parent=75 // pred_check_branch
          %674 = sbr.rel (%p672) target = $region124
        $region123: #{bwformer_forward.3} parent=75 // pred_region
          %675 = dma.done [#allocation22], 32
        $region124: #{bwformer_forward.3} parent=75 // pred_fallthru
          _
        // Predicated region
        $region125: #{bwformer_forward.3} parent=75 // pred_check
          %p676 = pneg %p328
        $region126: #{bwformer_forward.3} parent=75 // pred_check_branch
          %678 = sbr.rel (%p676) target = $region128
        $region127: #{bwformer_forward.3} parent=75 // pred_region
          %679 = dma.done [#allocation25], 1024
        $region128: #{bwformer_forward.3} parent=75 // pred_fallthru
          _
        // Predicated region
        $region129: #{bwformer_forward.3} parent=75 // pred_check
          %p680 = pneg %p349
        $region130: #{bwformer_forward.3} parent=75 // pred_check_branch
          %682 = sbr.rel (%p680) target = $region132
        $region131: #{bwformer_forward.3} parent=75 // pred_region
          %683 = dma.done [#allocation25], 16
        $region132: #{bwformer_forward.3} parent=75 // pred_fallthru
          _
        %s684 = sand.u32 %s40, 1
        %s685 = scalar_lea.sflag [#allocation6], %s684
        %s686 = sand.u32 %s48, 1
        %s687 = smul.addr %s686, 192
        %s688 = scalar_lea.vmem [#allocation5], %s687
        %p689 = pneg %p61
        %p690 = pneg %p58
        %p691 = pneg %p82
        %p692 = pneg %p79
        %s693 = sand.u32 %s40, 1
        %s694 = scalar_lea.sflag [#allocation6], %s693
        %s695 = sand.u32 %s95, 1
        %s696 = smul.addr %s695, 64
        %s697 = scalar_lea.vmem [#allocation10], %s696
        %p698 = pneg %p108
        %p699 = pneg %p105
        %p700 = pneg %p129
        %p701 = pneg %p126
        %p702 = pneg %p150
        %p703 = pneg %p147
        %p704 = pneg %p171
        %p705 = pneg %p168
        %s706 = sand.u32 %s40, 1
        %s707 = scalar_lea.sflag [#allocation16], %s706
        %s708 = sand.u32 %s184, 1
        %s709 = smul.addr %s708, 128
        %s710 = scalar_lea.vmem [#allocation15], %s709
        %p711 = pneg %p197
        %p712 = pneg %p194
        %p713 = pneg %p218
        %p714 = pneg %p215
        %s715 = sand.u32 %s40, 1
        %s716 = scalar_lea.sflag [#allocation19], %s715
        %s717 = sand.u32 %s231, 1
        %s718 = smul.addr %s717, 128
        %s719 = scalar_lea.vmem [#allocation18], %s718
        %p720 = pneg %p244
        %p721 = pneg %p241
        %p722 = pneg %p265
        %p723 = pneg %p262
        %p724 = pneg %p286
        %p725 = pneg %p283
        %p726 = pneg %p307
        %p727 = pneg %p304
        %p728 = pneg %p328
        %p729 = pneg %p325
        %p730 = pneg %p349
        %p731 = pneg %p346
        %p732 = pneg %p370
        %p733 = pneg %p367
        %p735 = scmp.eq.s32.totalorder %s40, 0
        // Predicated region
        $region133: #{bwformer_forward.3} parent=75 // pred_check
          %p736 = pneg %p735
        $region134: #{bwformer_forward.3} parent=75 // pred_check_branch
          %738 = sbr.rel (%p736) target = $region136
        $region135: #{bwformer_forward.3} parent=75 // pred_region
          $region137: #{bwformer_forward.3} parent=135
            #allocation28 [shape = 's32[1]{0}', space=sflag, size = 0x4, scoped, tag = 'scoped memory for bwformer_forward.3']
            // Predicated region
            $region138: #{bwformer_forward.3} parent=137 // pred_check
              _
            $region139: #{bwformer_forward.3} parent=137 // pred_check_branch
              %740 = sbr.rel target = $region141
            $region140: #{bwformer_forward.3} parent=137 // pred_region
              %741 = sst [smem:[#allocation31]] [#allocation30]
              %742 = sst [smem:[#allocation32]] [#allocation29]
            $region141: #{bwformer_forward.3} parent=137 // pred_fallthru
              _
            %744 = shalt.err (0)
            %s746 = sshll.u32 [#allocation2], 4
            %s747 = int_to_ptr.vmem [resolvable:$true] %s746
            %749 = dma.hbm_to_vmem [thread:$0]  %s0, 384, %s747, [#allocation28]
            %s750 = smul.u32 24, 1
            %s751 = sshll.u32 %s750, 4
            %752 = dma.done [#allocation28], %s751
        $region136: #{bwformer_forward.3} parent=75 // pred_fallthru
          _
        %v753 = vld [vmem:[#allocation2] sm:$0xff]
        %v754 = vld [vmem:[#allocation2 + $0x8] sm:$0xff]
        %v755 = vld [vmem:[#allocation2 + $0x10] sm:$0xff]
        %v756 = vpack.c.bf16 %v754, %v753
        %v757 = vpack.c.bf16 %v755, %v755
        %v758 = vld [vmem:[%s612] sm:$0xff]
        %v759 = vld [vmem:[%s612 + $0x8] sm:$0xf]
        %v760 = vld [vmem:[%s612 + $0xc] sm:$0xff]
        %v761 = vld [vmem:[%s612 + $0x14] sm:$0xf]
        %v762 = vld [vmem:[%s612 + $0x18] sm:$0xff]
        %v763 = vld [vmem:[%s612 + $0x20] sm:$0xf]
        %v764 = vld [vmem:[%s612 + $0x24] sm:$0xff]
        %v765 = vld [vmem:[%s612 + $0x2c] sm:$0xf]
        %v766 = vld [vmem:[%s612 + $0x30] sm:$0xff]
        %v767 = vld [vmem:[%s612 + $0x38] sm:$0xf]
        %v768 = vld [vmem:[%s612 + $0x3c] sm:$0xff]
        %v769 = vld [vmem:[%s612 + $0x44] sm:$0xf]
        %v770 = vld [vmem:[%s612 + $0x48] sm:$0xff]
        %v771 = vld [vmem:[%s612 + $0x50] sm:$0xf]
        %v772 = vld [vmem:[%s612 + $0x54] sm:$0xff]
        %v773 = vld [vmem:[%s612 + $0x5c] sm:$0xf]
        %v774 = vld [vmem:[%s612 + $0x60] sm:$0xff]
        %v775 = vld [vmem:[%s612 + $0x68] sm:$0xf]
        %v776 = vld [vmem:[%s612 + $0x6c] sm:$0xff]
        %v777 = vld [vmem:[%s612 + $0x74] sm:$0xf]
        %v778 = vld [vmem:[%s612 + $0x78] sm:$0xff]
        %v779 = vld [vmem:[%s612 + $0x80] sm:$0xf]
        %v780 = vld [vmem:[%s612 + $0x84] sm:$0xff]
        %v781 = vld [vmem:[%s612 + $0x8c] sm:$0xf]
        %v782 = vld [vmem:[%s612 + $0x90] sm:$0xff]
        %v783 = vld [vmem:[%s612 + $0x98] sm:$0xf]
        %v784 = vld [vmem:[%s612 + $0x9c] sm:$0xff]
        %v785 = vld [vmem:[%s612 + $0xa4] sm:$0xf]
        %v786 = vld [vmem:[%s612 + $0xa8] sm:$0xff]
        %v787 = vld [vmem:[%s612 + $0xb0] sm:$0xf]
        %v788 = vld [vmem:[%s612 + $0xb4] sm:$0xff]
        %v789 = vld [vmem:[%s612 + $0xbc] sm:$0xf]
        %s790 = smul.u32 %s40, 3
        %s791 = scalar_lea.vmem [#allocation8], %s790
        %v792 = vld [vmem:[%s791] sm:$0x7]
        %v794 = vlaneseq
        %v795 = vshrl.u32 %v794, 7
        %v796 = vsub.s32 0, %v795
        %v797 = vrot.slane %v792, %v796
        %v798 = vlaneseq
        %v799 = vshrl.u32 %v798, 7
        %v800 = vsub.s32 1, %v799
        %v801 = vrot.slane %v792, %v800
        %v802 = vlaneseq
        %v803 = vshrl.u32 %v802, 7
        %v804 = vsub.s32 2, %v803
        %v805 = vrot.slane %v792, %v804
        %v841 = vunpack.c.l.b16 %v758
        %v842 = vunpack.c.h.b16 %v758
        %v843 = vunpack.c.l.b16 %v759
        %v844 = vunpack.c.l.b16 %v760
        %v845 = vunpack.c.h.b16 %v760
        %v846 = vunpack.c.l.b16 %v761
        %v847 = vunpack.c.l.b16 %v762
        %v848 = vunpack.c.h.b16 %v762
        %v849 = vunpack.c.l.b16 %v763
        %v850 = vunpack.c.l.b16 %v764
        %v851 = vunpack.c.h.b16 %v764
        %v852 = vunpack.c.l.b16 %v765
        %v853 = vunpack.c.l.b16 %v766
        %v854 = vunpack.c.h.b16 %v766
        %v855 = vunpack.c.l.b16 %v767
        %v856 = vunpack.c.l.b16 %v768
        %v857 = vunpack.c.h.b16 %v768
        %v858 = vunpack.c.l.b16 %v769
        %v859 = vunpack.c.l.b16 %v770
        %v860 = vunpack.c.h.b16 %v770
        %v861 = vunpack.c.l.b16 %v771
        %v862 = vunpack.c.l.b16 %v772
        %v863 = vunpack.c.h.b16 %v772
        %v864 = vunpack.c.l.b16 %v773
        %v865 = vunpack.c.l.b16 %v774
        %v866 = vunpack.c.h.b16 %v774
        %v867 = vunpack.c.l.b16 %v775
        %v868 = vunpack.c.l.b16 %v776
        %v869 = vunpack.c.h.b16 %v776
        %v870 = vunpack.c.l.b16 %v777
        %v871 = vunpack.c.l.b16 %v778
        %v872 = vunpack.c.h.b16 %v778
        %v873 = vunpack.c.l.b16 %v779
        %v874 = vunpack.c.l.b16 %v780
        %v875 = vunpack.c.h.b16 %v780
        %v876 = vunpack.c.l.b16 %v781
        %v877 = vunpack.c.l.b16 %v782
        %v878 = vunpack.c.h.b16 %v782
        %v879 = vunpack.c.l.b16 %v783
        %v880 = vunpack.c.l.b16 %v784
        %v881 = vunpack.c.h.b16 %v784
        %v882 = vunpack.c.l.b16 %v785
        %v883 = vunpack.c.l.b16 %v786
        %v884 = vunpack.c.h.b16 %v786
        %v885 = vunpack.c.l.b16 %v787
        %v886 = vunpack.c.l.b16 %v788
        %v887 = vunpack.c.h.b16 %v788
        %v888 = vunpack.c.l.b16 %v789
        %v889 = vpack.c.b16 %v844, %v841
        %v890 = vpack.c.b16 %v845, %v842
        %v891 = vpack.c.b16 %v846, %v843
        %v892 = vpack.c.b16 %v850, %v847
        %v893 = vpack.c.b16 %v851, %v848
        %v894 = vpack.c.b16 %v852, %v849
        %v895 = vpack.c.b16 %v856, %v853
        %v896 = vpack.c.b16 %v857, %v854
        %v897 = vpack.c.b16 %v858, %v855
        %v898 = vpack.c.b16 %v862, %v859
        %v899 = vpack.c.b16 %v863, %v860
        %v900 = vpack.c.b16 %v864, %v861
        %v901 = vpack.c.b16 %v868, %v865
        %v902 = vpack.c.b16 %v869, %v866
        %v903 = vpack.c.b16 %v870, %v867
        %v904 = vpack.c.b16 %v874, %v871
        %v905 = vpack.c.b16 %v875, %v872
        %v906 = vpack.c.b16 %v876, %v873
        %v907 = vpack.c.b16 %v880, %v877
        %v908 = vpack.c.b16 %v881, %v878
        %v909 = vpack.c.b16 %v882, %v879
        %v910 = vpack.c.b16 %v886, %v883
        %v911 = vpack.c.b16 %v887, %v884
        %v912 = vpack.c.b16 %v888, %v885
        %937 = vmatprep.subr.bf16.mxu0 %v890
        %938 = vmatpush1.bf16.msra.mxu0 %v889
        %939 = vmatprep.subr.bf16.mxu0 %v893
        %940 = vmatpush1.bf16.msra.mxu0 %v892
        %941 = vmatprep.subr.bf16.mxu0 %v896
        %942 = vmatpush1.bf16.msra.mxu0 %v895
        %943 = vmatprep.subr.bf16.mxu0 %v899
        %944 = vmatpush1.bf16.msra.mxu0 %v898
        %945 = vmatprep.subr.bf16.mxu0 %v902
        %946 = vmatpush1.bf16.msra.mxu0 %v901
        %947 = vmatprep.subr.bf16.mxu0 %v905
        %948 = vmatpush1.bf16.msra.mxu0 %v904
        %949 = vmatprep.subr.bf16.mxu0 %v908
        %950 = vmatpush1.bf16.msra.mxu0 %v907
        %951 = vmatprep.subr.bf16.mxu0 %v911
        %952 = vmatpush1.bf16.msra.mxu0 %v910
        %953 = vmatprep.subr.bf16.mxu0 0
        %954 = vmatpush1.bf16.msra.mxu0 0
        %955 = vmatprep.subr.bf16.mxu0 0
        %956 = vmatpush1.bf16.msra.mxu0 0
        %957 = vmatprep.subr.bf16.mxu0 0
        %958 = vmatpush1.bf16.msra.mxu0 0
        %959 = vmatprep.subr.bf16.mxu0 0
        %960 = vmatpush1.bf16.msra.mxu0 0
        %961 = vmatprep.subr.bf16.mxu0 0
        %962 = vmatpush1.bf16.msra.mxu0 0
        %963 = vmatprep.subr.bf16.mxu0 0
        %964 = vmatpush1.bf16.msra.mxu0 0
        %965 = vmatprep.subr.bf16.mxu0 0
        %966 = vmatpush1.bf16.msra.mxu0 0
        %967 = vmatprep.subr.bf16.mxu0 0
        %968 = vmatpush1.bf16.msra.mxu0 0
        %969 = vmatprep.mubr.bf16.mxu0 0
        %970 = vmatmul.mubr.bf16.gmra.mrb[0].mxu0 %v756
        %v971 = vpop.f32.mrb[0].mxu0
        %v972 = vadd.f32 %v797, %v971
        %v973 = vpop.f32.mrb[0].mxu0
        %v974 = vadd.f32 %v801, %v973
        %v975 = vpop.f32.mrb[0].mxu0
        %v976 = vadd.f32 %v797, %v975
        %v977 = vpop.f32.mrb[0].mxu0
        %v978 = vadd.f32 %v801, %v977
        %979 = vmatprep.mubr.bf16.mxu0 0
        %980 = vmatmul.mubr.bf16.gmra.mrb[0].mxu0 %v757
        %v981 = vpop.f32.mrb[0].mxu0
        %v982 = vadd.f32 %v797, %v981
        %v983 = vpop.f32.mrb[0].mxu0
        %v984 = vadd.f32 %v801, %v983
        %v985 = vpop.f32.mrb[0].mxu0
        %v986 = vpop.f32.mrb[0].mxu0
        %987 = vdwg.mxu0
        %988 = vmatprep.subr.bf16.mxu0 0
        %989 = vmatpush1.bf16.msra.mxu0 %v891
        %990 = vmatprep.subr.bf16.mxu0 0
        %991 = vmatpush1.bf16.msra.mxu0 %v894
        %992 = vmatprep.subr.bf16.mxu0 0
        %993 = vmatpush1.bf16.msra.mxu0 %v897
        %994 = vmatprep.subr.bf16.mxu0 0
        %995 = vmatpush1.bf16.msra.mxu0 %v900
        %996 = vmatprep.subr.bf16.mxu0 0
        %997 = vmatpush1.bf16.msra.mxu0 %v903
        %998 = vmatprep.subr.bf16.mxu0 0
        %999 = vmatpush1.bf16.msra.mxu0 %v906
        %1000 = vmatprep.subr.bf16.mxu0 0
        %1001 = vmatpush1.bf16.msra.mxu0 %v909
        %1002 = vmatprep.subr.bf16.mxu0 0
        %1003 = vmatpush1.bf16.msra.mxu0 %v912
        %1004 = vmatprep.subr.bf16.mxu0 0
        %1005 = vmatpush1.bf16.msra.mxu0 0
        %1006 = vmatprep.subr.bf16.mxu0 0
        %1007 = vmatpush1.bf16.msra.mxu0 0
        %1008 = vmatprep.subr.bf16.mxu0 0
        %1009 = vmatpush1.bf16.msra.mxu0 0
        %1010 = vmatprep.subr.bf16.mxu0 0
        %1011 = vmatpush1.bf16.msra.mxu0 0
        %1012 = vmatprep.subr.bf16.mxu0 0
        %1013 = vmatpush1.bf16.msra.mxu0 0
        %1014 = vmatprep.subr.bf16.mxu0 0
        %1015 = vmatpush1.bf16.msra.mxu0 0
        %1016 = vmatprep.subr.bf16.mxu0 0
        %1017 = vmatpush1.bf16.msra.mxu0 0
        %1018 = vmatprep.subr.bf16.mxu0 0
        %1019 = vmatpush1.bf16.msra.mxu0 0
        %1020 = vmatprep.mubr.bf16.mxu0 0
        %1021 = vmatmul.mubr.bf16.gmra.mrb[0].mxu0 %v756
        %v1022 = vpop.f32.mrb[0].mxu0
        %v1023 = vadd.f32 %v805, %v1022
        %v1024 = vpop.f32.mrb[0].mxu0
        %v1025 = vpop.f32.mrb[0].mxu0
        %v1026 = vadd.f32 %v805, %v1025
        %v1027 = vpop.f32.mrb[0].mxu0
        %1028 = vmatprep.mubr.bf16.mxu0 0
        %1029 = vmatmul.mubr.bf16.gmra.mrb[0].mxu0 %v757
        %v1030 = vpop.f32.mrb[0].mxu0
        %v1031 = vadd.f32 %v805, %v1030
        %v1032 = vpop.f32.mrb[0].mxu0
        %v1033 = vpop.f32.mrb[0].mxu0
        %v1034 = vpop.f32.mrb[0].mxu0
        %1035 = vdwg.mxu0
        %v1036 = vmul.f32 %v972, 0.17677669
        %v1037 = vmul.f32 %v976, 0.17677669
        %v1038 = vmul.f32 %v982, 0.17677669
        %v1039 = vpack.c.bf16 %v1037, %v1036
        %v1040 = vpack.c.bf16 %v1038, %v1038
        %v1043 = vunpack.c.l.b16 %v1039
        %v1044 = vunpack.c.h.b16 %v1039
        %v1045 = vunpack.c.l.b16 %v1040
        %v1046 = vpack.c.b16 %v1043, %v1043
        %v1047 = vpack.c.b16 %v1044, %v1044
        %v1048 = vpack.c.b16 %v1045, %v1045
        %1052 = vst [vmem:[#allocation3] sm:$0xf] %v1046
        %1053 = vst [vmem:[#allocation3 + $0xc] sm:$0xf] %v1047
        %1054 = vst [vmem:[#allocation3 + $0x18] sm:$0xf] %v1048
        %v1055 = vpack.c.bf16 %v978, %v974
        %v1056 = vpack.c.bf16 %v1026, %v1023
        %v1057 = vpack.c.bf16 %v984, %v984
        %v1058 = vpack.c.bf16 %v1031, %v1031
        %v1063 = vunpack.c.l.b16 %v1055
        %v1064 = vunpack.c.l.b16 %v1056
        %v1065 = vunpack.c.h.b16 %v1055
        %v1066 = vunpack.c.h.b16 %v1056
        %v1067 = vunpack.c.l.b16 %v1057
        %v1068 = vunpack.c.l.b16 %v1058
        %v1069 = vpack.c.b16 %v1064, %v1063
        %v1070 = vpack.c.b16 %v1066, %v1065
        %v1071 = vpack.c.b16 %v1068, %v1067
        %1075 = vst [vmem:[#allocation3 + $0x4] sm:$0xff] %v1069
        %1076 = vst [vmem:[#allocation3 + $0x10] sm:$0xff] %v1070
        %1077 = vst [vmem:[#allocation3 + $0x1c] sm:$0xff] %v1071
        %s1078 = smul.u32 0, 3
        %s1079 = smul.addr %s1078, 4
        %s1080 = scalar_lea.vmem [#allocation3], %s1079
        %v1081 = vld [vmem:[%s1080] sm:$0xf]
        %v1082 = vld [vmem:[%s1080 + $0xc] sm:$0xf]
        %v1083 = vld [vmem:[%s1080 + $0x18] sm:$0xf]
        %v1084 = vld [vmem:[%s1080 + $0x4] sm:$0xf]
        %v1085 = vld [vmem:[%s1080 + $0x10] sm:$0xf]
        %v1086 = vld [vmem:[%s1080 + $0x1c] sm:$0xf]
        %v1087 = vld [vmem:[%s1080 + $0x8] sm:$0xf]
        %v1088 = vld [vmem:[%s1080 + $0x14] sm:$0xf]
        %v1089 = vld [vmem:[%s1080 + $0x20] sm:$0xf]
        %v1093 = vunpack.c.l.b16 %v1081
        %v1094 = vunpack.c.l.b16 %v1082
        %v1095 = vunpack.c.l.b16 %v1083
        %v1096 = vpack.c.b16 %v1094, %v1093
        %v1097 = vpack.c.b16 %v1095, %v1095
        %v1101 = vunpack.c.l.b16 %v1084
        %v1102 = vunpack.c.l.b16 %v1085
        %v1103 = vunpack.c.l.b16 %v1086
        %v1104 = vpack.c.b16 %v1102, %v1101
        %v1105 = vpack.c.b16 %v1103, %v1103
        %vm1106 = vcmask 261120
        %v1108 = vsel %vm1106, %v1096, 0
        %v1111 = vsel %vm1106, %v1097, 0
        %v1114 = vsel %vm1106, %v1104, 0
        %v1117 = vsel %vm1106, %v1105, 0
        %1119 = vmatprep.subr.bf16.mxu0 0
        %1120 = vmatpush1.bf16.xpose.msra.mxu0 %v1114
        %1121 = vmatprep.subr.bf16.mxu0 0
        %1122 = vmatpush1.bf16.xpose.msra.mxu0 %v1117
        %1123 = vmatprep.subr.bf16.mxu0 0
        %1124 = vmatpush1.bf16.xpose.msra.mxu0 0
        %1125 = vmatprep.subr.bf16.mxu0 0
        %1126 = vmatpush1.bf16.xpose.msra.mxu0 0
        %1127 = vmatprep.subr.bf16.mxu0 0
        %1128 = vmatpush1.bf16.xpose.msra.mxu0 0
        %1129 = vmatprep.subr.bf16.mxu0 0
        %1130 = vmatpush1.bf16.xpose.msra.mxu0 0
        %1131 = vmatprep.subr.bf16.mxu0 0
        %1132 = vmatpush1.bf16.xpose.msra.mxu0 0
        %1133 = vmatprep.subr.bf16.mxu0 0
        %1134 = vmatpush1.bf16.xpose.msra.mxu0 0
        %1135 = vmatprep.subr.bf16.mxu0 0
        %1136 = vmatpush1.bf16.xpose.msra.mxu0 0
        %1137 = vmatprep.subr.bf16.mxu0 0
        %1138 = vmatpush1.bf16.xpose.msra.mxu0 0
        %1139 = vmatprep.subr.bf16.mxu0 0
        %1140 = vmatpush1.bf16.xpose.msra.mxu0 0
        %1141 = vmatprep.subr.bf16.mxu0 0
        %1142 = vmatpush1.bf16.xpose.msra.mxu0 0
        %1143 = vmatprep.subr.bf16.mxu0 0
        %1144 = vmatpush1.bf16.xpose.msra.mxu0 0
        %1145 = vmatprep.subr.bf16.mxu0 0
        %1146 = vmatpush1.bf16.xpose.msra.mxu0 0
        %1147 = vmatprep.subr.bf16.mxu0 0
        %1148 = vmatpush1.bf16.xpose.msra.mxu0 0
        %1149 = vmatprep.subr.bf16.mxu0 0
        %1150 = vmatpush1.bf16.xpose.msra.mxu0 0
        %1151 = vmatprep.mubr.bf16.mxu0 0
        %1152 = vmatmul.mubr.bf16.gmra.mrb[0].mxu0 %v1108
        %v1153 = vpop.f32.mrb[0].mxu0
        %v1154 = vadd.f32 0.0, %v1153
        %v1155 = vpop.f32.mrb[0].mxu0
        %v1156 = vpop.f32.mrb[0].mxu0
        %v1157 = vadd.f32 0.0, %v1156
        %v1158 = vpop.f32.mrb[0].mxu0
        %1159 = vmatprep.mubr.bf16.mxu0 0
        %1160 = vmatmul.mubr.bf16.gmra.mrb[0].mxu0 %v1111
        %v1161 = vpop.f32.mrb[0].mxu0
        %v1162 = vadd.f32 0.0, %v1161
        %v1163 = vpop.f32.mrb[0].mxu0
        %v1164 = vpop.f32.mrb[0].mxu0
        %v1165 = vpop.f32.mrb[0].mxu0
        %1166 = vdwg.mxu0
        %v1167 = vlaneseq
        %v1168 = vand.u32 %v1167, 127
        %v1169 = vstv 0
        %v1170 = vadd.s32 %v1169, %v1168
        %vm1171 = vcmp.lt.s32.totalorder %v1170, 20
        %v1172 = vsel %vm1171, %v1154, -1e+30
        %v1173 = vsel %vm1171, %v1157, -1e+30
        %v1174 = vsel %vm1171, %v1162, -1e+30
        %vm1175 = vcmask 195584
        %v1176 = vsel %vm1175, %v1172, -inf
        %1177 = vmax.xlane.f32.xlu0 %v1176
        %v1178 = vpop.xlane.xlu0 %1177
        %v1179 = vsel %vm1175, %v1173, -inf
        %1180 = vmax.xlane.f32.xlu0 %v1179
        %v1181 = vpop.xlane.xlu0 %1180
        %v1182 = vsel %vm1175, %v1174, -inf
        %1183 = vmax.xlane.f32.xlu0 %v1182
        %v1184 = vpop.xlane.xlu0 %1183
        %v1185 = vmax.f32 %v1178, -1e+30
        %v1186 = vmax.f32 %v1181, -1e+30
        %v1187 = vmax.f32 %v1184, -1e+30
        %v1188 = vsub.f32 -1e+30, %v1185
        %v1189 = vsub.f32 -1e+30, %v1186
        %v1190 = vsub.f32 -1e+30, %v1187
        %v1191 = vmul.f32 %v1188, 1.442695
        %v1192 = vpow.pop %v1191
        %v1193 = vmul.f32 %v1189, 1.442695
        %v1194 = vpow.pop %v1193
        %v1195 = vmul.f32 %v1190, 1.442695
        %v1196 = vpow.pop %v1195
        %v1197 = vsub.f32 %v1172, %v1185
        %v1198 = vsub.f32 %v1173, %v1186
        %v1199 = vsub.f32 %v1174, %v1187
        %v1200 = vmul.f32 %v1197, 1.442695
        %v1201 = vpow.pop %v1200
        %v1202 = vmul.f32 %v1198, 1.442695
        %v1203 = vpow.pop %v1202
        %v1204 = vmul.f32 %v1199, 1.442695
        %v1205 = vpow.pop %v1204
        %v1206 = vmul.f32 %v1192, 0.0
        %v1207 = vmul.f32 %v1194, 0.0
        %v1208 = vmul.f32 %v1196, 0.0
        %v1209 = vsel %vm1175, %v1201, 0.0
        %1210 = vadd.xlane.f32.xlu0 %v1209
        %v1211 = vpop.xlane.xlu0 %1210
        %v1212 = vsel %vm1175, %v1203, 0.0
        %1213 = vadd.xlane.f32.xlu0 %v1212
        %v1214 = vpop.xlane.xlu0 %1213
        %v1215 = vsel %vm1175, %v1205, 0.0
        %1216 = vadd.xlane.f32.xlu0 %v1215
        %v1217 = vpop.xlane.xlu0 %1216
        %v1218 = vadd.f32 %v1206, %v1211
        %v1219 = vadd.f32 %v1207, %v1214
        %v1220 = vadd.f32 %v1208, %v1217
        %v1221 = vpack.c.bf16 %v1203, %v1201
        %v1222 = vpack.c.bf16 %v1205, %v1205
        %v1226 = vunpack.c.l.b16 %v1087
        %v1227 = vunpack.c.l.b16 %v1088
        %v1228 = vunpack.c.l.b16 %v1089
        %v1229 = vpack.c.b16 %v1227, %v1226
        %v1230 = vpack.c.b16 %v1228, %v1228
        %v1233 = vsel %vm1175, %v1221, 0
        %v1236 = vsel %vm1175, %v1222, 0
        %vm1238 = vcmask 1043456
        %v1240 = vsel %vm1238, %v1230, 0
        %1242 = vmatprep.subr.bf16.mxu0 0
        %1243 = vmatpush1.bf16.msra.mxu0 %v1229
        %1244 = vmatprep.subr.bf16.mxu0 0
        %1245 = vmatpush1.bf16.msra.mxu0 %v1240
        %1246 = vmatprep.subr.bf16.mxu0 0
        %1247 = vmatpush1.bf16.msra.mxu0 0
        %1248 = vmatprep.subr.bf16.mxu0 0
        %1249 = vmatpush1.bf16.msra.mxu0 0
        %1250 = vmatprep.subr.bf16.mxu0 0
        %1251 = vmatpush1.bf16.msra.mxu0 0
        %1252 = vmatprep.subr.bf16.mxu0 0
        %1253 = vmatpush1.bf16.msra.mxu0 0
        %1254 = vmatprep.subr.bf16.mxu0 0
        %1255 = vmatpush1.bf16.msra.mxu0 0
        %1256 = vmatprep.subr.bf16.mxu0 0
        %1257 = vmatpush1.bf16.msra.mxu0 0
        %1258 = vmatprep.subr.bf16.mxu0 0
        %1259 = vmatpush1.bf16.msra.mxu0 0
        %1260 = vmatprep.subr.bf16.mxu0 0
        %1261 = vmatpush1.bf16.msra.mxu0 0
        %1262 = vmatprep.subr.bf16.mxu0 0
        %1263 = vmatpush1.bf16.msra.mxu0 0
        %1264 = vmatprep.subr.bf16.mxu0 0
        %1265 = vmatpush1.bf16.msra.mxu0 0
        %1266 = vmatprep.subr.bf16.mxu0 0
        %1267 = vmatpush1.bf16.msra.mxu0 0
        %1268 = vmatprep.subr.bf16.mxu0 0
        %1269 = vmatpush1.bf16.msra.mxu0 0
        %1270 = vmatprep.subr.bf16.mxu0 0
        %1271 = vmatpush1.bf16.msra.mxu0 0
        %1272 = vmatprep.subr.bf16.mxu0 0
        %1273 = vmatpush1.bf16.msra.mxu0 0
        %1274 = vmatprep.mubr.bf16.mxu0 0
        %1275 = vmatmul.mubr.bf16.gmra.mrb[0].mxu0 %v1233
        %v1276 = vpop.f32.mrb[0].mxu0
        %v1277 = vadd.f32 0.0, %v1276
        %v1278 = vpop.f32.mrb[0].mxu0
        %v1279 = vpop.f32.mrb[0].mxu0
        %v1280 = vadd.f32 0.0, %v1279
        %v1281 = vpop.f32.mrb[0].mxu0
        %1282 = vmatprep.mubr.bf16.mxu0 0
        %1283 = vmatmul.mubr.bf16.gmra.mrb[0].mxu0 %v1236
        %v1284 = vpop.f32.mrb[0].mxu0
        %v1285 = vadd.f32 0.0, %v1284
        %v1286 = vpop.f32.mrb[0].mxu0
        %v1287 = vpop.f32.mrb[0].mxu0
        %v1288 = vpop.f32.mrb[0].mxu0
        %1289 = vdwg.mxu0
        %v1290 = vadd.f32 %v1206, %v1277
        %v1291 = vadd.f32 %v1207, %v1280
        %v1292 = vadd.f32 %v1208, %v1285
        %v1293 = vrcp.pop %v1218
        %v1294 = vmul.f32 %v1290, %v1293
        %v1295 = vrcp.pop %v1219
        %v1296 = vmul.f32 %v1291, %v1295
        %v1297 = vrcp.pop %v1220
        %v1298 = vmul.f32 %v1292, %v1297
        %v1299 = vpack.c.bf16 %v1296, %v1294
        %v1300 = vpack.c.bf16 %v1298, %v1298
        %v1303 = vunpack.c.l.b16 %v1299
        %v1304 = vunpack.c.h.b16 %v1299
        %v1305 = vunpack.c.l.b16 %v1300
        %v1306 = vpack.c.b16 %v1303, %v1303
        %v1307 = vpack.c.b16 %v1304, %v1304
        %v1308 = vpack.c.b16 %v1305, %v1305
        %vm1312 = vcmask 257024
        %1313 = vst.msk [vmem:[#allocation4] sm:$0xf] %vm1312, %v1306
        %1314 = vst.msk [vmem:[#allocation4 + $0x4] sm:$0xf] %vm1312, %v1307
        %1315 = vst.msk [vmem:[#allocation4 + $0x8] sm:$0xf] %vm1312, %v1308
        %v1316 = vld [vmem:[%s1080] sm:$0xf]
        %v1317 = vld [vmem:[%s1080 + $0xc] sm:$0xf]
        %v1318 = vld [vmem:[%s1080 + $0x18] sm:$0xf]
        %v1319 = vld [vmem:[%s1080 + $0x4] sm:$0xf]
        %v1320 = vld [vmem:[%s1080 + $0x10] sm:$0xf]
        %v1321 = vld [vmem:[%s1080 + $0x1c] sm:$0xf]
        %v1322 = vld [vmem:[%s1080 + $0x8] sm:$0xf]
        %v1323 = vld [vmem:[%s1080 + $0x14] sm:$0xf]
        %v1324 = vld [vmem:[%s1080 + $0x20] sm:$0xf]
        %v1328 = vunpack.c.l.b16 %v1316
        %v1329 = vunpack.c.l.b16 %v1317
        %v1330 = vunpack.c.l.b16 %v1318
        %v1331 = vpack.c.b16 %v1329, %v1328
        %v1332 = vpack.c.b16 %v1330, %v1330
        %1333 = vrot.lane.b32.xlu0 %v1331, 96
        %v1334 = vpop.permute.xlu0 %1333
        %1335 = vrot.lane.b32.xlu0 %v1332, 96
        %v1336 = vpop.permute.xlu0 %1335
        %v1340 = vunpack.c.l.b16 %v1319
        %v1341 = vunpack.c.l.b16 %v1320
        %v1342 = vunpack.c.l.b16 %v1321
        %v1343 = vpack.c.b16 %v1341, %v1340
        %v1344 = vpack.c.b16 %v1342, %v1342
        %1345 = vrot.lane.b32.xlu0 %v1343, 96
        %v1346 = vpop.permute.xlu0 %1345
        %1347 = vrot.lane.b32.xlu0 %v1344, 96
        %v1348 = vpop.permute.xlu0 %1347
        %v1350 = vsel %vm1106, %v1334, 0
        %v1353 = vsel %vm1106, %v1336, 0
        %v1356 = vsel %vm1106, %v1346, 0
        %v1359 = vsel %vm1106, %v1348, 0
        %1361 = vmatprep.subr.bf16.mxu0 0
        %1362 = vmatpush1.bf16.xpose.msra.mxu0 %v1356
        %1363 = vmatprep.subr.bf16.mxu0 0
        %1364 = vmatpush1.bf16.xpose.msra.mxu0 %v1359
        %1365 = vmatprep.subr.bf16.mxu0 0
        %1366 = vmatpush1.bf16.xpose.msra.mxu0 0
        %1367 = vmatprep.subr.bf16.mxu0 0
        %1368 = vmatpush1.bf16.xpose.msra.mxu0 0
        %1369 = vmatprep.subr.bf16.mxu0 0
        %1370 = vmatpush1.bf16.xpose.msra.mxu0 0
        %1371 = vmatprep.subr.bf16.mxu0 0
        %1372 = vmatpush1.bf16.xpose.msra.mxu0 0
        %1373 = vmatprep.subr.bf16.mxu0 0
        %1374 = vmatpush1.bf16.xpose.msra.mxu0 0
        %1375 = vmatprep.subr.bf16.mxu0 0
        %1376 = vmatpush1.bf16.xpose.msra.mxu0 0
        %1377 = vmatprep.subr.bf16.mxu0 0
        %1378 = vmatpush1.bf16.xpose.msra.mxu0 0
        %1379 = vmatprep.subr.bf16.mxu0 0
        %1380 = vmatpush1.bf16.xpose.msra.mxu0 0
        %1381 = vmatprep.subr.bf16.mxu0 0
        %1382 = vmatpush1.bf16.xpose.msra.mxu0 0
        %1383 = vmatprep.subr.bf16.mxu0 0
        %1384 = vmatpush1.bf16.xpose.msra.mxu0 0
        %1385 = vmatprep.subr.bf16.mxu0 0
        %1386 = vmatpush1.bf16.xpose.msra.mxu0 0
        %1387 = vmatprep.subr.bf16.mxu0 0
        %1388 = vmatpush1.bf16.xpose.msra.mxu0 0
        %1389 = vmatprep.subr.bf16.mxu0 0
        %1390 = vmatpush1.bf16.xpose.msra.mxu0 0
        %1391 = vmatprep.subr.bf16.mxu0 0
        %1392 = vmatpush1.bf16.xpose.msra.mxu0 0
        %1393 = vmatprep.mubr.bf16.mxu0 0
        %1394 = vmatmul.mubr.bf16.gmra.mrb[0].mxu0 %v1350
        %v1395 = vpop.f32.mrb[0].mxu0
        %v1396 = vadd.f32 0.0, %v1395
        %v1397 = vpop.f32.mrb[0].mxu0
        %v1398 = vpop.f32.mrb[0].mxu0
        %v1399 = vadd.f32 0.0, %v1398
        %v1400 = vpop.f32.mrb[0].mxu0
        %1401 = vmatprep.mubr.bf16.mxu0 0
        %1402 = vmatmul.mubr.bf16.gmra.mrb[0].mxu0 %v1353
        %v1403 = vpop.f32.mrb[0].mxu0
        %v1404 = vadd.f32 0.0, %v1403
        %v1405 = vpop.f32.mrb[0].mxu0
        %v1406 = vpop.f32.mrb[0].mxu0
        %v1407 = vpop.f32.mrb[0].mxu0
        %1408 = vdwg.mxu0
        %v1409 = vsel %vm1171, %v1396, -1e+30
        %v1410 = vsel %vm1171, %v1399, -1e+30
        %v1411 = vsel %vm1171, %v1404, -1e+30
        %v1412 = vsel %vm1175, %v1409, -inf
        %1413 = vmax.xlane.f32.xlu0 %v1412
        %v1414 = vpop.xlane.xlu0 %1413
        %v1415 = vsel %vm1175, %v1410, -inf
        %1416 = vmax.xlane.f32.xlu0 %v1415
        %v1417 = vpop.xlane.xlu0 %1416
        %v1418 = vsel %vm1175, %v1411, -inf
        %1419 = vmax.xlane.f32.xlu0 %v1418
        %v1420 = vpop.xlane.xlu0 %1419
        %v1421 = vmax.f32 %v1414, -1e+30
        %v1422 = vmax.f32 %v1417, -1e+30
        %v1423 = vmax.f32 %v1420, -1e+30
        %v1424 = vsub.f32 -1e+30, %v1421
        %v1425 = vsub.f32 -1e+30, %v1422
        %v1426 = vsub.f32 -1e+30, %v1423
        %v1427 = vmul.f32 %v1424, 1.442695
        %v1428 = vpow.pop %v1427
        %v1429 = vmul.f32 %v1425, 1.442695
        %v1430 = vpow.pop %v1429
        %v1431 = vmul.f32 %v1426, 1.442695
        %v1432 = vpow.pop %v1431
        %v1433 = vsub.f32 %v1409, %v1421
        %v1434 = vsub.f32 %v1410, %v1422
        %v1435 = vsub.f32 %v1411, %v1423
        %v1436 = vmul.f32 %v1433, 1.442695
        %v1437 = vpow.pop %v1436
        %v1438 = vmul.f32 %v1434, 1.442695
        %v1439 = vpow.pop %v1438
        %v1440 = vmul.f32 %v1435, 1.442695
        %v1441 = vpow.pop %v1440
        %v1442 = vmul.f32 %v1428, 0.0
        %v1443 = vmul.f32 %v1430, 0.0
        %v1444 = vmul.f32 %v1432, 0.0
        %v1445 = vsel %vm1175, %v1437, 0.0
        %1446 = vadd.xlane.f32.xlu0 %v1445
        %v1447 = vpop.xlane.xlu0 %1446
        %v1448 = vsel %vm1175, %v1439, 0.0
        %1449 = vadd.xlane.f32.xlu0 %v1448
        %v1450 = vpop.xlane.xlu0 %1449
        %v1451 = vsel %vm1175, %v1441, 0.0
        %1452 = vadd.xlane.f32.xlu0 %v1451
        %v1453 = vpop.xlane.xlu0 %1452
        %v1454 = vadd.f32 %v1442, %v1447
        %v1455 = vadd.f32 %v1443, %v1450
        %v1456 = vadd.f32 %v1444, %v1453
        %v1457 = vpack.c.bf16 %v1439, %v1437
        %v1458 = vpack.c.bf16 %v1441, %v1441
        %v1462 = vunpack.c.l.b16 %v1322
        %v1463 = vunpack.c.l.b16 %v1323
        %v1464 = vunpack.c.l.b16 %v1324
        %v1465 = vpack.c.b16 %v1463, %v1462
        %v1466 = vpack.c.b16 %v1464, %v1464
        %1467 = vrot.lane.b32.xlu0 %v1465, 96
        %v1468 = vpop.permute.xlu0 %1467
        %1469 = vrot.lane.b32.xlu0 %v1466, 96
        %v1470 = vpop.permute.xlu0 %1469
        %v1473 = vsel %vm1175, %v1457, 0
        %v1476 = vsel %vm1175, %v1458, 0
        %v1479 = vsel %vm1238, %v1470, 0
        %1481 = vmatprep.subr.bf16.mxu0 0
        %1482 = vmatpush1.bf16.msra.mxu0 %v1468
        %1483 = vmatprep.subr.bf16.mxu0 0
        %1484 = vmatpush1.bf16.msra.mxu0 %v1479
        %1485 = vmatprep.subr.bf16.mxu0 0
        %1486 = vmatpush1.bf16.msra.mxu0 0
        %1487 = vmatprep.subr.bf16.mxu0 0
        %1488 = vmatpush1.bf16.msra.mxu0 0
        %1489 = vmatprep.subr.bf16.mxu0 0
        %1490 = vmatpush1.bf16.msra.mxu0 0
        %1491 = vmatprep.subr.bf16.mxu0 0
        %1492 = vmatpush1.bf16.msra.mxu0 0
        %1493 = vmatprep.subr.bf16.mxu0 0
        %1494 = vmatpush1.bf16.msra.mxu0 0
        %1495 = vmatprep.subr.bf16.mxu0 0
        %1496 = vmatpush1.bf16.msra.mxu0 0
        %1497 = vmatprep.subr.bf16.mxu0 0
        %1498 = vmatpush1.bf16.msra.mxu0 0
        %1499 = vmatprep.subr.bf16.mxu0 0
        %1500 = vmatpush1.bf16.msra.mxu0 0
        %1501 = vmatprep.subr.bf16.mxu0 0
        %1502 = vmatpush1.bf16.msra.mxu0 0
        %1503 = vmatprep.subr.bf16.mxu0 0
        %1504 = vmatpush1.bf16.msra.mxu0 0
        %1505 = vmatprep.subr.bf16.mxu0 0
        %1506 = vmatpush1.bf16.msra.mxu0 0
        %1507 = vmatprep.subr.bf16.mxu0 0
        %1508 = vmatpush1.bf16.msra.mxu0 0
        %1509 = vmatprep.subr.bf16.mxu0 0
        %1510 = vmatpush1.bf16.msra.mxu0 0
        %1511 = vmatprep.subr.bf16.mxu0 0
        %1512 = vmatpush1.bf16.msra.mxu0 0
        %1513 = vmatprep.mubr.bf16.mxu0 0
        %1514 = vmatmul.mubr.bf16.gmra.mrb[0].mxu0 %v1473
        %v1515 = vpop.f32.mrb[0].mxu0
        %v1516 = vadd.f32 0.0, %v1515
        %v1517 = vpop.f32.mrb[0].mxu0
        %v1518 = vpop.f32.mrb[0].mxu0
        %v1519 = vadd.f32 0.0, %v1518
        %v1520 = vpop.f32.mrb[0].mxu0
        %1521 = vmatprep.mubr.bf16.mxu0 0
        %1522 = vmatmul.mubr.bf16.gmra.mrb[0].mxu0 %v1476
        %v1523 = vpop.f32.mrb[0].mxu0
        %v1524 = vadd.f32 0.0, %v1523
        %v1525 = vpop.f32.mrb[0].mxu0
        %v1526 = vpop.f32.mrb[0].mxu0
        %v1527 = vpop.f32.mrb[0].mxu0
        %1528 = vdwg.mxu0
        %v1529 = vadd.f32 %v1442, %v1516
        %v1530 = vadd.f32 %v1443, %v1519
        %v1531 = vadd.f32 %v1444, %v1524
        %v1532 = vrcp.pop %v1454
        %v1533 = vmul.f32 %v1529, %v1532
        %v1534 = vrcp.pop %v1455
        %v1535 = vmul.f32 %v1530, %v1534
        %v1536 = vrcp.pop %v1456
        %v1537 = vmul.f32 %v1531, %v1536
        %v1538 = vpack.c.bf16 %v1535, %v1533
        %v1539 = vpack.c.bf16 %v1537, %v1537
        %v1542 = vunpack.c.l.b16 %v1538
        %v1543 = vunpack.c.h.b16 %v1538
        %v1544 = vunpack.c.l.b16 %v1539
        %v1545 = vpack.c.b16 %v1542, %v1542
        %v1546 = vpack.c.b16 %v1543, %v1543
        %v1547 = vpack.c.b16 %v1544, %v1544
        %1548 = vrot.lane.b32.xlu0 %v1545, 32
        %v1549 = vpop.permute.xlu0 %1548
        %1550 = vrot.lane.b32.xlu0 %v1546, 32
        %v1551 = vpop.permute.xlu0 %1550
        %1552 = vrot.lane.b32.xlu0 %v1547, 32
        %v1553 = vpop.permute.xlu0 %1552
        %vm1557 = vcmask 519424
        %1558 = vst.msk [vmem:[#allocation4] sm:$0xf] %vm1557, %v1549
        %1559 = vst.msk [vmem:[#allocation4 + $0x4] sm:$0xf] %vm1557, %v1551
        %1560 = vst.msk [vmem:[#allocation4 + $0x8] sm:$0xf] %vm1557, %v1553
        %v1561 = vld [vmem:[%s1080] sm:$0xf]
        %v1562 = vld [vmem:[%s1080 + $0xc] sm:$0xf]
        %v1563 = vld [vmem:[%s1080 + $0x18] sm:$0xf]
        %v1564 = vld [vmem:[%s1080 + $0x4] sm:$0xf]
        %v1565 = vld [vmem:[%s1080 + $0x10] sm:$0xf]
        %v1566 = vld [vmem:[%s1080 + $0x1c] sm:$0xf]
        %v1567 = vld [vmem:[%s1080 + $0x8] sm:$0xf]
        %v1568 = vld [vmem:[%s1080 + $0x14] sm:$0xf]
        %v1569 = vld [vmem:[%s1080 + $0x20] sm:$0xf]
        %v1573 = vunpack.c.l.b16 %v1561
        %v1574 = vunpack.c.l.b16 %v1562
        %v1575 = vunpack.c.l.b16 %v1563
        %v1576 = vpack.c.b16 %v1574, %v1573
        %v1577 = vpack.c.b16 %v1575, %v1575
        %1578 = vrot.lane.b32.xlu0 %v1576, 64
        %v1579 = vpop.permute.xlu0 %1578
        %1580 = vrot.lane.b32.xlu0 %v1577, 64
        %v1581 = vpop.permute.xlu0 %1580
        %v1585 = vunpack.c.l.b16 %v1564
        %v1586 = vunpack.c.l.b16 %v1565
        %v1587 = vunpack.c.l.b16 %v1566
        %v1588 = vpack.c.b16 %v1586, %v1585
        %v1589 = vpack.c.b16 %v1587, %v1587
        %1590 = vrot.lane.b32.xlu0 %v1588, 64
        %v1591 = vpop.permute.xlu0 %1590
        %1592 = vrot.lane.b32.xlu0 %v1589, 64
        %v1593 = vpop.permute.xlu0 %1592
        %v1595 = vsel %vm1106, %v1579, 0
        %v1598 = vsel %vm1106, %v1581, 0
        %v1601 = vsel %vm1106, %v1591, 0
        %v1604 = vsel %vm1106, %v1593, 0
        %1606 = vmatprep.subr.bf16.mxu0 0
        %1607 = vmatpush1.bf16.xpose.msra.mxu0 %v1601
        %1608 = vmatprep.subr.bf16.mxu0 0
        %1609 = vmatpush1.bf16.xpose.msra.mxu0 %v1604
        %1610 = vmatprep.subr.bf16.mxu0 0
        %1611 = vmatpush1.bf16.xpose.msra.mxu0 0
        %1612 = vmatprep.subr.bf16.mxu0 0
        %1613 = vmatpush1.bf16.xpose.msra.mxu0 0
        %1614 = vmatprep.subr.bf16.mxu0 0
        %1615 = vmatpush1.bf16.xpose.msra.mxu0 0
        %1616 = vmatprep.subr.bf16.mxu0 0
        %1617 = vmatpush1.bf16.xpose.msra.mxu0 0
        %1618 = vmatprep.subr.bf16.mxu0 0
        %1619 = vmatpush1.bf16.xpose.msra.mxu0 0
        %1620 = vmatprep.subr.bf16.mxu0 0
        %1621 = vmatpush1.bf16.xpose.msra.mxu0 0
        %1622 = vmatprep.subr.bf16.mxu0 0
        %1623 = vmatpush1.bf16.xpose.msra.mxu0 0
        %1624 = vmatprep.subr.bf16.mxu0 0
        %1625 = vmatpush1.bf16.xpose.msra.mxu0 0
        %1626 = vmatprep.subr.bf16.mxu0 0
        %1627 = vmatpush1.bf16.xpose.msra.mxu0 0
        %1628 = vmatprep.subr.bf16.mxu0 0
        %1629 = vmatpush1.bf16.xpose.msra.mxu0 0
        %1630 = vmatprep.subr.bf16.mxu0 0
        %1631 = vmatpush1.bf16.xpose.msra.mxu0 0
        %1632 = vmatprep.subr.bf16.mxu0 0
        %1633 = vmatpush1.bf16.xpose.msra.mxu0 0
        %1634 = vmatprep.subr.bf16.mxu0 0
        %1635 = vmatpush1.bf16.xpose.msra.mxu0 0
        %1636 = vmatprep.subr.bf16.mxu0 0
        %1637 = vmatpush1.bf16.xpose.msra.mxu0 0
        %1638 = vmatprep.mubr.bf16.mxu0 0
        %1639 = vmatmul.mubr.bf16.gmra.mrb[0].mxu0 %v1595
        %v1640 = vpop.f32.mrb[0].mxu0
        %v1641 = vadd.f32 0.0, %v1640
        %v1642 = vpop.f32.mrb[0].mxu0
        %v1643 = vpop.f32.mrb[0].mxu0
        %v1644 = vadd.f32 0.0, %v1643
        %v1645 = vpop.f32.mrb[0].mxu0
        %1646 = vmatprep.mubr.bf16.mxu0 0
        %1647 = vmatmul.mubr.bf16.gmra.mrb[0].mxu0 %v1598
        %v1648 = vpop.f32.mrb[0].mxu0
        %v1649 = vadd.f32 0.0, %v1648
        %v1650 = vpop.f32.mrb[0].mxu0
        %v1651 = vpop.f32.mrb[0].mxu0
        %v1652 = vpop.f32.mrb[0].mxu0
        %1653 = vdwg.mxu0
        %v1654 = vsel %vm1171, %v1641, -1e+30
        %v1655 = vsel %vm1171, %v1644, -1e+30
        %v1656 = vsel %vm1171, %v1649, -1e+30
        %v1657 = vsel %vm1175, %v1654, -inf
        %1658 = vmax.xlane.f32.xlu0 %v1657
        %v1659 = vpop.xlane.xlu0 %1658
        %v1660 = vsel %vm1175, %v1655, -inf
        %1661 = vmax.xlane.f32.xlu0 %v1660
        %v1662 = vpop.xlane.xlu0 %1661
        %v1663 = vsel %vm1175, %v1656, -inf
        %1664 = vmax.xlane.f32.xlu0 %v1663
        %v1665 = vpop.xlane.xlu0 %1664
        %v1666 = vmax.f32 %v1659, -1e+30
        %v1667 = vmax.f32 %v1662, -1e+30
        %v1668 = vmax.f32 %v1665, -1e+30
        %v1669 = vsub.f32 -1e+30, %v1666
        %v1670 = vsub.f32 -1e+30, %v1667
        %v1671 = vsub.f32 -1e+30, %v1668
        %v1672 = vmul.f32 %v1669, 1.442695
        %v1673 = vpow.pop %v1672
        %v1674 = vmul.f32 %v1670, 1.442695
        %v1675 = vpow.pop %v1674
        %v1676 = vmul.f32 %v1671, 1.442695
        %v1677 = vpow.pop %v1676
        %v1678 = vsub.f32 %v1654, %v1666
        %v1679 = vsub.f32 %v1655, %v1667
        %v1680 = vsub.f32 %v1656, %v1668
        %v1681 = vmul.f32 %v1678, 1.442695
        %v1682 = vpow.pop %v1681
        %v1683 = vmul.f32 %v1679, 1.442695
        %v1684 = vpow.pop %v1683
        %v1685 = vmul.f32 %v1680, 1.442695
        %v1686 = vpow.pop %v1685
        %v1687 = vmul.f32 %v1673, 0.0
        %v1688 = vmul.f32 %v1675, 0.0
        %v1689 = vmul.f32 %v1677, 0.0
        %v1690 = vsel %vm1175, %v1682, 0.0
        %1691 = vadd.xlane.f32.xlu0 %v1690
        %v1692 = vpop.xlane.xlu0 %1691
        %v1693 = vsel %vm1175, %v1684, 0.0
        %1694 = vadd.xlane.f32.xlu0 %v1693
        %v1695 = vpop.xlane.xlu0 %1694
        %v1696 = vsel %vm1175, %v1686, 0.0
        %1697 = vadd.xlane.f32.xlu0 %v1696
        %v1698 = vpop.xlane.xlu0 %1697
        %v1699 = vadd.f32 %v1687, %v1692
        %v1700 = vadd.f32 %v1688, %v1695
        %v1701 = vadd.f32 %v1689, %v1698
        %v1702 = vpack.c.bf16 %v1684, %v1682
        %v1703 = vpack.c.bf16 %v1686, %v1686
        %v1707 = vunpack.c.l.b16 %v1567
        %v1708 = vunpack.c.l.b16 %v1568
        %v1709 = vunpack.c.l.b16 %v1569
        %v1710 = vpack.c.b16 %v1708, %v1707
        %v1711 = vpack.c.b16 %v1709, %v1709
        %1712 = vrot.lane.b32.xlu0 %v1710, 64
        %v1713 = vpop.permute.xlu0 %1712
        %1714 = vrot.lane.b32.xlu0 %v1711, 64
        %v1715 = vpop.permute.xlu0 %1714
        %v1718 = vsel %vm1175, %v1702, 0
        %v1721 = vsel %vm1175, %v1703, 0
        %v1724 = vsel %vm1238, %v1715, 0
        %1726 = vmatprep.subr.bf16.mxu0 0
        %1727 = vmatpush1.bf16.msra.mxu0 %v1713
        %1728 = vmatprep.subr.bf16.mxu0 0
        %1729 = vmatpush1.bf16.msra.mxu0 %v1724
        %1730 = vmatprep.subr.bf16.mxu0 0
        %1731 = vmatpush1.bf16.msra.mxu0 0
        %1732 = vmatprep.subr.bf16.mxu0 0
        %1733 = vmatpush1.bf16.msra.mxu0 0
        %1734 = vmatprep.subr.bf16.mxu0 0
        %1735 = vmatpush1.bf16.msra.mxu0 0
        %1736 = vmatprep.subr.bf16.mxu0 0
        %1737 = vmatpush1.bf16.msra.mxu0 0
        %1738 = vmatprep.subr.bf16.mxu0 0
        %1739 = vmatpush1.bf16.msra.mxu0 0
        %1740 = vmatprep.subr.bf16.mxu0 0
        %1741 = vmatpush1.bf16.msra.mxu0 0
        %1742 = vmatprep.subr.bf16.mxu0 0
        %1743 = vmatpush1.bf16.msra.mxu0 0
        %1744 = vmatprep.subr.bf16.mxu0 0
        %1745 = vmatpush1.bf16.msra.mxu0 0
        %1746 = vmatprep.subr.bf16.mxu0 0
        %1747 = vmatpush1.bf16.msra.mxu0 0
        %1748 = vmatprep.subr.bf16.mxu0 0
        %1749 = vmatpush1.bf16.msra.mxu0 0
        %1750 = vmatprep.subr.bf16.mxu0 0
        %1751 = vmatpush1.bf16.msra.mxu0 0
        %1752 = vmatprep.subr.bf16.mxu0 0
        %1753 = vmatpush1.bf16.msra.mxu0 0
        %1754 = vmatprep.subr.bf16.mxu0 0
        %1755 = vmatpush1.bf16.msra.mxu0 0
        %1756 = vmatprep.subr.bf16.mxu0 0
        %1757 = vmatpush1.bf16.msra.mxu0 0
        %1758 = vmatprep.mubr.bf16.mxu0 0
        %1759 = vmatmul.mubr.bf16.gmra.mrb[0].mxu0 %v1718
        %v1760 = vpop.f32.mrb[0].mxu0
        %v1761 = vadd.f32 0.0, %v1760
        %v1762 = vpop.f32.mrb[0].mxu0
        %v1763 = vpop.f32.mrb[0].mxu0
        %v1764 = vadd.f32 0.0, %v1763
        %v1765 = vpop.f32.mrb[0].mxu0
        %1766 = vmatprep.mubr.bf16.mxu0 0
        %1767 = vmatmul.mubr.bf16.gmra.mrb[0].mxu0 %v1721
        %v1768 = vpop.f32.mrb[0].mxu0
        %v1769 = vadd.f32 0.0, %v1768
        %v1770 = vpop.f32.mrb[0].mxu0
        %v1771 = vpop.f32.mrb[0].mxu0
        %v1772 = vpop.f32.mrb[0].mxu0
        %1773 = vdwg.mxu0
        %v1774 = vadd.f32 %v1687, %v1761
        %v1775 = vadd.f32 %v1688, %v1764
        %v1776 = vadd.f32 %v1689, %v1769
        %v1777 = vrcp.pop %v1699
        %v1778 = vmul.f32 %v1774, %v1777
        %v1779 = vrcp.pop %v1700
        %v1780 = vmul.f32 %v1775, %v1779
        %v1781 = vrcp.pop %v1701
        %v1782 = vmul.f32 %v1776, %v1781
        %v1783 = vpack.c.bf16 %v1780, %v1778
        %v1784 = vpack.c.bf16 %v1782, %v1782
        %v1787 = vunpack.c.l.b16 %v1783
        %v1788 = vunpack.c.h.b16 %v1783
        %v1789 = vunpack.c.l.b16 %v1784
        %v1790 = vpack.c.b16 %v1787, %v1787
        %v1791 = vpack.c.b16 %v1788, %v1788
        %v1792 = vpack.c.b16 %v1789, %v1789
        %1793 = vrot.lane.b32.xlu0 %v1790, 64
        %v1794 = vpop.permute.xlu0 %1793
        %1795 = vrot.lane.b32.xlu0 %v1791, 64
        %v1796 = vpop.permute.xlu0 %1795
        %1797 = vrot.lane.b32.xlu0 %v1792, 64
        %v1798 = vpop.permute.xlu0 %1797
        %vm1802 = vcmask 781824
        %1803 = vst.msk [vmem:[#allocation4] sm:$0xf] %vm1802, %v1794
        %1804 = vst.msk [vmem:[#allocation4 + $0x4] sm:$0xf] %vm1802, %v1796
        %1805 = vst.msk [vmem:[#allocation4 + $0x8] sm:$0xf] %vm1802, %v1798
        %v1806 = vld [vmem:[%s1080] sm:$0xf]
        %v1807 = vld [vmem:[%s1080 + $0xc] sm:$0xf]
        %v1808 = vld [vmem:[%s1080 + $0x18] sm:$0xf]
        %v1809 = vld [vmem:[%s1080 + $0x4] sm:$0xf]
        %v1810 = vld [vmem:[%s1080 + $0x10] sm:$0xf]
        %v1811 = vld [vmem:[%s1080 + $0x1c] sm:$0xf]
        %v1812 = vld [vmem:[%s1080 + $0x8] sm:$0xf]
        %v1813 = vld [vmem:[%s1080 + $0x14] sm:$0xf]
        %v1814 = vld [vmem:[%s1080 + $0x20] sm:$0xf]
        %v1818 = vunpack.c.l.b16 %v1806
        %v1819 = vunpack.c.l.b16 %v1807
        %v1820 = vunpack.c.l.b16 %v1808
        %v1821 = vpack.c.b16 %v1819, %v1818
        %v1822 = vpack.c.b16 %v1820, %v1820
        %1823 = vrot.lane.b32.xlu0 %v1821, 32
        %v1824 = vpop.permute.xlu0 %1823
        %1825 = vrot.lane.b32.xlu0 %v1822, 32
        %v1826 = vpop.permute.xlu0 %1825
        %v1830 = vunpack.c.l.b16 %v1809
        %v1831 = vunpack.c.l.b16 %v1810
        %v1832 = vunpack.c.l.b16 %v1811
        %v1833 = vpack.c.b16 %v1831, %v1830
        %v1834 = vpack.c.b16 %v1832, %v1832
        %1835 = vrot.lane.b32.xlu0 %v1833, 32
        %v1836 = vpop.permute.xlu0 %1835
        %1837 = vrot.lane.b32.xlu0 %v1834, 32
        %v1838 = vpop.permute.xlu0 %1837
        %v1840 = vsel %vm1106, %v1824, 0
        %v1843 = vsel %vm1106, %v1826, 0
        %v1846 = vsel %vm1106, %v1836, 0
        %v1849 = vsel %vm1106, %v1838, 0
        %1851 = vmatprep.subr.bf16.mxu0 0
        %1852 = vmatpush1.bf16.xpose.msra.mxu0 %v1846
        %1853 = vmatprep.subr.bf16.mxu0 0
        %1854 = vmatpush1.bf16.xpose.msra.mxu0 %v1849
        %1855 = vmatprep.subr.bf16.mxu0 0
        %1856 = vmatpush1.bf16.xpose.msra.mxu0 0
        %1857 = vmatprep.subr.bf16.mxu0 0
        %1858 = vmatpush1.bf16.xpose.msra.mxu0 0
        %1859 = vmatprep.subr.bf16.mxu0 0
        %1860 = vmatpush1.bf16.xpose.msra.mxu0 0
        %1861 = vmatprep.subr.bf16.mxu0 0
        %1862 = vmatpush1.bf16.xpose.msra.mxu0 0
        %1863 = vmatprep.subr.bf16.mxu0 0
        %1864 = vmatpush1.bf16.xpose.msra.mxu0 0
        %1865 = vmatprep.subr.bf16.mxu0 0
        %1866 = vmatpush1.bf16.xpose.msra.mxu0 0
        %1867 = vmatprep.subr.bf16.mxu0 0
        %1868 = vmatpush1.bf16.xpose.msra.mxu0 0
        %1869 = vmatprep.subr.bf16.mxu0 0
        %1870 = vmatpush1.bf16.xpose.msra.mxu0 0
        %1871 = vmatprep.subr.bf16.mxu0 0
        %1872 = vmatpush1.bf16.xpose.msra.mxu0 0
        %1873 = vmatprep.subr.bf16.mxu0 0
        %1874 = vmatpush1.bf16.xpose.msra.mxu0 0
        %1875 = vmatprep.subr.bf16.mxu0 0
        %1876 = vmatpush1.bf16.xpose.msra.mxu0 0
        %1877 = vmatprep.subr.bf16.mxu0 0
        %1878 = vmatpush1.bf16.xpose.msra.mxu0 0
        %1879 = vmatprep.subr.bf16.mxu0 0
        %1880 = vmatpush1.bf16.xpose.msra.mxu0 0
        %1881 = vmatprep.subr.bf16.mxu0 0
        %1882 = vmatpush1.bf16.xpose.msra.mxu0 0
        %1883 = vmatprep.mubr.bf16.mxu0 0
        %1884 = vmatmul.mubr.bf16.gmra.mrb[0].mxu0 %v1840
        %v1885 = vpop.f32.mrb[0].mxu0
        %v1886 = vadd.f32 0.0, %v1885
        %v1887 = vpop.f32.mrb[0].mxu0
        %v1888 = vpop.f32.mrb[0].mxu0
        %v1889 = vadd.f32 0.0, %v1888
        %v1890 = vpop.f32.mrb[0].mxu0
        %1891 = vmatprep.mubr.bf16.mxu0 0
        %1892 = vmatmul.mubr.bf16.gmra.mrb[0].mxu0 %v1843
        %v1893 = vpop.f32.mrb[0].mxu0
        %v1894 = vadd.f32 0.0, %v1893
        %v1895 = vpop.f32.mrb[0].mxu0
        %v1896 = vpop.f32.mrb[0].mxu0
        %v1897 = vpop.f32.mrb[0].mxu0
        %1898 = vdwg.mxu0
        %v1899 = vsel %vm1171, %v1886, -1e+30
        %v1900 = vsel %vm1171, %v1889, -1e+30
        %v1901 = vsel %vm1171, %v1894, -1e+30
        %v1902 = vsel %vm1175, %v1899, -inf
        %1903 = vmax.xlane.f32.xlu0 %v1902
        %v1904 = vpop.xlane.xlu0 %1903
        %v1905 = vsel %vm1175, %v1900, -inf
        %1906 = vmax.xlane.f32.xlu0 %v1905
        %v1907 = vpop.xlane.xlu0 %1906
        %v1908 = vsel %vm1175, %v1901, -inf
        %1909 = vmax.xlane.f32.xlu0 %v1908
        %v1910 = vpop.xlane.xlu0 %1909
        %v1911 = vmax.f32 %v1904, -1e+30
        %v1912 = vmax.f32 %v1907, -1e+30
        %v1913 = vmax.f32 %v1910, -1e+30
        %v1914 = vsub.f32 -1e+30, %v1911
        %v1915 = vsub.f32 -1e+30, %v1912
        %v1916 = vsub.f32 -1e+30, %v1913
        %v1917 = vmul.f32 %v1914, 1.442695
        %v1918 = vpow.pop %v1917
        %v1919 = vmul.f32 %v1915, 1.442695
        %v1920 = vpow.pop %v1919
        %v1921 = vmul.f32 %v1916, 1.442695
        %v1922 = vpow.pop %v1921
        %v1923 = vsub.f32 %v1899, %v1911
        %v1924 = vsub.f32 %v1900, %v1912
        %v1925 = vsub.f32 %v1901, %v1913
        %v1926 = vmul.f32 %v1923, 1.442695
        %v1927 = vpow.pop %v1926
        %v1928 = vmul.f32 %v1924, 1.442695
        %v1929 = vpow.pop %v1928
        %v1930 = vmul.f32 %v1925, 1.442695
        %v1931 = vpow.pop %v1930
        %v1932 = vmul.f32 %v1918, 0.0
        %v1933 = vmul.f32 %v1920, 0.0
        %v1934 = vmul.f32 %v1922, 0.0
        %v1935 = vsel %vm1175, %v1927, 0.0
        %1936 = vadd.xlane.f32.xlu0 %v1935
        %v1937 = vpop.xlane.xlu0 %1936
        %v1938 = vsel %vm1175, %v1929, 0.0
        %1939 = vadd.xlane.f32.xlu0 %v1938
        %v1940 = vpop.xlane.xlu0 %1939
        %v1941 = vsel %vm1175, %v1931, 0.0
        %1942 = vadd.xlane.f32.xlu0 %v1941
        %v1943 = vpop.xlane.xlu0 %1942
        %v1944 = vadd.f32 %v1932, %v1937
        %v1945 = vadd.f32 %v1933, %v1940
        %v1946 = vadd.f32 %v1934, %v1943
        %v1947 = vpack.c.bf16 %v1929, %v1927
        %v1948 = vpack.c.bf16 %v1931, %v1931
        %v1952 = vunpack.c.l.b16 %v1812
        %v1953 = vunpack.c.l.b16 %v1813
        %v1954 = vunpack.c.l.b16 %v1814
        %v1955 = vpack.c.b16 %v1953, %v1952
        %v1956 = vpack.c.b16 %v1954, %v1954
        %1957 = vrot.lane.b32.xlu0 %v1955, 32
        %v1958 = vpop.permute.xlu0 %1957
        %1959 = vrot.lane.b32.xlu0 %v1956, 32
        %v1960 = vpop.permute.xlu0 %1959
        %v1963 = vsel %vm1175, %v1947, 0
        %v1966 = vsel %vm1175, %v1948, 0
        %v1969 = vsel %vm1238, %v1960, 0
        %1971 = vmatprep.subr.bf16.mxu0 0
        %1972 = vmatpush1.bf16.msra.mxu0 %v1958
        %1973 = vmatprep.subr.bf16.mxu0 0
        %1974 = vmatpush1.bf16.msra.mxu0 %v1969
        %1975 = vmatprep.subr.bf16.mxu0 0
        %1976 = vmatpush1.bf16.msra.mxu0 0
        %1977 = vmatprep.subr.bf16.mxu0 0
        %1978 = vmatpush1.bf16.msra.mxu0 0
        %1979 = vmatprep.subr.bf16.mxu0 0
        %1980 = vmatpush1.bf16.msra.mxu0 0
        %1981 = vmatprep.subr.bf16.mxu0 0
        %1982 = vmatpush1.bf16.msra.mxu0 0
        %1983 = vmatprep.subr.bf16.mxu0 0
        %1984 = vmatpush1.bf16.msra.mxu0 0
        %1985 = vmatprep.subr.bf16.mxu0 0
        %1986 = vmatpush1.bf16.msra.mxu0 0
        %1987 = vmatprep.subr.bf16.mxu0 0
        %1988 = vmatpush1.bf16.msra.mxu0 0
        %1989 = vmatprep.subr.bf16.mxu0 0
        %1990 = vmatpush1.bf16.msra.mxu0 0
        %1991 = vmatprep.subr.bf16.mxu0 0
        %1992 = vmatpush1.bf16.msra.mxu0 0
        %1993 = vmatprep.subr.bf16.mxu0 0
        %1994 = vmatpush1.bf16.msra.mxu0 0
        %1995 = vmatprep.subr.bf16.mxu0 0
        %1996 = vmatpush1.bf16.msra.mxu0 0
        %1997 = vmatprep.subr.bf16.mxu0 0
        %1998 = vmatpush1.bf16.msra.mxu0 0
        %1999 = vmatprep.subr.bf16.mxu0 0
        %2000 = vmatpush1.bf16.msra.mxu0 0
        %2001 = vmatprep.subr.bf16.mxu0 0
        %2002 = vmatpush1.bf16.msra.mxu0 0
        %2003 = vmatprep.mubr.bf16.mxu0 0
        %2004 = vmatmul.mubr.bf16.gmra.mrb[0].mxu0 %v1963
        %v2005 = vpop.f32.mrb[0].mxu0
        %v2006 = vadd.f32 0.0, %v2005
        %v2007 = vpop.f32.mrb[0].mxu0
        %v2008 = vpop.f32.mrb[0].mxu0
        %v2009 = vadd.f32 0.0, %v2008
        %v2010 = vpop.f32.mrb[0].mxu0
        %2011 = vmatprep.mubr.bf16.mxu0 0
        %2012 = vmatmul.mubr.bf16.gmra.mrb[0].mxu0 %v1966
        %v2013 = vpop.f32.mrb[0].mxu0
        %v2014 = vadd.f32 0.0, %v2013
        %v2015 = vpop.f32.mrb[0].mxu0
        %v2016 = vpop.f32.mrb[0].mxu0
        %v2017 = vpop.f32.mrb[0].mxu0
        %2018 = vdwg.mxu0
        %v2019 = vadd.f32 %v1932, %v2006
        %v2020 = vadd.f32 %v1933, %v2009
        %v2021 = vadd.f32 %v1934, %v2014
        %v2022 = vrcp.pop %v1944
        %v2023 = vmul.f32 %v2019, %v2022
        %v2024 = vrcp.pop %v1945
        %v2025 = vmul.f32 %v2020, %v2024
        %v2026 = vrcp.pop %v1946
        %v2027 = vmul.f32 %v2021, %v2026
        %v2028 = vpack.c.bf16 %v2025, %v2023
        %v2029 = vpack.c.bf16 %v2027, %v2027
        %v2032 = vunpack.c.l.b16 %v2028
        %v2033 = vunpack.c.h.b16 %v2028
        %v2034 = vunpack.c.l.b16 %v2029
        %v2035 = vpack.c.b16 %v2032, %v2032
        %v2036 = vpack.c.b16 %v2033, %v2033
        %v2037 = vpack.c.b16 %v2034, %v2034
        %2038 = vrot.lane.b32.xlu0 %v2035, 96
        %v2039 = vpop.permute.xlu0 %2038
        %2040 = vrot.lane.b32.xlu0 %v2036, 96
        %v2041 = vpop.permute.xlu0 %2040
        %2042 = vrot.lane.b32.xlu0 %v2037, 96
        %v2043 = vpop.permute.xlu0 %2042
        %vm2047 = vcmask 1044224
        %2048 = vst.msk [vmem:[#allocation4] sm:$0xf] %vm2047, %v2039
        %2049 = vst.msk [vmem:[#allocation4 + $0x4] sm:$0xf] %vm2047, %v2041
        %2050 = vst.msk [vmem:[#allocation4 + $0x8] sm:$0xf] %vm2047, %v2043
        %v2051 = vld [vmem:[#allocation4] sm:$0xf]
        %v2052 = vld [vmem:[#allocation4 + $0x4] sm:$0xf]
        %v2053 = vld [vmem:[#allocation4 + $0x8] sm:$0xf]
        %v2054 = vld [vmem:[%s625] sm:$0xf]
        %v2055 = vld [vmem:[%s625 + $0x4] sm:$0xf]
        %v2056 = vld [vmem:[%s625 + $0x8] sm:$0xf]
        %v2057 = vld [vmem:[%s625 + $0xc] sm:$0xf]
        %v2058 = vld [vmem:[%s625 + $0x10] sm:$0xf]
        %v2059 = vld [vmem:[%s625 + $0x14] sm:$0xf]
        %v2060 = vld [vmem:[%s625 + $0x18] sm:$0xf]
        %v2061 = vld [vmem:[%s625 + $0x1c] sm:$0xf]
        %v2062 = vld [vmem:[%s625 + $0x20] sm:$0xf]
        %v2063 = vld [vmem:[%s625 + $0x24] sm:$0xf]
        %v2064 = vld [vmem:[%s625 + $0x28] sm:$0xf]
        %v2065 = vld [vmem:[%s625 + $0x2c] sm:$0xf]
        %v2066 = vld [vmem:[%s625 + $0x30] sm:$0xf]
        %v2067 = vld [vmem:[%s625 + $0x34] sm:$0xf]
        %v2068 = vld [vmem:[%s625 + $0x38] sm:$0xf]
        %v2069 = vld [vmem:[%s625 + $0x3c] sm:$0xf]
        %s2070 = scalar_lea.vmem [#allocation11], %s40
        %v2071 = vld [vmem:[%s2070] sm:$0x1]
        %v2073 = vlaneseq
        %v2074 = vshrl.u32 %v2073, 7
        %v2075 = vsub.s32 0, %v2074
        %v2076 = vrot.slane %v2071, %v2075
        %v2081 = vunpack.c.l.b16 %v2051
        %v2082 = vunpack.c.l.b16 %v2052
        %v2083 = vunpack.c.l.b16 %v2053
        %v2084 = vpack.c.b16 %v2082, %v2081
        %v2085 = vpack.c.b16 %v2083, %v2083
        %v2104 = vunpack.c.l.b16 %v2054
        %v2105 = vunpack.c.l.b16 %v2055
        %v2106 = vunpack.c.l.b16 %v2056
        %v2107 = vunpack.c.l.b16 %v2057
        %v2108 = vunpack.c.l.b16 %v2058
        %v2109 = vunpack.c.l.b16 %v2059
        %v2110 = vunpack.c.l.b16 %v2060
        %v2111 = vunpack.c.l.b16 %v2061
        %v2112 = vunpack.c.l.b16 %v2062
        %v2113 = vunpack.c.l.b16 %v2063
        %v2114 = vunpack.c.l.b16 %v2064
        %v2115 = vunpack.c.l.b16 %v2065
        %v2116 = vunpack.c.l.b16 %v2066
        %v2117 = vunpack.c.l.b16 %v2067
        %v2118 = vunpack.c.l.b16 %v2068
        %v2119 = vunpack.c.l.b16 %v2069
        %v2120 = vpack.c.b16 %v2105, %v2104
        %v2121 = vpack.c.b16 %v2107, %v2106
        %v2122 = vpack.c.b16 %v2109, %v2108
        %v2123 = vpack.c.b16 %v2111, %v2110
        %v2124 = vpack.c.b16 %v2113, %v2112
        %v2125 = vpack.c.b16 %v2115, %v2114
        %v2126 = vpack.c.b16 %v2117, %v2116
        %v2127 = vpack.c.b16 %v2119, %v2118
        %2136 = vmatprep.subr.bf16.mxu0 0
        %2137 = vmatpush1.bf16.msra.mxu0 %v2120
        %2138 = vmatprep.subr.bf16.mxu0 0
        %2139 = vmatpush1.bf16.msra.mxu0 %v2121
        %2140 = vmatprep.subr.bf16.mxu0 0
        %2141 = vmatpush1.bf16.msra.mxu0 %v2122
        %2142 = vmatprep.subr.bf16.mxu0 0
        %2143 = vmatpush1.bf16.msra.mxu0 %v2123
        %2144 = vmatprep.subr.bf16.mxu0 0
        %2145 = vmatpush1.bf16.msra.mxu0 %v2124
        %2146 = vmatprep.subr.bf16.mxu0 0
        %2147 = vmatpush1.bf16.msra.mxu0 %v2125
        %2148 = vmatprep.subr.bf16.mxu0 0
        %2149 = vmatpush1.bf16.msra.mxu0 %v2126
        %2150 = vmatprep.subr.bf16.mxu0 0
        %2151 = vmatpush1.bf16.msra.mxu0 %v2127
        %2152 = vmatprep.subr.bf16.mxu0 0
        %2153 = vmatpush1.bf16.msra.mxu0 0
        %2154 = vmatprep.subr.bf16.mxu0 0
        %2155 = vmatpush1.bf16.msra.mxu0 0
        %2156 = vmatprep.subr.bf16.mxu0 0
        %2157 = vmatpush1.bf16.msra.mxu0 0
        %2158 = vmatprep.subr.bf16.mxu0 0
        %2159 = vmatpush1.bf16.msra.mxu0 0
        %2160 = vmatprep.subr.bf16.mxu0 0
        %2161 = vmatpush1.bf16.msra.mxu0 0
        %2162 = vmatprep.subr.bf16.mxu0 0
        %2163 = vmatpush1.bf16.msra.mxu0 0
        %2164 = vmatprep.subr.bf16.mxu0 0
        %2165 = vmatpush1.bf16.msra.mxu0 0
        %2166 = vmatprep.subr.bf16.mxu0 0
        %2167 = vmatpush1.bf16.msra.mxu0 0
        %2168 = vmatprep.mubr.bf16.mxu0 0
        %2169 = vmatmul.mubr.bf16.gmra.mrb[0].mxu0 %v2084
        %v2170 = vpop.f32.mrb[0].mxu0
        %v2171 = vadd.f32 %v2076, %v2170
        %v2172 = vpop.f32.mrb[0].mxu0
        %v2173 = vpop.f32.mrb[0].mxu0
        %v2174 = vadd.f32 %v2076, %v2173
        %v2175 = vpop.f32.mrb[0].mxu0
        %2176 = vmatprep.mubr.bf16.mxu0 0
        %2177 = vmatmul.mubr.bf16.gmra.mrb[0].mxu0 %v2085
        %v2178 = vpop.f32.mrb[0].mxu0
        %v2179 = vadd.f32 %v2076, %v2178
        %v2180 = vpop.f32.mrb[0].mxu0
        %v2181 = vpop.f32.mrb[0].mxu0
        %v2182 = vpop.f32.mrb[0].mxu0
        %2183 = vdwg.mxu0
        %v2184 = vadd.f32 %v753, %v2171
        %v2185 = vadd.f32 %v754, %v2174
        %v2186 = vadd.f32 %v755, %v2179
        %s2187 = scalar_lea.vmem [#allocation12], %s40
        %v2188 = vld [vmem:[%s2187] sm:$0x1]
        %s2189 = scalar_lea.vmem [#allocation14], %s40
        %v2190 = vld [vmem:[%s2189] sm:$0x1]
        %2191 = vadd.xlane.f32.xlu0 %v2184
        %v2192 = vpop.xlane.xlu0 %2191
        %2193 = vadd.xlane.f32.xlu0 %v2185
        %v2194 = vpop.xlane.xlu0 %2193
        %2195 = vadd.xlane.f32.xlu0 %v2186
        %v2196 = vpop.xlane.xlu0 %2195
        %v2197 = vrcp.pop 128.0
        %v2198 = vmul.f32 %v2192, %v2197
        %v2199 = vmul.f32 %v2194, %v2197
        %v2200 = vmul.f32 %v2196, %v2197
        %v2201 = vsub.f32 %v2184, %v2198
        %v2202 = vsub.f32 %v2185, %v2199
        %v2203 = vsub.f32 %v2186, %v2200
        %v2204 = vmul.f32 %v2201, %v2201
        %v2205 = vmul.f32 %v2202, %v2202
        %v2206 = vmul.f32 %v2203, %v2203
        %2207 = vadd.xlane.f32.xlu0 %v2204
        %v2208 = vpop.xlane.xlu0 %2207
        %2209 = vadd.xlane.f32.xlu0 %v2205
        %v2210 = vpop.xlane.xlu0 %2209
        %2211 = vadd.xlane.f32.xlu0 %v2206
        %v2212 = vpop.xlane.xlu0 %2211
        %v2213 = vmul.f32 %v2208, %v2197
        %v2214 = vmul.f32 %v2210, %v2197
        %v2215 = vmul.f32 %v2212, %v2197
        %v2216 = vadd.f32 %v2213, 1e-05
        %v2217 = vadd.f32 %v2214, 1e-05
        %v2218 = vadd.f32 %v2215, 1e-05
        %v2219 = vrsqrt.pop %v2216
        %v2220 = vrsqrt.pop %v2217
        %v2221 = vrsqrt.pop %v2218
        %v2222 = vmul.f32 %v2201, %v2219
        %v2223 = vmul.f32 %v2202, %v2220
        %v2224 = vmul.f32 %v2203, %v2221
        %v2226 = vlaneseq
        %v2227 = vshrl.u32 %v2226, 7
        %v2228 = vsub.s32 0, %v2227
        %v2229 = vrot.slane %v2188, %v2228
        %v2231 = vmul.f32 %v2222, %v2229
        %v2232 = vmul.f32 %v2223, %v2229
        %v2233 = vmul.f32 %v2224, %v2229
        %v2235 = vlaneseq
        %v2236 = vshrl.u32 %v2235, 7
        %v2237 = vsub.s32 0, %v2236
        %v2238 = vrot.slane %v2190, %v2237
        %v2240 = vadd.f32 %v2231, %v2238
        %v2241 = vadd.f32 %v2232, %v2238
        %v2242 = vadd.f32 %v2233, %v2238
        %v2243 = vpack.c.bf16 %v2241, %v2240
        %v2244 = vpack.c.bf16 %v2242, %v2242
        %v2245 = vld [vmem:[%s646] sm:$0xff]
        %v2246 = vld [vmem:[%s646 + $0x8] sm:$0xff]
        %v2247 = vld [vmem:[%s646 + $0x10] sm:$0xff]
        %v2248 = vld [vmem:[%s646 + $0x18] sm:$0xff]
        %v2249 = vld [vmem:[%s646 + $0x20] sm:$0xff]
        %v2250 = vld [vmem:[%s646 + $0x28] sm:$0xff]
        %v2251 = vld [vmem:[%s646 + $0x30] sm:$0xff]
        %v2252 = vld [vmem:[%s646 + $0x38] sm:$0xff]
        %v2253 = vld [vmem:[%s646 + $0x40] sm:$0xff]
        %v2254 = vld [vmem:[%s646 + $0x48] sm:$0xff]
        %v2255 = vld [vmem:[%s646 + $0x50] sm:$0xff]
        %v2256 = vld [vmem:[%s646 + $0x58] sm:$0xff]
        %v2257 = vld [vmem:[%s646 + $0x60] sm:$0xff]
        %v2258 = vld [vmem:[%s646 + $0x68] sm:$0xff]
        %v2259 = vld [vmem:[%s646 + $0x70] sm:$0xff]
        %v2260 = vld [vmem:[%s646 + $0x78] sm:$0xff]
        %s2261 = smul.u32 %s40, 2
        %s2262 = scalar_lea.vmem [#allocation17], %s2261
        %v2263 = vld [vmem:[%s2262] sm:$0x3]
        %v2265 = vlaneseq
        %v2266 = vshrl.u32 %v2265, 7
        %v2267 = vsub.s32 0, %v2266
        %v2268 = vrot.slane %v2263, %v2267
        %v2269 = vlaneseq
        %v2270 = vshrl.u32 %v2269, 7
        %v2271 = vsub.s32 1, %v2270
        %v2272 = vrot.slane %v2263, %v2271
        %v2291 = vunpack.c.l.b16 %v2245
        %v2292 = vunpack.c.h.b16 %v2245
        %v2293 = vunpack.c.l.b16 %v2246
        %v2294 = vunpack.c.h.b16 %v2246
        %v2295 = vunpack.c.l.b16 %v2247
        %v2296 = vunpack.c.h.b16 %v2247
        %v2297 = vunpack.c.l.b16 %v2248
        %v2298 = vunpack.c.h.b16 %v2248
        %v2299 = vunpack.c.l.b16 %v2249
        %v2300 = vunpack.c.h.b16 %v2249
        %v2301 = vunpack.c.l.b16 %v2250
        %v2302 = vunpack.c.h.b16 %v2250
        %v2303 = vunpack.c.l.b16 %v2251
        %v2304 = vunpack.c.h.b16 %v2251
        %v2305 = vunpack.c.l.b16 %v2252
        %v2306 = vunpack.c.h.b16 %v2252
        %v2307 = vunpack.c.l.b16 %v2253
        %v2308 = vunpack.c.h.b16 %v2253
        %v2309 = vunpack.c.l.b16 %v2254
        %v2310 = vunpack.c.h.b16 %v2254
        %v2311 = vunpack.c.l.b16 %v2255
        %v2312 = vunpack.c.h.b16 %v2255
        %v2313 = vunpack.c.l.b16 %v2256
        %v2314 = vunpack.c.h.b16 %v2256
        %v2315 = vunpack.c.l.b16 %v2257
        %v2316 = vunpack.c.h.b16 %v2257
        %v2317 = vunpack.c.l.b16 %v2258
        %v2318 = vunpack.c.h.b16 %v2258
        %v2319 = vunpack.c.l.b16 %v2259
        %v2320 = vunpack.c.h.b16 %v2259
        %v2321 = vunpack.c.l.b16 %v2260
        %v2322 = vunpack.c.h.b16 %v2260
        %v2323 = vpack.c.b16 %v2293, %v2291
        %v2324 = vpack.c.b16 %v2294, %v2292
        %v2325 = vpack.c.b16 %v2297, %v2295
        %v2326 = vpack.c.b16 %v2298, %v2296
        %v2327 = vpack.c.b16 %v2301, %v2299
        %v2328 = vpack.c.b16 %v2302, %v2300
        %v2329 = vpack.c.b16 %v2305, %v2303
        %v2330 = vpack.c.b16 %v2306, %v2304
        %v2331 = vpack.c.b16 %v2309, %v2307
        %v2332 = vpack.c.b16 %v2310, %v2308
        %v2333 = vpack.c.b16 %v2313, %v2311
        %v2334 = vpack.c.b16 %v2314, %v2312
        %v2335 = vpack.c.b16 %v2317, %v2315
        %v2336 = vpack.c.b16 %v2318, %v2316
        %v2337 = vpack.c.b16 %v2321, %v2319
        %v2338 = vpack.c.b16 %v2322, %v2320
        %2355 = vmatprep.subr.bf16.mxu0 %v2324
        %2356 = vmatpush1.bf16.msra.mxu0 %v2323
        %2357 = vmatprep.subr.bf16.mxu0 %v2326
        %2358 = vmatpush1.bf16.msra.mxu0 %v2325
        %2359 = vmatprep.subr.bf16.mxu0 %v2328
        %2360 = vmatpush1.bf16.msra.mxu0 %v2327
        %2361 = vmatprep.subr.bf16.mxu0 %v2330
        %2362 = vmatpush1.bf16.msra.mxu0 %v2329
        %2363 = vmatprep.subr.bf16.mxu0 %v2332
        %2364 = vmatpush1.bf16.msra.mxu0 %v2331
        %2365 = vmatprep.subr.bf16.mxu0 %v2334
        %2366 = vmatpush1.bf16.msra.mxu0 %v2333
        %2367 = vmatprep.subr.bf16.mxu0 %v2336
        %2368 = vmatpush1.bf16.msra.mxu0 %v2335
        %2369 = vmatprep.subr.bf16.mxu0 %v2338
        %2370 = vmatpush1.bf16.msra.mxu0 %v2337
        %2371 = vmatprep.subr.bf16.mxu0 0
        %2372 = vmatpush1.bf16.msra.mxu0 0
        %2373 = vmatprep.subr.bf16.mxu0 0
        %2374 = vmatpush1.bf16.msra.mxu0 0
        %2375 = vmatprep.subr.bf16.mxu0 0
        %2376 = vmatpush1.bf16.msra.mxu0 0
        %2377 = vmatprep.subr.bf16.mxu0 0
        %2378 = vmatpush1.bf16.msra.mxu0 0
        %2379 = vmatprep.subr.bf16.mxu0 0
        %2380 = vmatpush1.bf16.msra.mxu0 0
        %2381 = vmatprep.subr.bf16.mxu0 0
        %2382 = vmatpush1.bf16.msra.mxu0 0
        %2383 = vmatprep.subr.bf16.mxu0 0
        %2384 = vmatpush1.bf16.msra.mxu0 0
        %2385 = vmatprep.subr.bf16.mxu0 0
        %2386 = vmatpush1.bf16.msra.mxu0 0
        %2387 = vmatprep.mubr.bf16.mxu0 0
        %2388 = vmatmul.mubr.bf16.gmra.mrb[0].mxu0 %v2243
        %v2389 = vpop.f32.mrb[0].mxu0
        %v2390 = vadd.f32 %v2268, %v2389
        %v2391 = vpop.f32.mrb[0].mxu0
        %v2392 = vadd.f32 %v2272, %v2391
        %v2393 = vpop.f32.mrb[0].mxu0
        %v2394 = vadd.f32 %v2268, %v2393
        %v2395 = vpop.f32.mrb[0].mxu0
        %v2396 = vadd.f32 %v2272, %v2395
        %2397 = vmatprep.mubr.bf16.mxu0 0
        %2398 = vmatmul.mubr.bf16.gmra.mrb[0].mxu0 %v2244
        %v2399 = vpop.f32.mrb[0].mxu0
        %v2400 = vadd.f32 %v2268, %v2399
        %v2401 = vpop.f32.mrb[0].mxu0
        %v2402 = vadd.f32 %v2272, %v2401
        %v2403 = vpop.f32.mrb[0].mxu0
        %v2404 = vpop.f32.mrb[0].mxu0
        %2405 = vdwg.mxu0
        %v2406 = vmax.f32 %v2390, 0.0
        %v2407 = vmax.f32 %v2392, 0.0
        %v2408 = vmax.f32 %v2394, 0.0
        %v2409 = vmax.f32 %v2396, 0.0
        %v2410 = vmax.f32 %v2400, 0.0
        %v2411 = vmax.f32 %v2402, 0.0
        %v2412 = vpack.c.bf16 %v2408, %v2406
        %v2413 = vpack.c.bf16 %v2409, %v2407
        %v2414 = vpack.c.bf16 %v2410, %v2410
        %v2415 = vpack.c.bf16 %v2411, %v2411
        %v2416 = vld [vmem:[%s659] sm:$0xf]
        %v2417 = vld [vmem:[%s659 + $0x4] sm:$0xf]
        %v2418 = vld [vmem:[%s659 + $0x8] sm:$0xf]
        %v2419 = vld [vmem:[%s659 + $0xc] sm:$0xf]
        %v2420 = vld [vmem:[%s659 + $0x10] sm:$0xf]
        %v2421 = vld [vmem:[%s659 + $0x14] sm:$0xf]
        %v2422 = vld [vmem:[%s659 + $0x18] sm:$0xf]
        %v2423 = vld [vmem:[%s659 + $0x1c] sm:$0xf]
        %v2424 = vld [vmem:[%s659 + $0x20] sm:$0xf]
        %v2425 = vld [vmem:[%s659 + $0x24] sm:$0xf]
        %v2426 = vld [vmem:[%s659 + $0x28] sm:$0xf]
        %v2427 = vld [vmem:[%s659 + $0x2c] sm:$0xf]
        %v2428 = vld [vmem:[%s659 + $0x30] sm:$0xf]
        %v2429 = vld [vmem:[%s659 + $0x34] sm:$0xf]
        %v2430 = vld [vmem:[%s659 + $0x38] sm:$0xf]
        %v2431 = vld [vmem:[%s659 + $0x3c] sm:$0xf]
        %v2432 = vld [vmem:[%s659 + $0x40] sm:$0xf]
        %v2433 = vld [vmem:[%s659 + $0x44] sm:$0xf]
        %v2434 = vld [vmem:[%s659 + $0x48] sm:$0xf]
        %v2435 = vld [vmem:[%s659 + $0x4c] sm:$0xf]
        %v2436 = vld [vmem:[%s659 + $0x50] sm:$0xf]
        %v2437 = vld [vmem:[%s659 + $0x54] sm:$0xf]
        %v2438 = vld [vmem:[%s659 + $0x58] sm:$0xf]
        %v2439 = vld [vmem:[%s659 + $0x5c] sm:$0xf]
        %v2440 = vld [vmem:[%s659 + $0x60] sm:$0xf]
        %v2441 = vld [vmem:[%s659 + $0x64] sm:$0xf]
        %v2442 = vld [vmem:[%s659 + $0x68] sm:$0xf]
        %v2443 = vld [vmem:[%s659 + $0x6c] sm:$0xf]
        %v2444 = vld [vmem:[%s659 + $0x70] sm:$0xf]
        %v2445 = vld [vmem:[%s659 + $0x74] sm:$0xf]
        %v2446 = vld [vmem:[%s659 + $0x78] sm:$0xf]
        %v2447 = vld [vmem:[%s659 + $0x7c] sm:$0xf]
        %s2448 = scalar_lea.vmem [#allocation20], %s40
        %v2449 = vld [vmem:[%s2448] sm:$0x1]
        %v2451 = vlaneseq
        %v2452 = vshrl.u32 %v2451, 7
        %v2453 = vsub.s32 0, %v2452
        %v2454 = vrot.slane %v2449, %v2453
        %v2488 = vunpack.c.l.b16 %v2416
        %v2489 = vunpack.c.l.b16 %v2417
        %v2490 = vunpack.c.l.b16 %v2418
        %v2491 = vunpack.c.l.b16 %v2419
        %v2492 = vunpack.c.l.b16 %v2420
        %v2493 = vunpack.c.l.b16 %v2421
        %v2494 = vunpack.c.l.b16 %v2422
        %v2495 = vunpack.c.l.b16 %v2423
        %v2496 = vunpack.c.l.b16 %v2424
        %v2497 = vunpack.c.l.b16 %v2425
        %v2498 = vunpack.c.l.b16 %v2426
        %v2499 = vunpack.c.l.b16 %v2427
        %v2500 = vunpack.c.l.b16 %v2428
        %v2501 = vunpack.c.l.b16 %v2429
        %v2502 = vunpack.c.l.b16 %v2430
        %v2503 = vunpack.c.l.b16 %v2431
        %v2504 = vunpack.c.l.b16 %v2432
        %v2505 = vunpack.c.l.b16 %v2433
        %v2506 = vunpack.c.l.b16 %v2434
        %v2507 = vunpack.c.l.b16 %v2435
        %v2508 = vunpack.c.l.b16 %v2436
        %v2509 = vunpack.c.l.b16 %v2437
        %v2510 = vunpack.c.l.b16 %v2438
        %v2511 = vunpack.c.l.b16 %v2439
        %v2512 = vunpack.c.l.b16 %v2440
        %v2513 = vunpack.c.l.b16 %v2441
        %v2514 = vunpack.c.l.b16 %v2442
        %v2515 = vunpack.c.l.b16 %v2443
        %v2516 = vunpack.c.l.b16 %v2444
        %v2517 = vunpack.c.l.b16 %v2445
        %v2518 = vunpack.c.l.b16 %v2446
        %v2519 = vunpack.c.l.b16 %v2447
        %v2520 = vpack.c.b16 %v2489, %v2488
        %v2521 = vpack.c.b16 %v2491, %v2490
        %v2522 = vpack.c.b16 %v2493, %v2492
        %v2523 = vpack.c.b16 %v2495, %v2494
        %v2524 = vpack.c.b16 %v2497, %v2496
        %v2525 = vpack.c.b16 %v2499, %v2498
        %v2526 = vpack.c.b16 %v2501, %v2500
        %v2527 = vpack.c.b16 %v2503, %v2502
        %v2528 = vpack.c.b16 %v2505, %v2504
        %v2529 = vpack.c.b16 %v2507, %v2506
        %v2530 = vpack.c.b16 %v2509, %v2508
        %v2531 = vpack.c.b16 %v2511, %v2510
        %v2532 = vpack.c.b16 %v2513, %v2512
        %v2533 = vpack.c.b16 %v2515, %v2514
        %v2534 = vpack.c.b16 %v2517, %v2516
        %v2535 = vpack.c.b16 %v2519, %v2518
        %2552 = vmatprep.subr.bf16.mxu0 0
        %2553 = vmatpush1.bf16.msra.mxu0 %v2520
        %2554 = vmatprep.subr.bf16.mxu0 0
        %2555 = vmatpush1.bf16.msra.mxu0 %v2521
        %2556 = vmatprep.subr.bf16.mxu0 0
        %2557 = vmatpush1.bf16.msra.mxu0 %v2522
        %2558 = vmatprep.subr.bf16.mxu0 0
        %2559 = vmatpush1.bf16.msra.mxu0 %v2523
        %2560 = vmatprep.subr.bf16.mxu0 0
        %2561 = vmatpush1.bf16.msra.mxu0 %v2524
        %2562 = vmatprep.subr.bf16.mxu0 0
        %2563 = vmatpush1.bf16.msra.mxu0 %v2525
        %2564 = vmatprep.subr.bf16.mxu0 0
        %2565 = vmatpush1.bf16.msra.mxu0 %v2526
        %2566 = vmatprep.subr.bf16.mxu0 0
        %2567 = vmatpush1.bf16.msra.mxu0 %v2527
        %2568 = vmatprep.subr.bf16.mxu0 0
        %2569 = vmatpush1.bf16.msra.mxu0 %v2528
        %2570 = vmatprep.subr.bf16.mxu0 0
        %2571 = vmatpush1.bf16.msra.mxu0 %v2529
        %2572 = vmatprep.subr.bf16.mxu0 0
        %2573 = vmatpush1.bf16.msra.mxu0 %v2530
        %2574 = vmatprep.subr.bf16.mxu0 0
        %2575 = vmatpush1.bf16.msra.mxu0 %v2531
        %2576 = vmatprep.subr.bf16.mxu0 0
        %2577 = vmatpush1.bf16.msra.mxu0 %v2532
        %2578 = vmatprep.subr.bf16.mxu0 0
        %2579 = vmatpush1.bf16.msra.mxu0 %v2533
        %2580 = vmatprep.subr.bf16.mxu0 0
        %2581 = vmatpush1.bf16.msra.mxu0 %v2534
        %2582 = vmatprep.subr.bf16.mxu0 0
        %2583 = vmatpush1.bf16.msra.mxu0 %v2535
        %2584 = vmatprep.mubr.bf16.mxu0 %v2413
        %2585 = vmatmul.mubr.bf16.gmra.mrb[0].mxu0 %v2412
        %v2586 = vpop.f32.mrb[0].mxu0
        %v2587 = vadd.f32 %v2454, %v2586
        %v2588 = vpop.f32.mrb[0].mxu0
        %v2589 = vpop.f32.mrb[0].mxu0
        %v2590 = vadd.f32 %v2454, %v2589
        %v2591 = vpop.f32.mrb[0].mxu0
        %2592 = vmatprep.mubr.bf16.mxu0 %v2415
        %2593 = vmatmul.mubr.bf16.gmra.mrb[0].mxu0 %v2414
        %v2594 = vpop.f32.mrb[0].mxu0
        %v2595 = vadd.f32 %v2454, %v2594
        %v2596 = vpop.f32.mrb[0].mxu0
        %v2597 = vpop.f32.mrb[0].mxu0
        %v2598 = vpop.f32.mrb[0].mxu0
        %2599 = vdwg.mxu0
        %v2600 = vadd.f32 %v2240, %v2587
        %v2601 = vadd.f32 %v2241, %v2590
        %v2602 = vadd.f32 %v2242, %v2595
        %s2603 = scalar_lea.vmem [#allocation21], %s40
        %v2604 = vld [vmem:[%s2603] sm:$0x1]
        %s2605 = scalar_lea.vmem [#allocation23], %s40
        %v2606 = vld [vmem:[%s2605] sm:$0x1]
        %2607 = vadd.xlane.f32.xlu0 %v2600
        %v2608 = vpop.xlane.xlu0 %2607
        %2609 = vadd.xlane.f32.xlu0 %v2601
        %v2610 = vpop.xlane.xlu0 %2609
        %2611 = vadd.xlane.f32.xlu0 %v2602
        %v2612 = vpop.xlane.xlu0 %2611
        %v2613 = vmul.f32 %v2608, %v2197
        %v2614 = vmul.f32 %v2610, %v2197
        %v2615 = vmul.f32 %v2612, %v2197
        %v2616 = vsub.f32 %v2600, %v2613
        %v2617 = vsub.f32 %v2601, %v2614
        %v2618 = vsub.f32 %v2602, %v2615
        %v2619 = vmul.f32 %v2616, %v2616
        %v2620 = vmul.f32 %v2617, %v2617
        %v2621 = vmul.f32 %v2618, %v2618
        %2622 = vadd.xlane.f32.xlu0 %v2619
        %v2623 = vpop.xlane.xlu0 %2622
        %2624 = vadd.xlane.f32.xlu0 %v2620
        %v2625 = vpop.xlane.xlu0 %2624
        %2626 = vadd.xlane.f32.xlu0 %v2621
        %v2627 = vpop.xlane.xlu0 %2626
        %v2628 = vmul.f32 %v2623, %v2197
        %v2629 = vmul.f32 %v2625, %v2197
        %v2630 = vmul.f32 %v2627, %v2197
        %v2631 = vadd.f32 %v2628, 1e-05
        %v2632 = vadd.f32 %v2629, 1e-05
        %v2633 = vadd.f32 %v2630, 1e-05
        %v2634 = vrsqrt.pop %v2631
        %v2635 = vrsqrt.pop %v2632
        %v2636 = vrsqrt.pop %v2633
        %v2637 = vmul.f32 %v2616, %v2634
        %v2638 = vmul.f32 %v2617, %v2635
        %v2639 = vmul.f32 %v2618, %v2636
        %v2641 = vlaneseq
        %v2642 = vshrl.u32 %v2641, 7
        %v2643 = vsub.s32 0, %v2642
        %v2644 = vrot.slane %v2604, %v2643
        %v2646 = vmul.f32 %v2637, %v2644
        %v2647 = vmul.f32 %v2638, %v2644
        %v2648 = vmul.f32 %v2639, %v2644
        %v2650 = vlaneseq
        %v2651 = vshrl.u32 %v2650, 7
        %v2652 = vsub.s32 0, %v2651
        %v2653 = vrot.slane %v2606, %v2652
        %v2655 = vadd.f32 %v2646, %v2653
        %v2656 = vadd.f32 %v2647, %v2653
        %v2657 = vadd.f32 %v2648, %v2653
        %2658 = vst [vmem:[#allocation2] sm:$0xff] %v2655
        %2659 = vst [vmem:[#allocation2 + $0x8] sm:$0xff] %v2656
        %2660 = vst [vmem:[#allocation2 + $0x10] sm:$0xff] %v2657
        %p2661 = scmp.eq.s32.totalorder %s40, 1
        // Predicated region
        $region142: #{bwformer_forward.3} parent=75 // pred_check
          %p2662 = pneg %p2661
        $region143: #{bwformer_forward.3} parent=75 // pred_check_branch
          %2664 = sbr.rel (%p2662) target = $region145
        $region144: #{bwformer_forward.3} parent=75 // pred_region
          %v2665 = vlaneseq
          %v2666 = vshrl.u32 %v2665, 7
          %v2667 = vadd.s32 %v2666, 8
          %v2668 = vadd.s32 %v2666, 16
          %vm2669 = vcmp.lt.s32.totalorder %v2666, 20
          %vm2670 = vcmp.lt.s32.totalorder %v2667, 20
          %vm2671 = vcmp.lt.s32.totalorder %v2668, 20
          %v2672 = vsel %vm2669, %v2655, 0.0
          %v2673 = vsel %vm2670, %v2656, 0.0
          %v2674 = vsel %vm2671, %v2657, 0.0
          %v2675 = vadd.f32 %v2672, %v2673
          %v2676 = vadd.f32 %v2675, %v2674
          %v2677 = vrot.slane %v2676, 4
          %v2678 = vadd.f32 %v2676, %v2677
          %v2679 = vrot.slane %v2678, 2
          %v2680 = vadd.f32 %v2678, %v2679
          %v2681 = vrot.slane %v2680, 1
          %v2682 = vadd.f32 %v2680, %v2681
          %v2683 = vmul.f32 %v2682, 0.05
          %v2684 = vpack.c.bf16 %v2683, %v2683
          %v2685 = vld [vmem:[#allocation24] sm:$0xf]
          %v2686 = vld [vmem:[#allocation24 + $0x4] sm:$0xf]
          %v2687 = vld [vmem:[#allocation24 + $0x8] sm:$0xf]
          %v2688 = vld [vmem:[#allocation24 + $0xc] sm:$0xf]
          %v2689 = vld [vmem:[#allocation24 + $0x10] sm:$0xf]
          %v2690 = vld [vmem:[#allocation24 + $0x14] sm:$0xf]
          %v2691 = vld [vmem:[#allocation24 + $0x18] sm:$0xf]
          %v2692 = vld [vmem:[#allocation24 + $0x1c] sm:$0xf]
          %v2693 = vld [vmem:[#allocation24 + $0x20] sm:$0xf]
          %v2694 = vld [vmem:[#allocation24 + $0x24] sm:$0xf]
          %v2695 = vld [vmem:[#allocation24 + $0x28] sm:$0xf]
          %v2696 = vld [vmem:[#allocation24 + $0x2c] sm:$0xf]
          %v2697 = vld [vmem:[#allocation24 + $0x30] sm:$0xf]
          %v2698 = vld [vmem:[#allocation24 + $0x34] sm:$0xf]
          %v2699 = vld [vmem:[#allocation24 + $0x38] sm:$0xf]
          %v2700 = vld [vmem:[#allocation24 + $0x3c] sm:$0xf]
          %v2701 = vld [vmem:[#allocation26] sm:$0x1]
          %v2718 = vunpack.c.l.b16 %v2685
          %v2719 = vunpack.c.l.b16 %v2686
          %v2720 = vunpack.c.l.b16 %v2687
          %v2721 = vunpack.c.l.b16 %v2688
          %v2722 = vunpack.c.l.b16 %v2689
          %v2723 = vunpack.c.l.b16 %v2690
          %v2724 = vunpack.c.l.b16 %v2691
          %v2725 = vunpack.c.l.b16 %v2692
          %v2726 = vunpack.c.l.b16 %v2693
          %v2727 = vunpack.c.l.b16 %v2694
          %v2728 = vunpack.c.l.b16 %v2695
          %v2729 = vunpack.c.l.b16 %v2696
          %v2730 = vunpack.c.l.b16 %v2697
          %v2731 = vunpack.c.l.b16 %v2698
          %v2732 = vunpack.c.l.b16 %v2699
          %v2733 = vunpack.c.l.b16 %v2700
          %v2734 = vpack.c.b16 %v2719, %v2718
          %v2735 = vpack.c.b16 %v2721, %v2720
          %v2736 = vpack.c.b16 %v2723, %v2722
          %v2737 = vpack.c.b16 %v2725, %v2724
          %v2738 = vpack.c.b16 %v2727, %v2726
          %v2739 = vpack.c.b16 %v2729, %v2728
          %v2740 = vpack.c.b16 %v2731, %v2730
          %v2741 = vpack.c.b16 %v2733, %v2732
          %2750 = vmatprep.subr.bf16.mxu0 0
          %2751 = vmatpush1.bf16.msra.mxu0 %v2734
          %2752 = vmatprep.subr.bf16.mxu0 0
          %2753 = vmatpush1.bf16.msra.mxu0 %v2735
          %2754 = vmatprep.subr.bf16.mxu0 0
          %2755 = vmatpush1.bf16.msra.mxu0 %v2736
          %2756 = vmatprep.subr.bf16.mxu0 0
          %2757 = vmatpush1.bf16.msra.mxu0 %v2737
          %2758 = vmatprep.subr.bf16.mxu0 0
          %2759 = vmatpush1.bf16.msra.mxu0 %v2738
          %2760 = vmatprep.subr.bf16.mxu0 0
          %2761 = vmatpush1.bf16.msra.mxu0 %v2739
          %2762 = vmatprep.subr.bf16.mxu0 0
          %2763 = vmatpush1.bf16.msra.mxu0 %v2740
          %2764 = vmatprep.subr.bf16.mxu0 0
          %2765 = vmatpush1.bf16.msra.mxu0 %v2741
          %2766 = vmatprep.subr.bf16.mxu0 0
          %2767 = vmatpush1.bf16.msra.mxu0 0
          %2768 = vmatprep.subr.bf16.mxu0 0
          %2769 = vmatpush1.bf16.msra.mxu0 0
          %2770 = vmatprep.subr.bf16.mxu0 0
          %2771 = vmatpush1.bf16.msra.mxu0 0
          %2772 = vmatprep.subr.bf16.mxu0 0
          %2773 = vmatpush1.bf16.msra.mxu0 0
          %2774 = vmatprep.subr.bf16.mxu0 0
          %2775 = vmatpush1.bf16.msra.mxu0 0
          %2776 = vmatprep.subr.bf16.mxu0 0
          %2777 = vmatpush1.bf16.msra.mxu0 0
          %2778 = vmatprep.subr.bf16.mxu0 0
          %2779 = vmatpush1.bf16.msra.mxu0 0
          %2780 = vmatprep.subr.bf16.mxu0 0
          %2781 = vmatpush1.bf16.msra.mxu0 0
          %2782 = vmatprep.mubr.bf16.mxu0 0
          %2783 = vmatmul.mubr.bf16.gmra.mrb[0].mxu0 %v2684
          %v2784 = vpop.f32.mrb[0].mxu0
          %v2785 = vadd.f32 %v2701, %v2784
          %v2786 = vpop.f32.mrb[0].mxu0
          %v2787 = vpop.f32.mrb[0].mxu0
          %v2788 = vpop.f32.mrb[0].mxu0
          %2789 = vdwg.mxu0
          %vm2790 = vcmask 712704
          %2791 = vst.msk [vmem:[#allocation27] sm:$0x1] %vm2790, %v2785
        $region145: #{bwformer_forward.3} parent=75 // pred_fallthru
          _
        // Predicated region
        $region146: #{bwformer_forward.3} parent=75 // pred_check
          %p2792 = pneg %p367
        $region147: #{bwformer_forward.3} parent=75 // pred_check_branch
          %2794 = sbr.rel (%p2792) target = $region149
        $region148: #{bwformer_forward.3} parent=75 // pred_region
          %s2796 = ssub.s32 16, 16
          %2797 = vsyncadd [#allocation7], %s2796
          %s2799 = sshll.u32 [#allocation27], 4
          %s2800 = int_to_ptr.vmem [resolvable:$true] %s2799
          %2802 = dma.vmem_to_hbm [thread:$0]  %s2800, 16, %s15, [#allocation7]
        $region149: #{bwformer_forward.3} parent=75 // pred_fallthru
          _
        // Predicated region
        $region150: #{bwformer_forward.3} parent=75 // pred_check
          %p2803 = pneg %p367
        $region151: #{bwformer_forward.3} parent=75 // pred_check_branch
          %2805 = sbr.rel (%p2803) target = $region153
        $region152: #{bwformer_forward.3} parent=75 // pred_region
          %2806 = dma.done [#allocation7], 16
        $region153: #{bwformer_forward.3} parent=75 // pred_fallthru
          _
      $region76: #{bwformer_forward.3} parent=5 // pred_fallthru
        _
      %p2807 = scmp.le.s32.totalorder 2, %s35
      // Predicated region
      $region154: #{bwformer_forward.3} parent=5 // pred_check
        %p2808 = pneg %p2807
      $region155: #{bwformer_forward.3} parent=5 // pred_check_branch
        %2810 = sbr.rel (%p2808) target = $region157
      $region156: #{bwformer_forward.3} parent=5 // pred_region
        %s2811 = ssub.s32 %s35, 2
      $region157: #{bwformer_forward.3} parent=5 // pred_fallthru
        _
    $region6: #{bwformer_forward.3} parent=1 // loop_footer
      %s39 = sadd.s32 1, %s35
    $region7: #{bwformer_forward.3} parent=1 // loop_footer_branch
      %34 = sbr.rel target = $region3
    $region8: #{bwformer_forward.3} parent=1 // loop_exit
      _
    %2812 = vsyncpa [#allocation6], 1
    %s2813 = scalar_lea.sflag [#allocation6], 1
    %2814 = vsyncpa %s2813, 1
    %2815 = vsyncpa [#allocation9], 1
    %2816 = vsyncpa [#allocation13], 1
    %2817 = vsyncpa [#allocation16], 1
    %s2818 = scalar_lea.sflag [#allocation16], 1
    %2819 = vsyncpa %s2818, 1
    %2820 = vsyncpa [#allocation19], 1
    %s2821 = scalar_lea.sflag [#allocation19], 1
    %2822 = vsyncpa %s2821, 1
    %2823 = vsyncpa [#allocation22], 1
    %2824 = vsyncpa [#allocation25], 1
    %2825 = vsyncpa [#allocation7], 1
    %s2826 = scalar_lea.sflag [#allocation7], 1
    %2827 = vsyncpa %s2826, 1

</llo_original>
